<compile_context>
chip_gen: v7x
topology: tpu7x:2x2x1
jax: 0.10.0
libtpu: 0.0.40
codegen_flags: <defaults>
</compile_context>

<pallas_src>
import functools
import math

import jax
import jax.numpy as jnp
from jax.experimental import pallas as pl
from jax.experimental.pallas import tpu as pltpu

FEAT_DIM = 1024  # I3D get_logits_dim() == 1024 (mixed_5c features)


def _round_up(x, m):
    return ((x + m - 1) // m) * m


def _choose_row_tile(s, max_tile=512):
    """Largest multiple of 8 that divides s and is <= max_tile."""
    best = 0
    t = 8
    while t <= min(s, max_tile):
        if s % t == 0:
            best = t
        t += 8
    if best == 0:
        # TODO(synk): ragged spatial sizes (S % 8 != 0) would need in-kernel
        #             row masking; not required for the shapes exercised here.
        best = s
    return best


# ----------------------------------------------------------------------------
# Fused Pallas kernel: stem matmul + 1x1x1 conv chain + global average pool
# ----------------------------------------------------------------------------
def _fused_backbone_pool_kernel(a_ref, w1_ref, b1_ref, w2_ref, b2_ref,
                                w3_ref, b3_ref, o_ref, acc_ref, *, inv_s):
    s = pl.program_id(1)

    @pl.when(s == 0)
    def _():
        acc_ref[...] = jnp.zeros_like(acc_ref)

    # Layer 1 (stem conv as matmul): bf16 x bf16 -> f32 accumulate on the MXU,
    # bias + ReLU epilogue in f32; re-cast to bf16 only to feed the next dot.
    h1 = jnp.dot(a_ref[...], w1_ref[...], preferred_element_type=jnp.float32)
    h1 = jnp.maximum(h1 + b1_ref[...], 0.0).astype(jnp.bfloat16)

    # Layer 2 (1x1x1 conv 64 -> 192): full-K single dot, no K grid axis.
    h2 = jnp.dot(h1, w2_ref[...], preferred_element_type=jnp.float32)
    h2 = jnp.maximum(h2 + b2_ref[...], 0.0).astype(jnp.bfloat16)

    # Layer 3 (1x1x1 conv 192 -> 1024): full-K single dot, lane-dense output.
    h3 = jnp.dot(h2, w3_ref[...], preferred_element_type=jnp.float32)
    h3 = jnp.maximum(h3 + b3_ref[...], 0.0)

    # AdaptiveAvgPool3d((1,1,1)) folded into the epilogue: accumulate the
    # partial row-sum of this tile (rows == spatial-temporal positions).
    acc_ref[...] += jnp.sum(h3, axis=0, keepdims=True)

    @pl.when(s == pl.num_programs(1) - 1)
    def _():
        o_ref[0] = (acc_ref[...] * inv_s).astype(o_ref.dtype)


def fused_backbone_pool(col, w1, b1, w2, b2, w3, b3, *, n_videos,
                        s_per_video, tm):
    """col: (n_videos*s_per_video, Kp) bf16 im2col rows -> (n_videos,1,C3) f32."""
    M, Kp = col.shape
    C1, C2, C3 = w1.shape[1], w2.shape[1], w3.shape[1]
    s_steps = s_per_video // tm
    assert s_steps * tm == s_per_video

    kernel = functools.partial(_fused_backbone_pool_kernel,
                               inv_s=1.0 / float(s_per_video))

    cost = pl.CostEstimate(
        flops=int(2 * M * (Kp * C1 + C1 * C2 + C2 * C3)),
        transcendentals=0,
        bytes_accessed=int(col.size * 2
                           + (w1.size + w2.size + w3.size) * 2
                           + (b1.size + b2.size + b3.size) * 4
                           + n_videos * C3 * 4),
    )

    return pl.pallas_call(
        kernel,
        out_shape=jax.ShapeDtypeStruct((n_videos, 1, C3), jnp.float32),
        grid_spec=pltpu.PrefetchScalarGridSpec(
            num_scalar_prefetch=0,
            grid=(n_videos, s_steps),
            in_specs=[
                pl.BlockSpec((tm, Kp), lambda n, s: (n * s_steps + s, 0)),
                pl.BlockSpec((Kp, C1), lambda n, s: (0, 0)),
                pl.BlockSpec((1, C1), lambda n, s: (0, 0)),
                pl.BlockSpec((C1, C2), lambda n, s: (0, 0)),
                pl.BlockSpec((1, C2), lambda n, s: (0, 0)),
                pl.BlockSpec((C2, C3), lambda n, s: (0, 0)),
                pl.BlockSpec((1, C3), lambda n, s: (0, 0)),
            ],
            out_specs=pl.BlockSpec((1, 1, C3), lambda n, s: (n, 0, 0)),
            scratch_shapes=[pltpu.VMEM((1, C3), jnp.float32)],
        ),
        compiler_params=pltpu.CompilerParams(
            dimension_semantics=("parallel", "arbitrary")),
        cost_estimate=cost,
    )(col, w1, b1, w2, b2, w3, b3)


# ----------------------------------------------------------------------------
# Glue: bf16 im2col for the 3D conv stem (pure indexing, no compute)
# ----------------------------------------------------------------------------
def im2col_3d_bf16(x, k, stride, pad, k_padded):
    """x: (N, T, H, W, C) -> ((N*To*Ho*Wo, k_padded) bf16, (To, Ho, Wo)).

    K is padded with whole zero taps at construction time so the kernel sees
    a lane-aligned contraction dim without a second pad pass over activations.
    """
    N, T, H, W, C = x.shape
    x = x.astype(jnp.bfloat16)
    xp = jnp.pad(x, ((0, 0), (pad, pad), (pad, pad), (pad, pad), (0, 0)))
    To = (T + 2 * pad - k) // stride + 1
    Ho = (H + 2 * pad - k) // stride + 1
    Wo = (W + 2 * pad - k) // stride + 1
    cols = []
    for dt in range(k):
        for dh in range(k):
            for dw in range(k):
                cols.append(
                    xp[:, dt:dt + To * stride:stride,
                          dh:dh + Ho * stride:stride,
                          dw:dw + Wo * stride:stride, :])
    n_zero_taps = (k_padded - k * k * k * C) // C
    if n_zero_taps > 0:
        cols.extend([jnp.zeros_like(cols[0])] * n_zero_taps)
    col = jnp.stack(cols, axis=-2)                 # (N, To, Ho, Wo, taps_p, C)
    return col.reshape(N * To * Ho * Wo, k_padded), (To, Ho, Wo)


# ----------------------------------------------------------------------------
# I3D stand-in backbone + global average pool (all compute inside the kernel)
# ----------------------------------------------------------------------------
def i3d_backbone_pooled(x_ncthw, params):
    """x: (N, C, T, H, W) -> globally averaged features (N, FEAT_DIM)."""
    x = jnp.transpose(x_ncthw, (0, 2, 3, 4, 1))    # channels-last (N,T,H,W,C)
    N, T, H, W, C = x.shape
    k, stride, pad = 7, 2, 3
    K = k * k * k * C
    # Pad K up to a multiple of both 128 (lane width) and C (whole taps).
    Kp = _round_up(K, 128 * C // math.gcd(128, C))

    col, (To, Ho, Wo) = im2col_3d_bf16(x, k, stride, pad, Kp)
    S = To * Ho * Wo
    tm = _choose_row_tile(S)

    w1 = jnp.pad(params["w1"].astype(jnp.bfloat16), ((0, Kp - K), (0, 0)))
    w2 = params["w2"].astype(jnp.bfloat16)
    w3 = params["w3"].astype(jnp.bfloat16)
    b1 = params["b1"].reshape(1, -1).astype(jnp.float32)
    b2 = params["b2"].reshape(1, -1).astype(jnp.float32)
    b3 = params["b3"].reshape(1, -1).astype(jnp.float32)

    pooled = fused_backbone_pool(col, w1, b1, w2, b2, w3, b3,
                                 n_videos=N, s_per_video=S, tm=tm)
    return pooled.reshape(N, FEAT_DIM)


def init_params(key):
    k1, k2, k3 = jax.random.split(key, 3)
    return {
        "w1": 0.02 * jax.random.normal(k1, (7 * 7 * 7 * 3, 64), jnp.float32),
        "b1": jnp.zeros((64,), jnp.float32),
        "w2": 0.05 * jax.random.normal(k2, (64, 192), jnp.float32),
        "b2": jnp.zeros((192,), jnp.float32),
        "w3": 0.05 * jax.random.normal(k3, (192, FEAT_DIM), jnp.float32),
        "b3": jnp.zeros((FEAT_DIM,), jnp.float32),
    }


# ----------------------------------------------------------------------------
# I3D_feat_extractor.forward semantics
# ----------------------------------------------------------------------------
@jax.jit
def i3d_feat_extractor_forward(videos, params):
    """videos: (B, N_Win, T, C, H, W) or (B, N_Win, crops, T, C, H, W)."""
    ndim = videos.ndim
    if ndim == 6:
        B, N_Win, T, C, H, W = videos.shape
        v = videos.reshape(B * N_Win, T, C, H, W)
    elif ndim == 7:
        B, N_Win, crops, T, C, H, W = videos.shape
        v = videos.reshape(B * N_Win * crops, T, C, H, W)
    else:
        raise ValueError("videos must be 6- or 7-dimensional")
    v = jnp.transpose(v, (0, 2, 1, 3, 4))          # (Nv, C, T, H, W)

    # finetune=False path: eval mode, no grad (no-op under inference here)
    pooled = i3d_backbone_pooled(v, params)        # (Nv, FEAT_DIM)

    if ndim == 6:
        batch_feats = pooled.reshape(B, N_Win, -1)
    else:
        batch_feats = pooled.reshape(B, N_Win, crops, -1).mean(axis=2)

    return jnp.transpose(batch_feats, (0, 2, 1))   # (B, FEAT_DIM, N_Win)


# ----------------------------------------------------------------------------
# Pure-JAX f32 reference (validation only; no Pallas)
# ----------------------------------------------------------------------------
def reference_forward(videos, params):
    if videos.ndim == 6:
        B, N_Win, T, C, H, W = videos.shape
        v = videos.reshape(B * N_Win, T, C, H, W)
    else:
        B, N_Win, crops, T, C, H, W = videos.shape
        v = videos.reshape(B * N_Win * crops, T, C, H, W)
    v = jnp.transpose(v, (0, 2, 1, 3, 4))
    x = jnp.transpose(v, (0, 2, 3, 4, 1)).astype(jnp.float32)
    N, T, H, W, C = x.shape
    xp = jnp.pad(x, ((0, 0), (3, 3), (3, 3), (3, 3), (0, 0)))
    To = (T + 6 - 7) // 2 + 1
    Ho = (H + 6 - 7) // 2 + 1
    Wo = (W + 6 - 7) // 2 + 1
    cols = []
    for dt in range(7):
        for dh in range(7):
            for dw in range(7):
                cols.append(xp[:, dt:dt + To * 2:2, dh:dh + Ho * 2:2,
                               dw:dw + Wo * 2:2, :])
    col = jnp.stack(cols, axis=-2).reshape(N * To * Ho * Wo, 343 * C)
    h = jnp.maximum(col @ params["w1"] + params["b1"], 0.0)
    h = jnp.maximum(h @ params["w2"] + params["b2"], 0.0)
    h = jnp.maximum(h @ params["w3"] + params["b3"], 0.0)
    pooled = h.reshape(N, To * Ho * Wo, -1).mean(axis=1)
    if videos.ndim == 6:
        feats = pooled.reshape(B, N_Win, -1)
    else:
        feats = pooled.reshape(B, N_Win, crops, -1).mean(axis=2)
    return jnp.transpose(feats, (0, 2, 1))


if __name__ == "__main__":
    key = jax.random.PRNGKey(0)
    pkey, vkey = jax.random.split(key)
    params = init_params(pkey)

    # small shapes: B=2, N_Win=3, T=8, C=3 (RGB), H=W=16
    videos = jax.random.normal(vkey, (2, 3, 8, 3, 16, 16), jnp.float32)

    out = i3d_feat_extractor_forward(videos, params)
    out = jax.block_until_ready(out)
    assert out.shape == (2, FEAT_DIM, 3), out.shape
    assert bool(jnp.all(jnp.isfinite(out)))

    # validate against the pure-JAX f32 reference (bf16 MXU drift expected)
    ref = reference_forward(videos, params)
    rel = float(jnp.linalg.norm(out - ref) / (jnp.linalg.norm(ref) + 1e-12))
    assert rel < 5e-2, f"relative L2 error too large: {rel}"

    print("KERNEL_OK")
</pallas_src>

<mosaic_0001>
module attributes {stable_mosaic.version = 11 : i64} {
  func.func @_fused_backbone_pool_kernel(%arg0: i32, %arg1: i32, %arg2: memref<256x1152xbf16, #tpu.memory_space<vmem>>, %arg3: memref<1152x64xbf16, #tpu.memory_space<vmem>>, %arg4: memref<1x64xf32, #tpu.memory_space<vmem>>, %arg5: memref<64x192xbf16, #tpu.memory_space<vmem>>, %arg6: memref<1x192xf32, #tpu.memory_space<vmem>>, %arg7: memref<192x1024xbf16, #tpu.memory_space<vmem>>, %arg8: memref<1x1024xf32, #tpu.memory_space<vmem>>, %arg9: memref<1x1x1024xf32, #tpu.memory_space<vmem>>, %arg10: memref<1x1024xf32, #tpu.memory_space<vmem>>) attributes {dimension_semantics = [#tpu.dimension_semantics<parallel>, #tpu.dimension_semantics<arbitrary>], iteration_bounds = array<i64: 6, 1>, scalar_prefetch = 0 : i64, scratch_operands = 1 : i64, tpu.core_type = #tpu.core_type<tc>, window_params = [{transform_indices = @transform_0, window_bounds = array<i64: 256, 1152>}, {pipeline_mode = #tpu.pipeline_mode<synchronous>, transform_indices = @transform_1, window_bounds = array<i64: 1152, 64>}, {pipeline_mode = #tpu.pipeline_mode<synchronous>, transform_indices = @transform_2, window_bounds = array<i64: 1, 64>}, {pipeline_mode = #tpu.pipeline_mode<synchronous>, transform_indices = @transform_3, window_bounds = array<i64: 64, 192>}, {pipeline_mode = #tpu.pipeline_mode<synchronous>, transform_indices = @transform_4, window_bounds = array<i64: 1, 192>}, {pipeline_mode = #tpu.pipeline_mode<synchronous>, transform_indices = @transform_5, window_bounds = array<i64: 192, 1024>}, {pipeline_mode = #tpu.pipeline_mode<synchronous>, transform_indices = @transform_6, window_bounds = array<i64: 1, 1024>}, {transform_indices = @transform_7, window_bounds = array<i64: 1, 1, 1024>}]} {
    %c0_i32 = arith.constant 0 : i32
    %0 = arith.cmpi eq, %arg1, %c0_i32 : i32
    %1 = arith.extui %0 : i1 to i32
    %c0_i32_0 = arith.constant 0 : i32
    %2 = arith.cmpi ne, %1, %c0_i32_0 : i32
    scf.if %2 {
      %cst_26 = arith.constant 0.000000e+00 : f32
      %35 = vector.broadcast %cst_26 : f32 to vector<1x1024xf32>
      %c0_27 = arith.constant 0 : index
      %c0_28 = arith.constant 0 : index
      %36 = vector.load %arg10[%c0_27, %c0_28] : memref<1x1024xf32, #tpu.memory_space<vmem>>, vector<1x1024xf32>
      tpu.vector_store %arg10[%c0_27, %c0_28], %35 {strides = array<i32>} : memref<1x1024xf32, #tpu.memory_space<vmem>>, vector<1x1024xf32>,
    } else {
    }
    %c0 = arith.constant 0 : index
    %c0_1 = arith.constant 0 : index
    %3 = vector.load %arg2[%c0, %c0_1] : memref<256x1152xbf16, #tpu.memory_space<vmem>>, vector<256x1152xbf16>
    %c0_2 = arith.constant 0 : index
    %c0_3 = arith.constant 0 : index
    %4 = vector.load %arg3[%c0_2, %c0_3] : memref<1152x64xbf16, #tpu.memory_space<vmem>>, vector<1152x64xbf16>
    %cst = arith.constant dense<0.000000e+00> : vector<256x64xf32>
    %5 = tpu.matmul %3, %4, %cst {dimension_numbers = #tpu.dot_dimension_numbers<[1], [0], [0], [1], [0, 0, 1, 1], [], []>} : vector<256x1152xbf16>, vector<1152x64xbf16>, vector<256x64xf32> -> vector<256x64xf32>
    %c0_4 = arith.constant 0 : index
    %c0_5 = arith.constant 0 : index
    %6 = vector.load %arg4[%c0_4, %c0_5] : memref<1x64xf32, #tpu.memory_space<vmem>>, vector<1x64xf32>
    %7 = vector.broadcast %6 : vector<1x64xf32> to vector<256x64xf32>
    %8 = arith.addf %5, %7 : vector<256x64xf32>
    %cst_6 = arith.constant 0.000000e+00 : f32
    %9 = vector.broadcast %cst_6 : f32 to vector<256x64xf32>
    %10 = arith.maximumf %8, %9 : vector<256x64xf32>
    %11 = arith.truncf %10 : vector<256x64xf32> to vector<256x64xbf16>
    %c0_7 = arith.constant 0 : index
    %c0_8 = arith.constant 0 : index
    %12 = vector.load %arg5[%c0_7, %c0_8] : memref<64x192xbf16, #tpu.memory_space<vmem>>, vector<64x192xbf16>
    %cst_9 = arith.constant dense<0.000000e+00> : vector<256x192xf32>
    %13 = tpu.matmul %11, %12, %cst_9 {dimension_numbers = #tpu.dot_dimension_numbers<[1], [0], [0], [1], [0, 0, 1, 1], [], []>} : vector<256x64xbf16>, vector<64x192xbf16>, vector<256x192xf32> -> vector<256x192xf32>
    %c0_10 = arith.constant 0 : index
    %c0_11 = arith.constant 0 : index
    %14 = vector.load %arg6[%c0_10, %c0_11] : memref<1x192xf32, #tpu.memory_space<vmem>>, vector<1x192xf32>
    %15 = vector.broadcast %14 : vector<1x192xf32> to vector<256x192xf32>
    %16 = arith.addf %13, %15 : vector<256x192xf32>
    %cst_12 = arith.constant 0.000000e+00 : f32
    %17 = vector.broadcast %cst_12 : f32 to vector<256x192xf32>
    %18 = arith.maximumf %16, %17 : vector<256x192xf32>
    %19 = arith.truncf %18 : vector<256x192xf32> to vector<256x192xbf16>
    %c0_13 = arith.constant 0 : index
    %c0_14 = arith.constant 0 : index
    %20 = vector.load %arg7[%c0_13, %c0_14] : memref<192x1024xbf16, #tpu.memory_space<vmem>>, vector<192x1024xbf16>
    %cst_15 = arith.constant dense<0.000000e+00> : vector<256x1024xf32>
    %21 = tpu.matmul %19, %20, %cst_15 {dimension_numbers = #tpu.dot_dimension_numbers<[1], [0], [0], [1], [0, 0, 1, 1], [], []>} : vector<256x192xbf16>, vector<192x1024xbf16>, vector<256x1024xf32> -> vector<256x1024xf32>
    %c0_16 = arith.constant 0 : index
    %c0_17 = arith.constant 0 : index
    %22 = vector.load %arg8[%c0_16, %c0_17] : memref<1x1024xf32, #tpu.memory_space<vmem>>, vector<1x1024xf32>
    %23 = vector.broadcast %22 : vector<1x1024xf32> to vector<256x1024xf32>
    %24 = arith.addf %21, %23 : vector<256x1024xf32>
    %cst_18 = arith.constant 0.000000e+00 : f32
    %25 = vector.broadcast %cst_18 : f32 to vector<256x1024xf32>
    %26 = arith.maximumf %24, %25 : vector<256x1024xf32>
    %c0_19 = arith.constant 0 : index
    %c0_20 = arith.constant 0 : index
    %27 = vector.load %arg10[%c0_19, %c0_20] : memref<1x1024xf32, #tpu.memory_space<vmem>>, vector<1x1024xf32>
    %cst_21 = arith.constant dense<0.000000e+00> : vector<1024xf32>
    %28 = vector.multi_reduction <add>, %26, %cst_21 [0] : vector<256x1024xf32> to vector<1024xf32>
    %29 = vector.shape_cast %28 : vector<1024xf32> to vector<1x1024xf32>
    %30 = arith.addf %27, %29 : vector<1x1024xf32>
    %c0_22 = arith.constant 0 : index
    %c0_23 = arith.constant 0 : index
    %31 = vector.load %arg10[%c0_22, %c0_23] : memref<1x1024xf32, #tpu.memory_space<vmem>>, vector<1x1024xf32>
    tpu.vector_store %arg10[%c0_22, %c0_23], %30 {strides = array<i32>} : memref<1x1024xf32, #tpu.memory_space<vmem>>, vector<1x1024xf32>,
    %c0_i32_24 = arith.constant 0 : i32
    %32 = arith.cmpi eq, %arg1, %c0_i32_24 : i32
    %33 = arith.extui %32 : i1 to i32
    %c0_i32_25 = arith.constant 0 : i32
    %34 = arith.cmpi ne, %33, %c0_i32_25 : i32
    scf.if %34 {
      %c0_26 = arith.constant 0 : index
      %c0_27 = arith.constant 0 : index
      %35 = vector.load %arg10[%c0_26, %c0_27] : memref<1x1024xf32, #tpu.memory_space<vmem>>, vector<1x1024xf32>
      %cst_28 = arith.constant 3.906250e-03 : f32
      %36 = vector.broadcast %cst_28 : f32 to vector<1x1024xf32>
      %37 = arith.mulf %35, %36 : vector<1x1024xf32>
      %c0_29 = arith.constant 0 : index
      %c0_30 = arith.constant 0 : index
      %c0_31 = arith.constant 0 : index
      %38 = vector.load %arg9[%c0_29, %c0_30, %c0_31] : memref<1x1x1024xf32, #tpu.memory_space<vmem>>, vector<1x1x1024xf32>
      %39 = vector.shape_cast %38 : vector<1x1x1024xf32> to vector<1x1024xf32>
      %40 = vector.shape_cast %37 : vector<1x1024xf32> to vector<1x1x1024xf32>
      tpu.vector_store %arg9[%c0_29, %c0_30, %c0_31], %40 {strides = array<i32>} : memref<1x1x1024xf32, #tpu.memory_space<vmem>>, vector<1x1x1024xf32>,
    } else {
    }
    return
  }
  func.func @transform_0(%arg0: i32, %arg1: i32) -> (i32, i32) {
    %c1_i32 = arith.constant 1 : i32
    %0 = arith.muli %arg0, %c1_i32 : i32
    %1 = arith.addi %0, %arg1 : i32
    %c0_i32 = arith.constant 0 : i32
    %c0_i32_0 = arith.constant 0 : i32
    return %1, %c0_i32 : i32, i32
  }
  func.func @transform_1(%arg0: i32, %arg1: i32) -> (i32, i32) {
    %c0_i32 = arith.constant 0 : i32
    %c0_i32_0 = arith.constant 0 : i32
    %c0_i32_1 = arith.constant 0 : i32
    return %c0_i32, %c0_i32_0 : i32, i32
  }
  func.func @transform_2(%arg0: i32, %arg1: i32) -> (i32, i32) {
    %c0_i32 = arith.constant 0 : i32
    %c0_i32_0 = arith.constant 0 : i32
    %c0_i32_1 = arith.constant 0 : i32
    return %c0_i32, %c0_i32_0 : i32, i32
  }
  func.func @transform_3(%arg0: i32, %arg1: i32) -> (i32, i32) {
    %c0_i32 = arith.constant 0 : i32
    %c0_i32_0 = arith.constant 0 : i32
    %c0_i32_1 = arith.constant 0 : i32
    return %c0_i32, %c0_i32_0 : i32, i32
  }
  func.func @transform_4(%arg0: i32, %arg1: i32) -> (i32, i32) {
    %c0_i32 = arith.constant 0 : i32
    %c0_i32_0 = arith.constant 0 : i32
    %c0_i32_1 = arith.constant 0 : i32
    return %c0_i32, %c0_i32_0 : i32, i32
  }
  func.func @transform_5(%arg0: i32, %arg1: i32) -> (i32, i32) {
    %c0_i32 = arith.constant 0 : i32
    %c0_i32_0 = arith.constant 0 : i32
    %c0_i32_1 = arith.constant 0 : i32
    return %c0_i32, %c0_i32_0 : i32, i32
  }
  func.func @transform_6(%arg0: i32, %arg1: i32) -> (i32, i32) {
    %c0_i32 = arith.constant 0 : i32
    %c0_i32_0 = arith.constant 0 : i32
    %c0_i32_1 = arith.constant 0 : i32
    return %c0_i32, %c0_i32_0 : i32, i32
  }
  func.func @transform_7(%arg0: i32, %arg1: i32) -> (i32, i32, i32) {
    %c0_i32 = arith.constant 0 : i32
    %c0_i32_0 = arith.constant 0 : i32
    %c0_i32_1 = arith.constant 0 : i32
    return %arg0, %c0_i32, %c0_i32_0 : i32, i32, i32
  }
}

</mosaic_0001>

<llo_original>
// kernel: i3d_feat_extractor_forward.1
$region0: #{i3d_feat_extractor_forward.1}
  #allocation0 [shape = 'u32[]', space=smem, size = 0x4, offset = 0x4, fixed_abs, tag = 'smem constant byte address 0x4 - core index']
  #allocation1 [shape = 'u32[144,128]{1,0:T(1,128)}', space=vmem, size = 0x12000, scoped, tag = 'internal scratch']
  #allocation2 [shape = 'f32[1,1024]{1,0:T(1,128)}', space=vmem, size = 0x1000, scoped, tag = 'scratch operand']
  %s0 = inlined_call_operand.vmem [shape: bf16[1536,1152], index: 0, kind: input, shape index: {}]
  %s1 = inlined_call_operand.vmem [shape: bf16[1152,64], index: 1, kind: input, shape index: {}]
  %s2 = inlined_call_operand.vmem [shape: f32[1,64], index: 2, kind: input, shape index: {}]
  %s3 = inlined_call_operand.vmem [shape: bf16[64,192], index: 3, kind: input, shape index: {}]
  %s4 = inlined_call_operand.vmem [shape: f32[1,192], index: 4, kind: input, shape index: {}]
  %s5 = inlined_call_operand.vmem [shape: bf16[192,1024], index: 5, kind: input, shape index: {}]
  %s6 = inlined_call_operand.vmem [shape: f32[1,1024], index: 6, kind: input, shape index: {}]
  %s7 = inlined_call_operand.vmem [shape: f32[6,1,1024], index: 7, kind: output, shape index: {}]
  %s8 = sld [smem:[#allocation0]]
  $region69: #{i3d_feat_extractor_forward.1} parent=0
    _
  %s10 = ssub.s32 1, %s8
  %s11 = scalar_select 0, %s10, %s8
  loop: start=0, step=1, limit=8
  $region2: #{i3d_feat_extractor_forward.1} parent=0 // loop_pre_header
    _
  $region3: #{i3d_feat_extractor_forward.1} parent=0 // loop_header
    %s13 = sphi 0, %s17
    %p14 = scmp.ge.s32.totalorder %s13, 8
    %s20 = sphi 0, %s32
    %s21 = sphi 0, %s28
    %s22 = sphi 0, %s20
    %s23 = sphi 0, %s21
    %s24 = sphi 0, %s22
    %s25 = sphi 0, %s23
    %s37 = sphi 0, %s39
    %s40 = sphi 0, %s37
    %s41 = sphi 0, %s40
    %s57 = sphi 0, %s41
    %s61 = sphi 0, %s61
    %s63 = sphi 0, %s61
    %s64 = sphi 0, %s63
    %s78 = sphi 0, %s64
    %s82 = sphi 0, %s82
    %s84 = sphi 0, %s82
    %s85 = sphi 0, %s84
    %s99 = sphi 0, %s85
    %s103 = sphi 0, %s103
    %s105 = sphi 0, %s103
    %s106 = sphi 0, %s105
    %s120 = sphi 0, %s106
    %s124 = sphi 0, %s124
    %s126 = sphi 0, %s124
    %s127 = sphi 0, %s126
    %s141 = sphi 0, %s127
    %s145 = sphi 0, %s145
    %s147 = sphi 0, %s145
    %s148 = sphi 0, %s147
    %s162 = sphi 0, %s148
    %s166 = sphi 0, %s166
    %s168 = sphi 0, %s166
    %s169 = sphi 0, %s168
    %s183 = sphi 0, %s169
    %s189 = sphi 0, %s191
    %s192 = sphi 0, %s189
    %s193 = sphi 0, %s192
    %s209 = sphi 0, %s193
  $region4: #{i3d_feat_extractor_forward.1} parent=0 // loop_header_branch
    %16 = sbr.rel (%p14) target = $region8
  $region5: #{i3d_feat_extractor_forward.1} parent=0 // loop_body
    %s18 = ssub.s32 %s13, 1
    %s19 = ssub.s32 %s13, 2
    %s26 = sadd.s32 1, %s21
    %p27 = scmp.ge.s32.totalorder %s26, 1
    %s28 = scalar_select %p27, 0, %s26
    %s29 = sadd.s32 1, %s20
    %s30 = scalar_select %p27, %s29, %s20
    %p31 = scmp.ge.s32.totalorder %s30, 6
    %s32 = scalar_select %p31, 0, %s30
    %s33 = sadd.s32 %s20, %s21
    %s34 = sadd.s32 %s32, %s28
    %s35 = ssub.s32 %s33, %s34
    %p36 = scmp.eq.s32.totalorder %s35, 0
    %s38 = sadd.s32 %s37, 1
    %s39 = scalar_select %p36, %s37, %s38
    %p42 = pneg %p36
    %p43 = scmp.eq.s32.totalorder %s13, 5
    %p44 = por %p42, %p43
    %p45 = scmp.ne.s32.totalorder %s37, %s40
    %p46 = scmp.eq.s32.totalorder %s13, 0
    %p47 = por %p45, %p46
    %p48 = scmp.ne.s32.totalorder %s37, %s40
    %p49 = scmp.eq.s32.totalorder %s18, 5
    %p50 = por %p48, %p49
    %p51 = scmp.ne.s32.totalorder %s40, %s41
    %p52 = scmp.eq.s32.totalorder %s18, 0
    %p53 = por %p51, %p52
    %p54 = scmp.ne.s32.totalorder %s40, %s41
    %p55 = scmp.eq.s32.totalorder %s19, 5
    %p56 = por %p54, %p55
    %p58 = scmp.ne.s32.totalorder %s41, %s57
    %p59 = scmp.eq.s32.totalorder %s19, 0
    %p60 = por %p58, %p59
    %s62 = sadd.s32 %s61, 1
    %p65 = scmp.eq.s32.totalorder %s13, 5
    %p66 = scmp.ne.s32.totalorder %s61, %s63
    %p67 = scmp.eq.s32.totalorder %s13, 0
    %p68 = por %p66, %p67
    %p69 = scmp.ne.s32.totalorder %s61, %s63
    %p70 = scmp.eq.s32.totalorder %s18, 5
    %p71 = por %p69, %p70
    %p72 = scmp.ne.s32.totalorder %s63, %s64
    %p73 = scmp.eq.s32.totalorder %s18, 0
    %p74 = por %p72, %p73
    %p75 = scmp.ne.s32.totalorder %s63, %s64
    %p76 = scmp.eq.s32.totalorder %s19, 5
    %p77 = por %p75, %p76
    %p79 = scmp.ne.s32.totalorder %s64, %s78
    %p80 = scmp.eq.s32.totalorder %s19, 0
    %p81 = por %p79, %p80
    %s83 = sadd.s32 %s82, 1
    %p86 = scmp.eq.s32.totalorder %s13, 5
    %p87 = scmp.ne.s32.totalorder %s82, %s84
    %p88 = scmp.eq.s32.totalorder %s13, 0
    %p89 = por %p87, %p88
    %p90 = scmp.ne.s32.totalorder %s82, %s84
    %p91 = scmp.eq.s32.totalorder %s18, 5
    %p92 = por %p90, %p91
    %p93 = scmp.ne.s32.totalorder %s84, %s85
    %p94 = scmp.eq.s32.totalorder %s18, 0
    %p95 = por %p93, %p94
    %p96 = scmp.ne.s32.totalorder %s84, %s85
    %p97 = scmp.eq.s32.totalorder %s19, 5
    %p98 = por %p96, %p97
    %p100 = scmp.ne.s32.totalorder %s85, %s99
    %p101 = scmp.eq.s32.totalorder %s19, 0
    %p102 = por %p100, %p101
    %s104 = sadd.s32 %s103, 1
    %p107 = scmp.eq.s32.totalorder %s13, 5
    %p108 = scmp.ne.s32.totalorder %s103, %s105
    %p109 = scmp.eq.s32.totalorder %s13, 0
    %p110 = por %p108, %p109
    %p111 = scmp.ne.s32.totalorder %s103, %s105
    %p112 = scmp.eq.s32.totalorder %s18, 5
    %p113 = por %p111, %p112
    %p114 = scmp.ne.s32.totalorder %s105, %s106
    %p115 = scmp.eq.s32.totalorder %s18, 0
    %p116 = por %p114, %p115
    %p117 = scmp.ne.s32.totalorder %s105, %s106
    %p118 = scmp.eq.s32.totalorder %s19, 5
    %p119 = por %p117, %p118
    %p121 = scmp.ne.s32.totalorder %s106, %s120
    %p122 = scmp.eq.s32.totalorder %s19, 0
    %p123 = por %p121, %p122
    %s125 = sadd.s32 %s124, 1
    %p128 = scmp.eq.s32.totalorder %s13, 5
    %p129 = scmp.ne.s32.totalorder %s124, %s126
    %p130 = scmp.eq.s32.totalorder %s13, 0
    %p131 = por %p129, %p130
    %p132 = scmp.ne.s32.totalorder %s124, %s126
    %p133 = scmp.eq.s32.totalorder %s18, 5
    %p134 = por %p132, %p133
    %p135 = scmp.ne.s32.totalorder %s126, %s127
    %p136 = scmp.eq.s32.totalorder %s18, 0
    %p137 = por %p135, %p136
    %p138 = scmp.ne.s32.totalorder %s126, %s127
    %p139 = scmp.eq.s32.totalorder %s19, 5
    %p140 = por %p138, %p139
    %p142 = scmp.ne.s32.totalorder %s127, %s141
    %p143 = scmp.eq.s32.totalorder %s19, 0
    %p144 = por %p142, %p143
    %s146 = sadd.s32 %s145, 1
    %p149 = scmp.eq.s32.totalorder %s13, 5
    %p150 = scmp.ne.s32.totalorder %s145, %s147
    %p151 = scmp.eq.s32.totalorder %s13, 0
    %p152 = por %p150, %p151
    %p153 = scmp.ne.s32.totalorder %s145, %s147
    %p154 = scmp.eq.s32.totalorder %s18, 5
    %p155 = por %p153, %p154
    %p156 = scmp.ne.s32.totalorder %s147, %s148
    %p157 = scmp.eq.s32.totalorder %s18, 0
    %p158 = por %p156, %p157
    %p159 = scmp.ne.s32.totalorder %s147, %s148
    %p160 = scmp.eq.s32.totalorder %s19, 5
    %p161 = por %p159, %p160
    %p163 = scmp.ne.s32.totalorder %s148, %s162
    %p164 = scmp.eq.s32.totalorder %s19, 0
    %p165 = por %p163, %p164
    %s167 = sadd.s32 %s166, 1
    %p170 = scmp.eq.s32.totalorder %s13, 5
    %p171 = scmp.ne.s32.totalorder %s166, %s168
    %p172 = scmp.eq.s32.totalorder %s13, 0
    %p173 = por %p171, %p172
    %p174 = scmp.ne.s32.totalorder %s166, %s168
    %p175 = scmp.eq.s32.totalorder %s18, 5
    %p176 = por %p174, %p175
    %p177 = scmp.ne.s32.totalorder %s168, %s169
    %p178 = scmp.eq.s32.totalorder %s18, 0
    %p179 = por %p177, %p178
    %p180 = scmp.ne.s32.totalorder %s168, %s169
    %p181 = scmp.eq.s32.totalorder %s19, 5
    %p182 = por %p180, %p181
    %p184 = scmp.ne.s32.totalorder %s169, %s183
    %p185 = scmp.eq.s32.totalorder %s19, 0
    %p186 = por %p184, %p185
    %s187 = ssub.s32 %s20, %s32
    %p188 = scmp.eq.s32.totalorder %s187, 0
    %s190 = sadd.s32 %s189, 1
    %s191 = scalar_select %p188, %s189, %s190
    %p194 = pneg %p188
    %p195 = scmp.eq.s32.totalorder %s13, 5
    %p196 = por %p194, %p195
    %p197 = scmp.ne.s32.totalorder %s189, %s192
    %p198 = scmp.eq.s32.totalorder %s13, 0
    %p199 = por %p197, %p198
    %p200 = scmp.ne.s32.totalorder %s189, %s192
    %p201 = scmp.eq.s32.totalorder %s18, 5
    %p202 = por %p200, %p201
    %p203 = scmp.ne.s32.totalorder %s192, %s193
    %p204 = scmp.eq.s32.totalorder %s18, 0
    %p205 = por %p203, %p204
    %p206 = scmp.ne.s32.totalorder %s192, %s193
    %p207 = scmp.eq.s32.totalorder %s19, 5
    %p208 = por %p206, %p207
    %p210 = scmp.ne.s32.totalorder %s193, %s209
    %p211 = scmp.eq.s32.totalorder %s19, 0
    %p212 = por %p210, %p211
    %p213 = scmp.le.s32.totalorder 1, %s13
    %p214 = scmp.lt.s32.totalorder %s13, 7
    %p215 = pnand %p213, %p214
    %p216 = pneg %p215
    // Predicated region
    $region9: #{i3d_feat_extractor_forward.1} parent=5 // pred_check
      _
    $region10: #{i3d_feat_extractor_forward.1} parent=5 // pred_check_branch
      %218 = sbr.rel (%p215) target = $region12
    $region11: #{i3d_feat_extractor_forward.1} parent=5 // pred_region
      %s219 = ssub.s32 %s13, 1
      // Predicated region
      $region13: #{i3d_feat_extractor_forward.1} parent=11 // pred_check
        %p220 = pneg %p74
      $region14: #{i3d_feat_extractor_forward.1} parent=11 // pred_check_branch
        %222 = sbr.rel (%p220) target = $region16
      $region15: #{i3d_feat_extractor_forward.1} parent=11 // pred_region
        _
      $region16: #{i3d_feat_extractor_forward.1} parent=11 // pred_fallthru
        _
      // Predicated region
      $region17: #{i3d_feat_extractor_forward.1} parent=11 // pred_check
        %p223 = pneg %p95
      $region18: #{i3d_feat_extractor_forward.1} parent=11 // pred_check_branch
        %225 = sbr.rel (%p223) target = $region20
      $region19: #{i3d_feat_extractor_forward.1} parent=11 // pred_region
        _
      $region20: #{i3d_feat_extractor_forward.1} parent=11 // pred_fallthru
        _
      // Predicated region
      $region21: #{i3d_feat_extractor_forward.1} parent=11 // pred_check
        %p226 = pneg %p116
      $region22: #{i3d_feat_extractor_forward.1} parent=11 // pred_check_branch
        %228 = sbr.rel (%p226) target = $region24
      $region23: #{i3d_feat_extractor_forward.1} parent=11 // pred_region
        _
      $region24: #{i3d_feat_extractor_forward.1} parent=11 // pred_fallthru
        _
      // Predicated region
      $region25: #{i3d_feat_extractor_forward.1} parent=11 // pred_check
        %p229 = pneg %p137
      $region26: #{i3d_feat_extractor_forward.1} parent=11 // pred_check_branch
        %231 = sbr.rel (%p229) target = $region28
      $region27: #{i3d_feat_extractor_forward.1} parent=11 // pred_region
        _
      $region28: #{i3d_feat_extractor_forward.1} parent=11 // pred_fallthru
        _
      // Predicated region
      $region29: #{i3d_feat_extractor_forward.1} parent=11 // pred_check
        %p232 = pneg %p158
      $region30: #{i3d_feat_extractor_forward.1} parent=11 // pred_check_branch
        %234 = sbr.rel (%p232) target = $region32
      $region31: #{i3d_feat_extractor_forward.1} parent=11 // pred_region
        _
      $region32: #{i3d_feat_extractor_forward.1} parent=11 // pred_fallthru
        _
      // Predicated region
      $region33: #{i3d_feat_extractor_forward.1} parent=11 // pred_check
        %p235 = pneg %p179
      $region34: #{i3d_feat_extractor_forward.1} parent=11 // pred_check_branch
        %237 = sbr.rel (%p235) target = $region36
      $region35: #{i3d_feat_extractor_forward.1} parent=11 // pred_region
        _
      $region36: #{i3d_feat_extractor_forward.1} parent=11 // pred_fallthru
        _
    $region12: #{i3d_feat_extractor_forward.1} parent=5 // pred_fallthru
      _
    %p238 = scmp.lt.s32.totalorder %s13, 6
    // Predicated region
    $region37: #{i3d_feat_extractor_forward.1} parent=5 // pred_check
      %p239 = pneg %p238
    $region38: #{i3d_feat_extractor_forward.1} parent=5 // pred_check_branch
      %241 = sbr.rel (%p239) target = $region40
    $region39: #{i3d_feat_extractor_forward.1} parent=5 // pred_region
      // Predicated region
      $region41: #{i3d_feat_extractor_forward.1} parent=39 // pred_check
        %p242 = pneg %p47
      $region42: #{i3d_feat_extractor_forward.1} parent=39 // pred_check_branch
        %244 = sbr.rel (%p242) target = $region44
      $region43: #{i3d_feat_extractor_forward.1} parent=39 // pred_region
        %s245 = sadd.s32 %s20, %s21
        %s246 = smul.u32 32, %s245
        %p247 = scmp.lt.s32.totalorder %s246, 191
        %s248 = scalar_select %p247, %s246, 191
        %s249 = smul.addr %s248, 9
        %s250 = smul.addr %s249, 4
        %s251 = scalar_lea.vmem %s0, %s250
        %s252 = sadd.s32 %s20, %s21
        %s253 = smul.u32 32, %s252
      $region44: #{i3d_feat_extractor_forward.1} parent=39 // pred_fallthru
        _
    $region40: #{i3d_feat_extractor_forward.1} parent=5 // pred_fallthru
      _
    %p254 = scmp.le.s32.totalorder 1, %s13
    %p255 = scmp.lt.s32.totalorder %s13, 7
    %p256 = pnand %p254, %p255
    %p257 = pneg %p256
    // Predicated region
    $region45: #{i3d_feat_extractor_forward.1} parent=5 // pred_check
      _
    $region46: #{i3d_feat_extractor_forward.1} parent=5 // pred_check_branch
      %259 = sbr.rel (%p256) target = $region48
    $region47: #{i3d_feat_extractor_forward.1} parent=5 // pred_region
      %s260 = ssub.s32 %s13, 1
      %s261 = sadd.s32 %s22, %s23
      %s262 = smul.u32 32, %s261
      %p263 = scmp.lt.s32.totalorder %s262, 191
      %s264 = scalar_select %p263, %s262, 191
      %s265 = smul.addr %s264, 9
      %s266 = smul.addr %s265, 4
      %s267 = scalar_lea.vmem %s0, %s266
      %p268 = pneg %p53
      %p269 = pneg %p50
      %p270 = pneg %p74
      %p271 = pneg %p71
      %p272 = pneg %p95
      %p273 = pneg %p92
      %p274 = pneg %p116
      %p275 = pneg %p113
      %p276 = pneg %p137
      %p277 = pneg %p134
      %p278 = pneg %p158
      %p279 = pneg %p155
      %p280 = pneg %p179
      %p281 = pneg %p176
      %p282 = pneg %p205
      %p283 = pneg %p202
      %p284 = scmp.lt.s32.totalorder %s22, 5
      %s285 = scalar_select %p284, %s22, 5
      %s286 = smul.addr %s285, 8
      %s287 = scalar_lea.vmem %s7, %s286
      %s288 = sadd.s32 %s22, %s23
      %s289 = smul.u32 32, %s288
      %p290 = scmp.lt.s32.totalorder %s289, 191
      %s291 = scalar_select %p290, %s289, 191
      %s292 = smul.addr %s291, 9
      %s293 = smul.addr %s292, 4
      %s294 = scalar_lea.vmem %s0, %s293
      %s295 = sadd.s32 %s22, %s23
      %s296 = smul.u32 32, %s295
      %p297 = scmp.lt.s32.totalorder %s22, 5
      %s298 = scalar_select %p297, %s22, 5
      %s299 = smul.addr %s298, 8
      %s300 = scalar_lea.vmem %s7, %s299
      %p302 = scmp.eq.s32.totalorder %s23, 0
      // Predicated region
      $region49: #{i3d_feat_extractor_forward.1} parent=47 // pred_check
        %p303 = pneg %p302
      $region50: #{i3d_feat_extractor_forward.1} parent=47 // pred_check_branch
        %305 = sbr.rel (%p303) target = $region52
      $region51: #{i3d_feat_extractor_forward.1} parent=47 // pred_region
        %306 = vst [vmem:[#allocation2] sm:$0xff] 0.0
      $region52: #{i3d_feat_extractor_forward.1} parent=47 // pred_fallthru
        _
      %v307 = vld [vmem:[%s294] sm:$0xff]
      %v308 = vld [vmem:[%s294 + $0x8] sm:$0xff]
      %v309 = vld [vmem:[%s294 + $0x10] sm:$0xff]
      %v310 = vld [vmem:[%s294 + $0x18] sm:$0xff]
      %v311 = vld [vmem:[%s294 + $0x20] sm:$0xf]
      %v312 = vld [vmem:[%s294 + $0x24] sm:$0xff]
      %v313 = vld [vmem:[%s294 + $0x2c] sm:$0xff]
      %v314 = vld [vmem:[%s294 + $0x34] sm:$0xff]
      %v315 = vld [vmem:[%s294 + $0x3c] sm:$0xff]
      %v316 = vld [vmem:[%s294 + $0x44] sm:$0xf]
      %v317 = vld [vmem:[%s294 + $0x48] sm:$0xff]
      %v318 = vld [vmem:[%s294 + $0x50] sm:$0xff]
      %v319 = vld [vmem:[%s294 + $0x58] sm:$0xff]
      %v320 = vld [vmem:[%s294 + $0x60] sm:$0xff]
      %v321 = vld [vmem:[%s294 + $0x68] sm:$0xf]
      %v322 = vld [vmem:[%s294 + $0x6c] sm:$0xff]
      %v323 = vld [vmem:[%s294 + $0x74] sm:$0xff]
      %v324 = vld [vmem:[%s294 + $0x7c] sm:$0xff]
      %v325 = vld [vmem:[%s294 + $0x84] sm:$0xff]
      %v326 = vld [vmem:[%s294 + $0x8c] sm:$0xf]
      %v327 = vld [vmem:[%s294 + $0x90] sm:$0xff]
      %v328 = vld [vmem:[%s294 + $0x98] sm:$0xff]
      %v329 = vld [vmem:[%s294 + $0xa0] sm:$0xff]
      %v330 = vld [vmem:[%s294 + $0xa8] sm:$0xff]
      %v331 = vld [vmem:[%s294 + $0xb0] sm:$0xf]
      %v332 = vld [vmem:[%s294 + $0xb4] sm:$0xff]
      %v333 = vld [vmem:[%s294 + $0xbc] sm:$0xff]
      %v334 = vld [vmem:[%s294 + $0xc4] sm:$0xff]
      %v335 = vld [vmem:[%s294 + $0xcc] sm:$0xff]
      %v336 = vld [vmem:[%s294 + $0xd4] sm:$0xf]
      %v337 = vld [vmem:[%s294 + $0xd8] sm:$0xff]
      %v338 = vld [vmem:[%s294 + $0xe0] sm:$0xff]
      %v339 = vld [vmem:[%s294 + $0xe8] sm:$0xff]
      %v340 = vld [vmem:[%s294 + $0xf0] sm:$0xff]
      %v341 = vld [vmem:[%s294 + $0xf8] sm:$0xf]
      %v342 = vld [vmem:[%s294 + $0xfc] sm:$0xff]
      %v343 = vld [vmem:[%s294 + $0x104] sm:$0xff]
      %v344 = vld [vmem:[%s294 + $0x10c] sm:$0xff]
      %v345 = vld [vmem:[%s294 + $0x114] sm:$0xff]
      %v346 = vld [vmem:[%s294 + $0x11c] sm:$0xf]
      %v347 = vld [vmem:[%s294 + $0x120] sm:$0xff]
      %v348 = vld [vmem:[%s294 + $0x128] sm:$0xff]
      %v349 = vld [vmem:[%s294 + $0x130] sm:$0xff]
      %v350 = vld [vmem:[%s294 + $0x138] sm:$0xff]
      %v351 = vld [vmem:[%s294 + $0x140] sm:$0xf]
      %v352 = vld [vmem:[%s294 + $0x144] sm:$0xff]
      %v353 = vld [vmem:[%s294 + $0x14c] sm:$0xff]
      %v354 = vld [vmem:[%s294 + $0x154] sm:$0xff]
      %v355 = vld [vmem:[%s294 + $0x15c] sm:$0xff]
      %v356 = vld [vmem:[%s294 + $0x164] sm:$0xf]
      %v357 = vld [vmem:[%s294 + $0x168] sm:$0xff]
      %v358 = vld [vmem:[%s294 + $0x170] sm:$0xff]
      %v359 = vld [vmem:[%s294 + $0x178] sm:$0xff]
      %v360 = vld [vmem:[%s294 + $0x180] sm:$0xff]
      %v361 = vld [vmem:[%s294 + $0x188] sm:$0xf]
      %v362 = vld [vmem:[%s294 + $0x18c] sm:$0xff]
      %v363 = vld [vmem:[%s294 + $0x194] sm:$0xff]
      %v364 = vld [vmem:[%s294 + $0x19c] sm:$0xff]
      %v365 = vld [vmem:[%s294 + $0x1a4] sm:$0xff]
      %v366 = vld [vmem:[%s294 + $0x1ac] sm:$0xf]
      %v367 = vld [vmem:[%s294 + $0x1b0] sm:$0xff]
      %v368 = vld [vmem:[%s294 + $0x1b8] sm:$0xff]
      %v369 = vld [vmem:[%s294 + $0x1c0] sm:$0xff]
      %v370 = vld [vmem:[%s294 + $0x1c8] sm:$0xff]
      %v371 = vld [vmem:[%s294 + $0x1d0] sm:$0xf]
      %v372 = vld [vmem:[%s294 + $0x1d4] sm:$0xff]
      %v373 = vld [vmem:[%s294 + $0x1dc] sm:$0xff]
      %v374 = vld [vmem:[%s294 + $0x1e4] sm:$0xff]
      %v375 = vld [vmem:[%s294 + $0x1ec] sm:$0xff]
      %v376 = vld [vmem:[%s294 + $0x1f4] sm:$0xf]
      %v377 = vld [vmem:[%s294 + $0x1f8] sm:$0xff]
      %v378 = vld [vmem:[%s294 + $0x200] sm:$0xff]
      %v379 = vld [vmem:[%s294 + $0x208] sm:$0xff]
      %v380 = vld [vmem:[%s294 + $0x210] sm:$0xff]
      %v381 = vld [vmem:[%s294 + $0x218] sm:$0xf]
      %v382 = vld [vmem:[%s294 + $0x21c] sm:$0xff]
      %v383 = vld [vmem:[%s294 + $0x224] sm:$0xff]
      %v384 = vld [vmem:[%s294 + $0x22c] sm:$0xff]
      %v385 = vld [vmem:[%s294 + $0x234] sm:$0xff]
      %v386 = vld [vmem:[%s294 + $0x23c] sm:$0xf]
      %v387 = vld [vmem:[%s294 + $0x240] sm:$0xff]
      %v388 = vld [vmem:[%s294 + $0x248] sm:$0xff]
      %v389 = vld [vmem:[%s294 + $0x250] sm:$0xff]
      %v390 = vld [vmem:[%s294 + $0x258] sm:$0xff]
      %v391 = vld [vmem:[%s294 + $0x260] sm:$0xf]
      %v392 = vld [vmem:[%s294 + $0x264] sm:$0xff]
      %v393 = vld [vmem:[%s294 + $0x26c] sm:$0xff]
      %v394 = vld [vmem:[%s294 + $0x274] sm:$0xff]
      %v395 = vld [vmem:[%s294 + $0x27c] sm:$0xff]
      %v396 = vld [vmem:[%s294 + $0x284] sm:$0xf]
      %v397 = vld [vmem:[%s294 + $0x288] sm:$0xff]
      %v398 = vld [vmem:[%s294 + $0x290] sm:$0xff]
      %v399 = vld [vmem:[%s294 + $0x298] sm:$0xff]
      %v400 = vld [vmem:[%s294 + $0x2a0] sm:$0xff]
      %v401 = vld [vmem:[%s294 + $0x2a8] sm:$0xf]
      %v402 = vld [vmem:[%s294 + $0x2ac] sm:$0xff]
      %v403 = vld [vmem:[%s294 + $0x2b4] sm:$0xff]
      %v404 = vld [vmem:[%s294 + $0x2bc] sm:$0xff]
      %v405 = vld [vmem:[%s294 + $0x2c4] sm:$0xff]
      %v406 = vld [vmem:[%s294 + $0x2cc] sm:$0xf]
      %v407 = vld [vmem:[%s294 + $0x2d0] sm:$0xff]
      %v408 = vld [vmem:[%s294 + $0x2d8] sm:$0xff]
      %v409 = vld [vmem:[%s294 + $0x2e0] sm:$0xff]
      %v410 = vld [vmem:[%s294 + $0x2e8] sm:$0xff]
      %v411 = vld [vmem:[%s294 + $0x2f0] sm:$0xf]
      %v412 = vld [vmem:[%s294 + $0x2f4] sm:$0xff]
      %v413 = vld [vmem:[%s294 + $0x2fc] sm:$0xff]
      %v414 = vld [vmem:[%s294 + $0x304] sm:$0xff]
      %v415 = vld [vmem:[%s294 + $0x30c] sm:$0xff]
      %v416 = vld [vmem:[%s294 + $0x314] sm:$0xf]
      %v417 = vld [vmem:[%s294 + $0x318] sm:$0xff]
      %v418 = vld [vmem:[%s294 + $0x320] sm:$0xff]
      %v419 = vld [vmem:[%s294 + $0x328] sm:$0xff]
      %v420 = vld [vmem:[%s294 + $0x330] sm:$0xff]
      %v421 = vld [vmem:[%s294 + $0x338] sm:$0xf]
      %v422 = vld [vmem:[%s294 + $0x33c] sm:$0xff]
      %v423 = vld [vmem:[%s294 + $0x344] sm:$0xff]
      %v424 = vld [vmem:[%s294 + $0x34c] sm:$0xff]
      %v425 = vld [vmem:[%s294 + $0x354] sm:$0xff]
      %v426 = vld [vmem:[%s294 + $0x35c] sm:$0xf]
      %v427 = vld [vmem:[%s294 + $0x360] sm:$0xff]
      %v428 = vld [vmem:[%s294 + $0x368] sm:$0xff]
      %v429 = vld [vmem:[%s294 + $0x370] sm:$0xff]
      %v430 = vld [vmem:[%s294 + $0x378] sm:$0xff]
      %v431 = vld [vmem:[%s294 + $0x380] sm:$0xf]
      %v432 = vld [vmem:[%s294 + $0x384] sm:$0xff]
      %v433 = vld [vmem:[%s294 + $0x38c] sm:$0xff]
      %v434 = vld [vmem:[%s294 + $0x394] sm:$0xff]
      %v435 = vld [vmem:[%s294 + $0x39c] sm:$0xff]
      %v436 = vld [vmem:[%s294 + $0x3a4] sm:$0xf]
      %v437 = vld [vmem:[%s294 + $0x3a8] sm:$0xff]
      %v438 = vld [vmem:[%s294 + $0x3b0] sm:$0xff]
      %v439 = vld [vmem:[%s294 + $0x3b8] sm:$0xff]
      %v440 = vld [vmem:[%s294 + $0x3c0] sm:$0xff]
      %v441 = vld [vmem:[%s294 + $0x3c8] sm:$0xf]
      %v442 = vld [vmem:[%s294 + $0x3cc] sm:$0xff]
      %v443 = vld [vmem:[%s294 + $0x3d4] sm:$0xff]
      %v444 = vld [vmem:[%s294 + $0x3dc] sm:$0xff]
      %v445 = vld [vmem:[%s294 + $0x3e4] sm:$0xff]
      %v446 = vld [vmem:[%s294 + $0x3ec] sm:$0xf]
      %v447 = vld [vmem:[%s294 + $0x3f0] sm:$0xff]
      %v448 = vld [vmem:[%s294 + $0x3f8] sm:$0xff]
      %v449 = vld [vmem:[%s294 + $0x400] sm:$0xff]
      %v450 = vld [vmem:[%s294 + $0x408] sm:$0xff]
      %v451 = vld [vmem:[%s294 + $0x410] sm:$0xf]
      %v452 = vld [vmem:[%s294 + $0x414] sm:$0xff]
      %v453 = vld [vmem:[%s294 + $0x41c] sm:$0xff]
      %v454 = vld [vmem:[%s294 + $0x424] sm:$0xff]
      %v455 = vld [vmem:[%s294 + $0x42c] sm:$0xff]
      %v456 = vld [vmem:[%s294 + $0x434] sm:$0xf]
      %v457 = vld [vmem:[%s294 + $0x438] sm:$0xff]
      %v458 = vld [vmem:[%s294 + $0x440] sm:$0xff]
      %v459 = vld [vmem:[%s294 + $0x448] sm:$0xff]
      %v460 = vld [vmem:[%s294 + $0x450] sm:$0xff]
      %v461 = vld [vmem:[%s294 + $0x458] sm:$0xf]
      %v462 = vld [vmem:[%s294 + $0x45c] sm:$0xff]
      %v463 = vld [vmem:[%s294 + $0x464] sm:$0xff]
      %v464 = vld [vmem:[%s294 + $0x46c] sm:$0xff]
      %v465 = vld [vmem:[%s294 + $0x474] sm:$0xff]
      %v466 = vld [vmem:[%s294 + $0x47c] sm:$0xf]
      %v467 = vld [vmem:[%s1] sm:$0xf]
      %v468 = vld [vmem:[%s1 + $0x4] sm:$0xf]
      %v469 = vld [vmem:[%s1 + $0x8] sm:$0xf]
      %v470 = vld [vmem:[%s1 + $0xc] sm:$0xf]
      %v471 = vld [vmem:[%s1 + $0x10] sm:$0xf]
      %v472 = vld [vmem:[%s1 + $0x14] sm:$0xf]
      %v473 = vld [vmem:[%s1 + $0x18] sm:$0xf]
      %v474 = vld [vmem:[%s1 + $0x1c] sm:$0xf]
      %v475 = vld [vmem:[%s1 + $0x20] sm:$0xf]
      %v476 = vld [vmem:[%s1 + $0x24] sm:$0xf]
      %v477 = vld [vmem:[%s1 + $0x28] sm:$0xf]
      %v478 = vld [vmem:[%s1 + $0x2c] sm:$0xf]
      %v479 = vld [vmem:[%s1 + $0x30] sm:$0xf]
      %v480 = vld [vmem:[%s1 + $0x34] sm:$0xf]
      %v481 = vld [vmem:[%s1 + $0x38] sm:$0xf]
      %v482 = vld [vmem:[%s1 + $0x3c] sm:$0xf]
      %v483 = vld [vmem:[%s1 + $0x40] sm:$0xf]
      %v484 = vld [vmem:[%s1 + $0x44] sm:$0xf]
      %v485 = vld [vmem:[%s1 + $0x48] sm:$0xf]
      %v486 = vld [vmem:[%s1 + $0x4c] sm:$0xf]
      %v487 = vld [vmem:[%s1 + $0x50] sm:$0xf]
      %v488 = vld [vmem:[%s1 + $0x54] sm:$0xf]
      %v489 = vld [vmem:[%s1 + $0x58] sm:$0xf]
      %v490 = vld [vmem:[%s1 + $0x5c] sm:$0xf]
      %v491 = vld [vmem:[%s1 + $0x60] sm:$0xf]
      %v492 = vld [vmem:[%s1 + $0x64] sm:$0xf]
      %v493 = vld [vmem:[%s1 + $0x68] sm:$0xf]
      %v494 = vld [vmem:[%s1 + $0x6c] sm:$0xf]
      %v495 = vld [vmem:[%s1 + $0x70] sm:$0xf]
      %v496 = vld [vmem:[%s1 + $0x74] sm:$0xf]
      %v497 = vld [vmem:[%s1 + $0x78] sm:$0xf]
      %v498 = vld [vmem:[%s1 + $0x7c] sm:$0xf]
      %v499 = vld [vmem:[%s1 + $0x80] sm:$0xf]
      %v500 = vld [vmem:[%s1 + $0x84] sm:$0xf]
      %v501 = vld [vmem:[%s1 + $0x88] sm:$0xf]
      %v502 = vld [vmem:[%s1 + $0x8c] sm:$0xf]
      %v503 = vld [vmem:[%s1 + $0x90] sm:$0xf]
      %v504 = vld [vmem:[%s1 + $0x94] sm:$0xf]
      %v505 = vld [vmem:[%s1 + $0x98] sm:$0xf]
      %v506 = vld [vmem:[%s1 + $0x9c] sm:$0xf]
      %v507 = vld [vmem:[%s1 + $0xa0] sm:$0xf]
      %v508 = vld [vmem:[%s1 + $0xa4] sm:$0xf]
      %v509 = vld [vmem:[%s1 + $0xa8] sm:$0xf]
      %v510 = vld [vmem:[%s1 + $0xac] sm:$0xf]
      %v511 = vld [vmem:[%s1 + $0xb0] sm:$0xf]
      %v512 = vld [vmem:[%s1 + $0xb4] sm:$0xf]
      %v513 = vld [vmem:[%s1 + $0xb8] sm:$0xf]
      %v514 = vld [vmem:[%s1 + $0xbc] sm:$0xf]
      %v515 = vld [vmem:[%s1 + $0xc0] sm:$0xf]
      %v516 = vld [vmem:[%s1 + $0xc4] sm:$0xf]
      %v517 = vld [vmem:[%s1 + $0xc8] sm:$0xf]
      %v518 = vld [vmem:[%s1 + $0xcc] sm:$0xf]
      %v519 = vld [vmem:[%s1 + $0xd0] sm:$0xf]
      %v520 = vld [vmem:[%s1 + $0xd4] sm:$0xf]
      %v521 = vld [vmem:[%s1 + $0xd8] sm:$0xf]
      %v522 = vld [vmem:[%s1 + $0xdc] sm:$0xf]
      %v523 = vld [vmem:[%s1 + $0xe0] sm:$0xf]
      %v524 = vld [vmem:[%s1 + $0xe4] sm:$0xf]
      %v525 = vld [vmem:[%s1 + $0xe8] sm:$0xf]
      %v526 = vld [vmem:[%s1 + $0xec] sm:$0xf]
      %v527 = vld [vmem:[%s1 + $0xf0] sm:$0xf]
      %v528 = vld [vmem:[%s1 + $0xf4] sm:$0xf]
      %v529 = vld [vmem:[%s1 + $0xf8] sm:$0xf]
      %v530 = vld [vmem:[%s1 + $0xfc] sm:$0xf]
      %v531 = vld [vmem:[%s1 + $0x100] sm:$0xf]
      %v532 = vld [vmem:[%s1 + $0x104] sm:$0xf]
      %v533 = vld [vmem:[%s1 + $0x108] sm:$0xf]
      %v534 = vld [vmem:[%s1 + $0x10c] sm:$0xf]
      %v535 = vld [vmem:[%s1 + $0x110] sm:$0xf]
      %v536 = vld [vmem:[%s1 + $0x114] sm:$0xf]
      %v537 = vld [vmem:[%s1 + $0x118] sm:$0xf]
      %v538 = vld [vmem:[%s1 + $0x11c] sm:$0xf]
      %v539 = vld [vmem:[%s1 + $0x120] sm:$0xf]
      %v540 = vld [vmem:[%s1 + $0x124] sm:$0xf]
      %v541 = vld [vmem:[%s1 + $0x128] sm:$0xf]
      %v542 = vld [vmem:[%s1 + $0x12c] sm:$0xf]
      %v543 = vld [vmem:[%s1 + $0x130] sm:$0xf]
      %v544 = vld [vmem:[%s1 + $0x134] sm:$0xf]
      %v545 = vld [vmem:[%s1 + $0x138] sm:$0xf]
      %v546 = vld [vmem:[%s1 + $0x13c] sm:$0xf]
      %v547 = vld [vmem:[%s1 + $0x140] sm:$0xf]
      %v548 = vld [vmem:[%s1 + $0x144] sm:$0xf]
      %v549 = vld [vmem:[%s1 + $0x148] sm:$0xf]
      %v550 = vld [vmem:[%s1 + $0x14c] sm:$0xf]
      %v551 = vld [vmem:[%s1 + $0x150] sm:$0xf]
      %v552 = vld [vmem:[%s1 + $0x154] sm:$0xf]
      %v553 = vld [vmem:[%s1 + $0x158] sm:$0xf]
      %v554 = vld [vmem:[%s1 + $0x15c] sm:$0xf]
      %v555 = vld [vmem:[%s1 + $0x160] sm:$0xf]
      %v556 = vld [vmem:[%s1 + $0x164] sm:$0xf]
      %v557 = vld [vmem:[%s1 + $0x168] sm:$0xf]
      %v558 = vld [vmem:[%s1 + $0x16c] sm:$0xf]
      %v559 = vld [vmem:[%s1 + $0x170] sm:$0xf]
      %v560 = vld [vmem:[%s1 + $0x174] sm:$0xf]
      %v561 = vld [vmem:[%s1 + $0x178] sm:$0xf]
      %v562 = vld [vmem:[%s1 + $0x17c] sm:$0xf]
      %v563 = vld [vmem:[%s1 + $0x180] sm:$0xf]
      %v564 = vld [vmem:[%s1 + $0x184] sm:$0xf]
      %v565 = vld [vmem:[%s1 + $0x188] sm:$0xf]
      %v566 = vld [vmem:[%s1 + $0x18c] sm:$0xf]
      %v567 = vld [vmem:[%s1 + $0x190] sm:$0xf]
      %v568 = vld [vmem:[%s1 + $0x194] sm:$0xf]
      %v569 = vld [vmem:[%s1 + $0x198] sm:$0xf]
      %v570 = vld [vmem:[%s1 + $0x19c] sm:$0xf]
      %v571 = vld [vmem:[%s1 + $0x1a0] sm:$0xf]
      %v572 = vld [vmem:[%s1 + $0x1a4] sm:$0xf]
      %v573 = vld [vmem:[%s1 + $0x1a8] sm:$0xf]
      %v574 = vld [vmem:[%s1 + $0x1ac] sm:$0xf]
      %v575 = vld [vmem:[%s1 + $0x1b0] sm:$0xf]
      %v576 = vld [vmem:[%s1 + $0x1b4] sm:$0xf]
      %v577 = vld [vmem:[%s1 + $0x1b8] sm:$0xf]
      %v578 = vld [vmem:[%s1 + $0x1bc] sm:$0xf]
      %v579 = vld [vmem:[%s1 + $0x1c0] sm:$0xf]
      %v580 = vld [vmem:[%s1 + $0x1c4] sm:$0xf]
      %v581 = vld [vmem:[%s1 + $0x1c8] sm:$0xf]
      %v582 = vld [vmem:[%s1 + $0x1cc] sm:$0xf]
      %v583 = vld [vmem:[%s1 + $0x1d0] sm:$0xf]
      %v584 = vld [vmem:[%s1 + $0x1d4] sm:$0xf]
      %v585 = vld [vmem:[%s1 + $0x1d8] sm:$0xf]
      %v586 = vld [vmem:[%s1 + $0x1dc] sm:$0xf]
      %v587 = vld [vmem:[%s1 + $0x1e0] sm:$0xf]
      %v588 = vld [vmem:[%s1 + $0x1e4] sm:$0xf]
      %v589 = vld [vmem:[%s1 + $0x1e8] sm:$0xf]
      %v590 = vld [vmem:[%s1 + $0x1ec] sm:$0xf]
      %v591 = vld [vmem:[%s1 + $0x1f0] sm:$0xf]
      %v592 = vld [vmem:[%s1 + $0x1f4] sm:$0xf]
      %v593 = vld [vmem:[%s1 + $0x1f8] sm:$0xf]
      %v594 = vld [vmem:[%s1 + $0x1fc] sm:$0xf]
      %v595 = vld [vmem:[%s1 + $0x200] sm:$0xf]
      %v596 = vld [vmem:[%s1 + $0x204] sm:$0xf]
      %v597 = vld [vmem:[%s1 + $0x208] sm:$0xf]
      %v598 = vld [vmem:[%s1 + $0x20c] sm:$0xf]
      %v599 = vld [vmem:[%s1 + $0x210] sm:$0xf]
      %v600 = vld [vmem:[%s1 + $0x214] sm:$0xf]
      %v601 = vld [vmem:[%s1 + $0x218] sm:$0xf]
      %v602 = vld [vmem:[%s1 + $0x21c] sm:$0xf]
      %v603 = vld [vmem:[%s1 + $0x220] sm:$0xf]
      %v604 = vld [vmem:[%s1 + $0x224] sm:$0xf]
      %v605 = vld [vmem:[%s1 + $0x228] sm:$0xf]
      %v606 = vld [vmem:[%s1 + $0x22c] sm:$0xf]
      %v607 = vld [vmem:[%s1 + $0x230] sm:$0xf]
      %v608 = vld [vmem:[%s1 + $0x234] sm:$0xf]
      %v609 = vld [vmem:[%s1 + $0x238] sm:$0xf]
      %v610 = vld [vmem:[%s1 + $0x23c] sm:$0xf]
      %v611 = vld [vmem:[%s2] sm:$0x1]
      %v613 = vlaneseq
      %v614 = vshrl.u32 %v613, 7
      %v615 = vsub.s32 0, %v614
      %v616 = vrot.slane %v611, %v615
      %v778 = vunpack.c.l.b16 %v307
      %v779 = vunpack.c.h.b16 %v307
      %v780 = vunpack.c.l.b16 %v308
      %v781 = vunpack.c.h.b16 %v308
      %v782 = vunpack.c.l.b16 %v309
      %v783 = vunpack.c.h.b16 %v309
      %v784 = vunpack.c.l.b16 %v310
      %v785 = vunpack.c.h.b16 %v310
      %v786 = vunpack.c.l.b16 %v311
      %v787 = vunpack.c.l.b16 %v312
      %v788 = vunpack.c.h.b16 %v312
      %v789 = vunpack.c.l.b16 %v313
      %v790 = vunpack.c.h.b16 %v313
      %v791 = vunpack.c.l.b16 %v314
      %v792 = vunpack.c.h.b16 %v314
      %v793 = vunpack.c.l.b16 %v315
      %v794 = vunpack.c.h.b16 %v315
      %v795 = vunpack.c.l.b16 %v316
      %v796 = vunpack.c.l.b16 %v317
      %v797 = vunpack.c.h.b16 %v317
      %v798 = vunpack.c.l.b16 %v318
      %v799 = vunpack.c.h.b16 %v318
      %v800 = vunpack.c.l.b16 %v319
      %v801 = vunpack.c.h.b16 %v319
      %v802 = vunpack.c.l.b16 %v320
      %v803 = vunpack.c.h.b16 %v320
      %v804 = vunpack.c.l.b16 %v321
      %v805 = vunpack.c.l.b16 %v322
      %v806 = vunpack.c.h.b16 %v322
      %v807 = vunpack.c.l.b16 %v323
      %v808 = vunpack.c.h.b16 %v323
      %v809 = vunpack.c.l.b16 %v324
      %v810 = vunpack.c.h.b16 %v324
      %v811 = vunpack.c.l.b16 %v325
      %v812 = vunpack.c.h.b16 %v325
      %v813 = vunpack.c.l.b16 %v326
      %v814 = vunpack.c.l.b16 %v327
      %v815 = vunpack.c.h.b16 %v327
      %v816 = vunpack.c.l.b16 %v328
      %v817 = vunpack.c.h.b16 %v328
      %v818 = vunpack.c.l.b16 %v329
      %v819 = vunpack.c.h.b16 %v329
      %v820 = vunpack.c.l.b16 %v330
      %v821 = vunpack.c.h.b16 %v330
      %v822 = vunpack.c.l.b16 %v331
      %v823 = vunpack.c.l.b16 %v332
      %v824 = vunpack.c.h.b16 %v332
      %v825 = vunpack.c.l.b16 %v333
      %v826 = vunpack.c.h.b16 %v333
      %v827 = vunpack.c.l.b16 %v334
      %v828 = vunpack.c.h.b16 %v334
      %v829 = vunpack.c.l.b16 %v335
      %v830 = vunpack.c.h.b16 %v335
      %v831 = vunpack.c.l.b16 %v336
      %v832 = vunpack.c.l.b16 %v337
      %v833 = vunpack.c.h.b16 %v337
      %v834 = vunpack.c.l.b16 %v338
      %v835 = vunpack.c.h.b16 %v338
      %v836 = vunpack.c.l.b16 %v339
      %v837 = vunpack.c.h.b16 %v339
      %v838 = vunpack.c.l.b16 %v340
      %v839 = vunpack.c.h.b16 %v340
      %v840 = vunpack.c.l.b16 %v341
      %v841 = vunpack.c.l.b16 %v342
      %v842 = vunpack.c.h.b16 %v342
      %v843 = vunpack.c.l.b16 %v343
      %v844 = vunpack.c.h.b16 %v343
      %v845 = vunpack.c.l.b16 %v344
      %v846 = vunpack.c.h.b16 %v344
      %v847 = vunpack.c.l.b16 %v345
      %v848 = vunpack.c.h.b16 %v345
      %v849 = vunpack.c.l.b16 %v346
      %v850 = vunpack.c.l.b16 %v347
      %v851 = vunpack.c.h.b16 %v347
      %v852 = vunpack.c.l.b16 %v348
      %v853 = vunpack.c.h.b16 %v348
      %v854 = vunpack.c.l.b16 %v349
      %v855 = vunpack.c.h.b16 %v349
      %v856 = vunpack.c.l.b16 %v350
      %v857 = vunpack.c.h.b16 %v350
      %v858 = vunpack.c.l.b16 %v351
      %v859 = vunpack.c.l.b16 %v352
      %v860 = vunpack.c.h.b16 %v352
      %v861 = vunpack.c.l.b16 %v353
      %v862 = vunpack.c.h.b16 %v353
      %v863 = vunpack.c.l.b16 %v354
      %v864 = vunpack.c.h.b16 %v354
      %v865 = vunpack.c.l.b16 %v355
      %v866 = vunpack.c.h.b16 %v355
      %v867 = vunpack.c.l.b16 %v356
      %v868 = vunpack.c.l.b16 %v357
      %v869 = vunpack.c.h.b16 %v357
      %v870 = vunpack.c.l.b16 %v358
      %v871 = vunpack.c.h.b16 %v358
      %v872 = vunpack.c.l.b16 %v359
      %v873 = vunpack.c.h.b16 %v359
      %v874 = vunpack.c.l.b16 %v360
      %v875 = vunpack.c.h.b16 %v360
      %v876 = vunpack.c.l.b16 %v361
      %v877 = vunpack.c.l.b16 %v362
      %v878 = vunpack.c.h.b16 %v362
      %v879 = vunpack.c.l.b16 %v363
      %v880 = vunpack.c.h.b16 %v363
      %v881 = vunpack.c.l.b16 %v364
      %v882 = vunpack.c.h.b16 %v364
      %v883 = vunpack.c.l.b16 %v365
      %v884 = vunpack.c.h.b16 %v365
      %v885 = vunpack.c.l.b16 %v366
      %v886 = vunpack.c.l.b16 %v367
      %v887 = vunpack.c.h.b16 %v367
      %v888 = vunpack.c.l.b16 %v368
      %v889 = vunpack.c.h.b16 %v368
      %v890 = vunpack.c.l.b16 %v369
      %v891 = vunpack.c.h.b16 %v369
      %v892 = vunpack.c.l.b16 %v370
      %v893 = vunpack.c.h.b16 %v370
      %v894 = vunpack.c.l.b16 %v371
      %v895 = vunpack.c.l.b16 %v372
      %v896 = vunpack.c.h.b16 %v372
      %v897 = vunpack.c.l.b16 %v373
      %v898 = vunpack.c.h.b16 %v373
      %v899 = vunpack.c.l.b16 %v374
      %v900 = vunpack.c.h.b16 %v374
      %v901 = vunpack.c.l.b16 %v375
      %v902 = vunpack.c.h.b16 %v375
      %v903 = vunpack.c.l.b16 %v376
      %v904 = vunpack.c.l.b16 %v377
      %v905 = vunpack.c.h.b16 %v377
      %v906 = vunpack.c.l.b16 %v378
      %v907 = vunpack.c.h.b16 %v378
      %v908 = vunpack.c.l.b16 %v379
      %v909 = vunpack.c.h.b16 %v379
      %v910 = vunpack.c.l.b16 %v380
      %v911 = vunpack.c.h.b16 %v380
      %v912 = vunpack.c.l.b16 %v381
      %v913 = vunpack.c.l.b16 %v382
      %v914 = vunpack.c.h.b16 %v382
      %v915 = vunpack.c.l.b16 %v383
      %v916 = vunpack.c.h.b16 %v383
      %v917 = vunpack.c.l.b16 %v384
      %v918 = vunpack.c.h.b16 %v384
      %v919 = vunpack.c.l.b16 %v385
      %v920 = vunpack.c.h.b16 %v385
      %v921 = vunpack.c.l.b16 %v386
      %v922 = vunpack.c.l.b16 %v387
      %v923 = vunpack.c.h.b16 %v387
      %v924 = vunpack.c.l.b16 %v388
      %v925 = vunpack.c.h.b16 %v388
      %v926 = vunpack.c.l.b16 %v389
      %v927 = vunpack.c.h.b16 %v389
      %v928 = vunpack.c.l.b16 %v390
      %v929 = vunpack.c.h.b16 %v390
      %v930 = vunpack.c.l.b16 %v391
      %v931 = vunpack.c.l.b16 %v392
      %v932 = vunpack.c.h.b16 %v392
      %v933 = vunpack.c.l.b16 %v393
      %v934 = vunpack.c.h.b16 %v393
      %v935 = vunpack.c.l.b16 %v394
      %v936 = vunpack.c.h.b16 %v394
      %v937 = vunpack.c.l.b16 %v395
      %v938 = vunpack.c.h.b16 %v395
      %v939 = vunpack.c.l.b16 %v396
      %v940 = vunpack.c.l.b16 %v397
      %v941 = vunpack.c.h.b16 %v397
      %v942 = vunpack.c.l.b16 %v398
      %v943 = vunpack.c.h.b16 %v398
      %v944 = vunpack.c.l.b16 %v399
      %v945 = vunpack.c.h.b16 %v399
      %v946 = vunpack.c.l.b16 %v400
      %v947 = vunpack.c.h.b16 %v400
      %v948 = vunpack.c.l.b16 %v401
      %v949 = vunpack.c.l.b16 %v402
      %v950 = vunpack.c.h.b16 %v402
      %v951 = vunpack.c.l.b16 %v403
      %v952 = vunpack.c.h.b16 %v403
      %v953 = vunpack.c.l.b16 %v404
      %v954 = vunpack.c.h.b16 %v404
      %v955 = vunpack.c.l.b16 %v405
      %v956 = vunpack.c.h.b16 %v405
      %v957 = vunpack.c.l.b16 %v406
      %v958 = vunpack.c.l.b16 %v407
      %v959 = vunpack.c.h.b16 %v407
      %v960 = vunpack.c.l.b16 %v408
      %v961 = vunpack.c.h.b16 %v408
      %v962 = vunpack.c.l.b16 %v409
      %v963 = vunpack.c.h.b16 %v409
      %v964 = vunpack.c.l.b16 %v410
      %v965 = vunpack.c.h.b16 %v410
      %v966 = vunpack.c.l.b16 %v411
      %v967 = vunpack.c.l.b16 %v412
      %v968 = vunpack.c.h.b16 %v412
      %v969 = vunpack.c.l.b16 %v413
      %v970 = vunpack.c.h.b16 %v413
      %v971 = vunpack.c.l.b16 %v414
      %v972 = vunpack.c.h.b16 %v414
      %v973 = vunpack.c.l.b16 %v415
      %v974 = vunpack.c.h.b16 %v415
      %v975 = vunpack.c.l.b16 %v416
      %v976 = vunpack.c.l.b16 %v417
      %v977 = vunpack.c.h.b16 %v417
      %v978 = vunpack.c.l.b16 %v418
      %v979 = vunpack.c.h.b16 %v418
      %v980 = vunpack.c.l.b16 %v419
      %v981 = vunpack.c.h.b16 %v419
      %v982 = vunpack.c.l.b16 %v420
      %v983 = vunpack.c.h.b16 %v420
      %v984 = vunpack.c.l.b16 %v421
      %v985 = vunpack.c.l.b16 %v422
      %v986 = vunpack.c.h.b16 %v422
      %v987 = vunpack.c.l.b16 %v423
      %v988 = vunpack.c.h.b16 %v423
      %v989 = vunpack.c.l.b16 %v424
      %v990 = vunpack.c.h.b16 %v424
      %v991 = vunpack.c.l.b16 %v425
      %v992 = vunpack.c.h.b16 %v425
      %v993 = vunpack.c.l.b16 %v426
      %v994 = vunpack.c.l.b16 %v427
      %v995 = vunpack.c.h.b16 %v427
      %v996 = vunpack.c.l.b16 %v428
      %v997 = vunpack.c.h.b16 %v428
      %v998 = vunpack.c.l.b16 %v429
      %v999 = vunpack.c.h.b16 %v429
      %v1000 = vunpack.c.l.b16 %v430
      %v1001 = vunpack.c.h.b16 %v430
      %v1002 = vunpack.c.l.b16 %v431
      %v1003 = vunpack.c.l.b16 %v432
      %v1004 = vunpack.c.h.b16 %v432
      %v1005 = vunpack.c.l.b16 %v433
      %v1006 = vunpack.c.h.b16 %v433
      %v1007 = vunpack.c.l.b16 %v434
      %v1008 = vunpack.c.h.b16 %v434
      %v1009 = vunpack.c.l.b16 %v435
      %v1010 = vunpack.c.h.b16 %v435
      %v1011 = vunpack.c.l.b16 %v436
      %v1012 = vunpack.c.l.b16 %v437
      %v1013 = vunpack.c.h.b16 %v437
      %v1014 = vunpack.c.l.b16 %v438
      %v1015 = vunpack.c.h.b16 %v438
      %v1016 = vunpack.c.l.b16 %v439
      %v1017 = vunpack.c.h.b16 %v439
      %v1018 = vunpack.c.l.b16 %v440
      %v1019 = vunpack.c.h.b16 %v440
      %v1020 = vunpack.c.l.b16 %v441
      %v1021 = vunpack.c.l.b16 %v442
      %v1022 = vunpack.c.h.b16 %v442
      %v1023 = vunpack.c.l.b16 %v443
      %v1024 = vunpack.c.h.b16 %v443
      %v1025 = vunpack.c.l.b16 %v444
      %v1026 = vunpack.c.h.b16 %v444
      %v1027 = vunpack.c.l.b16 %v445
      %v1028 = vunpack.c.h.b16 %v445
      %v1029 = vunpack.c.l.b16 %v446
      %v1030 = vunpack.c.l.b16 %v447
      %v1031 = vunpack.c.h.b16 %v447
      %v1032 = vunpack.c.l.b16 %v448
      %v1033 = vunpack.c.h.b16 %v448
      %v1034 = vunpack.c.l.b16 %v449
      %v1035 = vunpack.c.h.b16 %v449
      %v1036 = vunpack.c.l.b16 %v450
      %v1037 = vunpack.c.h.b16 %v450
      %v1038 = vunpack.c.l.b16 %v451
      %v1039 = vunpack.c.l.b16 %v452
      %v1040 = vunpack.c.h.b16 %v452
      %v1041 = vunpack.c.l.b16 %v453
      %v1042 = vunpack.c.h.b16 %v453
      %v1043 = vunpack.c.l.b16 %v454
      %v1044 = vunpack.c.h.b16 %v454
      %v1045 = vunpack.c.l.b16 %v455
      %v1046 = vunpack.c.h.b16 %v455
      %v1047 = vunpack.c.l.b16 %v456
      %v1048 = vunpack.c.l.b16 %v457
      %v1049 = vunpack.c.h.b16 %v457
      %v1050 = vunpack.c.l.b16 %v458
      %v1051 = vunpack.c.h.b16 %v458
      %v1052 = vunpack.c.l.b16 %v459
      %v1053 = vunpack.c.h.b16 %v459
      %v1054 = vunpack.c.l.b16 %v460
      %v1055 = vunpack.c.h.b16 %v460
      %v1056 = vunpack.c.l.b16 %v461
      %v1057 = vunpack.c.l.b16 %v462
      %v1058 = vunpack.c.h.b16 %v462
      %v1059 = vunpack.c.l.b16 %v463
      %v1060 = vunpack.c.h.b16 %v463
      %v1061 = vunpack.c.l.b16 %v464
      %v1062 = vunpack.c.h.b16 %v464
      %v1063 = vunpack.c.l.b16 %v465
      %v1064 = vunpack.c.h.b16 %v465
      %v1065 = vunpack.c.l.b16 %v466
      %v1066 = vpack.c.b16 %v787, %v778
      %v1067 = vpack.c.b16 %v788, %v779
      %v1068 = vpack.c.b16 %v789, %v780
      %v1069 = vpack.c.b16 %v790, %v781
      %v1070 = vpack.c.b16 %v791, %v782
      %v1071 = vpack.c.b16 %v792, %v783
      %v1072 = vpack.c.b16 %v793, %v784
      %v1073 = vpack.c.b16 %v794, %v785
      %v1074 = vpack.c.b16 %v795, %v786
      %v1075 = vpack.c.b16 %v805, %v796
      %v1076 = vpack.c.b16 %v806, %v797
      %v1077 = vpack.c.b16 %v807, %v798
      %v1078 = vpack.c.b16 %v808, %v799
      %v1079 = vpack.c.b16 %v809, %v800
      %v1080 = vpack.c.b16 %v810, %v801
      %v1081 = vpack.c.b16 %v811, %v802
      %v1082 = vpack.c.b16 %v812, %v803
      %v1083 = vpack.c.b16 %v813, %v804
      %v1084 = vpack.c.b16 %v823, %v814
      %v1085 = vpack.c.b16 %v824, %v815
      %v1086 = vpack.c.b16 %v825, %v816
      %v1087 = vpack.c.b16 %v826, %v817
      %v1088 = vpack.c.b16 %v827, %v818
      %v1089 = vpack.c.b16 %v828, %v819
      %v1090 = vpack.c.b16 %v829, %v820
      %v1091 = vpack.c.b16 %v830, %v821
      %v1092 = vpack.c.b16 %v831, %v822
      %v1093 = vpack.c.b16 %v841, %v832
      %v1094 = vpack.c.b16 %v842, %v833
      %v1095 = vpack.c.b16 %v843, %v834
      %v1096 = vpack.c.b16 %v844, %v835
      %v1097 = vpack.c.b16 %v845, %v836
      %v1098 = vpack.c.b16 %v846, %v837
      %v1099 = vpack.c.b16 %v847, %v838
      %v1100 = vpack.c.b16 %v848, %v839
      %v1101 = vpack.c.b16 %v849, %v840
      %v1102 = vpack.c.b16 %v859, %v850
      %v1103 = vpack.c.b16 %v860, %v851
      %v1104 = vpack.c.b16 %v861, %v852
      %v1105 = vpack.c.b16 %v862, %v853
      %v1106 = vpack.c.b16 %v863, %v854
      %v1107 = vpack.c.b16 %v864, %v855
      %v1108 = vpack.c.b16 %v865, %v856
      %v1109 = vpack.c.b16 %v866, %v857
      %v1110 = vpack.c.b16 %v867, %v858
      %v1111 = vpack.c.b16 %v877, %v868
      %v1112 = vpack.c.b16 %v878, %v869
      %v1113 = vpack.c.b16 %v879, %v870
      %v1114 = vpack.c.b16 %v880, %v871
      %v1115 = vpack.c.b16 %v881, %v872
      %v1116 = vpack.c.b16 %v882, %v873
      %v1117 = vpack.c.b16 %v883, %v874
      %v1118 = vpack.c.b16 %v884, %v875
      %v1119 = vpack.c.b16 %v885, %v876
      %v1120 = vpack.c.b16 %v895, %v886
      %v1121 = vpack.c.b16 %v896, %v887
      %v1122 = vpack.c.b16 %v897, %v888
      %v1123 = vpack.c.b16 %v898, %v889
      %v1124 = vpack.c.b16 %v899, %v890
      %v1125 = vpack.c.b16 %v900, %v891
      %v1126 = vpack.c.b16 %v901, %v892
      %v1127 = vpack.c.b16 %v902, %v893
      %v1128 = vpack.c.b16 %v903, %v894
      %v1129 = vpack.c.b16 %v913, %v904
      %v1130 = vpack.c.b16 %v914, %v905
      %v1131 = vpack.c.b16 %v915, %v906
      %v1132 = vpack.c.b16 %v916, %v907
      %v1133 = vpack.c.b16 %v917, %v908
      %v1134 = vpack.c.b16 %v918, %v909
      %v1135 = vpack.c.b16 %v919, %v910
      %v1136 = vpack.c.b16 %v920, %v911
      %v1137 = vpack.c.b16 %v921, %v912
      %v1138 = vpack.c.b16 %v931, %v922
      %v1139 = vpack.c.b16 %v932, %v923
      %v1140 = vpack.c.b16 %v933, %v924
      %v1141 = vpack.c.b16 %v934, %v925
      %v1142 = vpack.c.b16 %v935, %v926
      %v1143 = vpack.c.b16 %v936, %v927
      %v1144 = vpack.c.b16 %v937, %v928
      %v1145 = vpack.c.b16 %v938, %v929
      %v1146 = vpack.c.b16 %v939, %v930
      %v1147 = vpack.c.b16 %v949, %v940
      %v1148 = vpack.c.b16 %v950, %v941
      %v1149 = vpack.c.b16 %v951, %v942
      %v1150 = vpack.c.b16 %v952, %v943
      %v1151 = vpack.c.b16 %v953, %v944
      %v1152 = vpack.c.b16 %v954, %v945
      %v1153 = vpack.c.b16 %v955, %v946
      %v1154 = vpack.c.b16 %v956, %v947
      %v1155 = vpack.c.b16 %v957, %v948
      %v1156 = vpack.c.b16 %v967, %v958
      %v1157 = vpack.c.b16 %v968, %v959
      %v1158 = vpack.c.b16 %v969, %v960
      %v1159 = vpack.c.b16 %v970, %v961
      %v1160 = vpack.c.b16 %v971, %v962
      %v1161 = vpack.c.b16 %v972, %v963
      %v1162 = vpack.c.b16 %v973, %v964
      %v1163 = vpack.c.b16 %v974, %v965
      %v1164 = vpack.c.b16 %v975, %v966
      %v1165 = vpack.c.b16 %v985, %v976
      %v1166 = vpack.c.b16 %v986, %v977
      %v1167 = vpack.c.b16 %v987, %v978
      %v1168 = vpack.c.b16 %v988, %v979
      %v1169 = vpack.c.b16 %v989, %v980
      %v1170 = vpack.c.b16 %v990, %v981
      %v1171 = vpack.c.b16 %v991, %v982
      %v1172 = vpack.c.b16 %v992, %v983
      %v1173 = vpack.c.b16 %v993, %v984
      %v1174 = vpack.c.b16 %v1003, %v994
      %v1175 = vpack.c.b16 %v1004, %v995
      %v1176 = vpack.c.b16 %v1005, %v996
      %v1177 = vpack.c.b16 %v1006, %v997
      %v1178 = vpack.c.b16 %v1007, %v998
      %v1179 = vpack.c.b16 %v1008, %v999
      %v1180 = vpack.c.b16 %v1009, %v1000
      %v1181 = vpack.c.b16 %v1010, %v1001
      %v1182 = vpack.c.b16 %v1011, %v1002
      %v1183 = vpack.c.b16 %v1021, %v1012
      %v1184 = vpack.c.b16 %v1022, %v1013
      %v1185 = vpack.c.b16 %v1023, %v1014
      %v1186 = vpack.c.b16 %v1024, %v1015
      %v1187 = vpack.c.b16 %v1025, %v1016
      %v1188 = vpack.c.b16 %v1026, %v1017
      %v1189 = vpack.c.b16 %v1027, %v1018
      %v1190 = vpack.c.b16 %v1028, %v1019
      %v1191 = vpack.c.b16 %v1029, %v1020
      %v1192 = vpack.c.b16 %v1039, %v1030
      %v1193 = vpack.c.b16 %v1040, %v1031
      %v1194 = vpack.c.b16 %v1041, %v1032
      %v1195 = vpack.c.b16 %v1042, %v1033
      %v1196 = vpack.c.b16 %v1043, %v1034
      %v1197 = vpack.c.b16 %v1044, %v1035
      %v1198 = vpack.c.b16 %v1045, %v1036
      %v1199 = vpack.c.b16 %v1046, %v1037
      %v1200 = vpack.c.b16 %v1047, %v1038
      %v1201 = vpack.c.b16 %v1057, %v1048
      %v1202 = vpack.c.b16 %v1058, %v1049
      %v1203 = vpack.c.b16 %v1059, %v1050
      %v1204 = vpack.c.b16 %v1060, %v1051
      %v1205 = vpack.c.b16 %v1061, %v1052
      %v1206 = vpack.c.b16 %v1062, %v1053
      %v1207 = vpack.c.b16 %v1063, %v1054
      %v1208 = vpack.c.b16 %v1064, %v1055
      %v1209 = vpack.c.b16 %v1065, %v1056
      %v1498 = vunpack.c.l.b16 %v467
      %v1499 = vunpack.c.l.b16 %v468
      %v1500 = vunpack.c.l.b16 %v469
      %v1501 = vunpack.c.l.b16 %v470
      %v1502 = vunpack.c.l.b16 %v471
      %v1503 = vunpack.c.l.b16 %v472
      %v1504 = vunpack.c.l.b16 %v473
      %v1505 = vunpack.c.l.b16 %v474
      %v1506 = vunpack.c.l.b16 %v475
      %v1507 = vunpack.c.l.b16 %v476
      %v1508 = vunpack.c.l.b16 %v477
      %v1509 = vunpack.c.l.b16 %v478
      %v1510 = vunpack.c.l.b16 %v479
      %v1511 = vunpack.c.l.b16 %v480
      %v1512 = vunpack.c.l.b16 %v481
      %v1513 = vunpack.c.l.b16 %v482
      %v1514 = vunpack.c.l.b16 %v483
      %v1515 = vunpack.c.l.b16 %v484
      %v1516 = vunpack.c.l.b16 %v485
      %v1517 = vunpack.c.l.b16 %v486
      %v1518 = vunpack.c.l.b16 %v487
      %v1519 = vunpack.c.l.b16 %v488
      %v1520 = vunpack.c.l.b16 %v489
      %v1521 = vunpack.c.l.b16 %v490
      %v1522 = vunpack.c.l.b16 %v491
      %v1523 = vunpack.c.l.b16 %v492
      %v1524 = vunpack.c.l.b16 %v493
      %v1525 = vunpack.c.l.b16 %v494
      %v1526 = vunpack.c.l.b16 %v495
      %v1527 = vunpack.c.l.b16 %v496
      %v1528 = vunpack.c.l.b16 %v497
      %v1529 = vunpack.c.l.b16 %v498
      %v1530 = vunpack.c.l.b16 %v499
      %v1531 = vunpack.c.l.b16 %v500
      %v1532 = vunpack.c.l.b16 %v501
      %v1533 = vunpack.c.l.b16 %v502
      %v1534 = vunpack.c.l.b16 %v503
      %v1535 = vunpack.c.l.b16 %v504
      %v1536 = vunpack.c.l.b16 %v505
      %v1537 = vunpack.c.l.b16 %v506
      %v1538 = vunpack.c.l.b16 %v507
      %v1539 = vunpack.c.l.b16 %v508
      %v1540 = vunpack.c.l.b16 %v509
      %v1541 = vunpack.c.l.b16 %v510
      %v1542 = vunpack.c.l.b16 %v511
      %v1543 = vunpack.c.l.b16 %v512
      %v1544 = vunpack.c.l.b16 %v513
      %v1545 = vunpack.c.l.b16 %v514
      %v1546 = vunpack.c.l.b16 %v515
      %v1547 = vunpack.c.l.b16 %v516
      %v1548 = vunpack.c.l.b16 %v517
      %v1549 = vunpack.c.l.b16 %v518
      %v1550 = vunpack.c.l.b16 %v519
      %v1551 = vunpack.c.l.b16 %v520
      %v1552 = vunpack.c.l.b16 %v521
      %v1553 = vunpack.c.l.b16 %v522
      %v1554 = vunpack.c.l.b16 %v523
      %v1555 = vunpack.c.l.b16 %v524
      %v1556 = vunpack.c.l.b16 %v525
      %v1557 = vunpack.c.l.b16 %v526
      %v1558 = vunpack.c.l.b16 %v527
      %v1559 = vunpack.c.l.b16 %v528
      %v1560 = vunpack.c.l.b16 %v529
      %v1561 = vunpack.c.l.b16 %v530
      %v1562 = vunpack.c.l.b16 %v531
      %v1563 = vunpack.c.l.b16 %v532
      %v1564 = vunpack.c.l.b16 %v533
      %v1565 = vunpack.c.l.b16 %v534
      %v1566 = vunpack.c.l.b16 %v535
      %v1567 = vunpack.c.l.b16 %v536
      %v1568 = vunpack.c.l.b16 %v537
      %v1569 = vunpack.c.l.b16 %v538
      %v1570 = vunpack.c.l.b16 %v539
      %v1571 = vunpack.c.l.b16 %v540
      %v1572 = vunpack.c.l.b16 %v541
      %v1573 = vunpack.c.l.b16 %v542
      %v1574 = vunpack.c.l.b16 %v543
      %v1575 = vunpack.c.l.b16 %v544
      %v1576 = vunpack.c.l.b16 %v545
      %v1577 = vunpack.c.l.b16 %v546
      %v1578 = vunpack.c.l.b16 %v547
      %v1579 = vunpack.c.l.b16 %v548
      %v1580 = vunpack.c.l.b16 %v549
      %v1581 = vunpack.c.l.b16 %v550
      %v1582 = vunpack.c.l.b16 %v551
      %v1583 = vunpack.c.l.b16 %v552
      %v1584 = vunpack.c.l.b16 %v553
      %v1585 = vunpack.c.l.b16 %v554
      %v1586 = vunpack.c.l.b16 %v555
      %v1587 = vunpack.c.l.b16 %v556
      %v1588 = vunpack.c.l.b16 %v557
      %v1589 = vunpack.c.l.b16 %v558
      %v1590 = vunpack.c.l.b16 %v559
      %v1591 = vunpack.c.l.b16 %v560
      %v1592 = vunpack.c.l.b16 %v561
      %v1593 = vunpack.c.l.b16 %v562
      %v1594 = vunpack.c.l.b16 %v563
      %v1595 = vunpack.c.l.b16 %v564
      %v1596 = vunpack.c.l.b16 %v565
      %v1597 = vunpack.c.l.b16 %v566
      %v1598 = vunpack.c.l.b16 %v567
      %v1599 = vunpack.c.l.b16 %v568
      %v1600 = vunpack.c.l.b16 %v569
      %v1601 = vunpack.c.l.b16 %v570
      %v1602 = vunpack.c.l.b16 %v571
      %v1603 = vunpack.c.l.b16 %v572
      %v1604 = vunpack.c.l.b16 %v573
      %v1605 = vunpack.c.l.b16 %v574
      %v1606 = vunpack.c.l.b16 %v575
      %v1607 = vunpack.c.l.b16 %v576
      %v1608 = vunpack.c.l.b16 %v577
      %v1609 = vunpack.c.l.b16 %v578
      %v1610 = vunpack.c.l.b16 %v579
      %v1611 = vunpack.c.l.b16 %v580
      %v1612 = vunpack.c.l.b16 %v581
      %v1613 = vunpack.c.l.b16 %v582
      %v1614 = vunpack.c.l.b16 %v583
      %v1615 = vunpack.c.l.b16 %v584
      %v1616 = vunpack.c.l.b16 %v585
      %v1617 = vunpack.c.l.b16 %v586
      %v1618 = vunpack.c.l.b16 %v587
      %v1619 = vunpack.c.l.b16 %v588
      %v1620 = vunpack.c.l.b16 %v589
      %v1621 = vunpack.c.l.b16 %v590
      %v1622 = vunpack.c.l.b16 %v591
      %v1623 = vunpack.c.l.b16 %v592
      %v1624 = vunpack.c.l.b16 %v593
      %v1625 = vunpack.c.l.b16 %v594
      %v1626 = vunpack.c.l.b16 %v595
      %v1627 = vunpack.c.l.b16 %v596
      %v1628 = vunpack.c.l.b16 %v597
      %v1629 = vunpack.c.l.b16 %v598
      %v1630 = vunpack.c.l.b16 %v599
      %v1631 = vunpack.c.l.b16 %v600
      %v1632 = vunpack.c.l.b16 %v601
      %v1633 = vunpack.c.l.b16 %v602
      %v1634 = vunpack.c.l.b16 %v603
      %v1635 = vunpack.c.l.b16 %v604
      %v1636 = vunpack.c.l.b16 %v605
      %v1637 = vunpack.c.l.b16 %v606
      %v1638 = vunpack.c.l.b16 %v607
      %v1639 = vunpack.c.l.b16 %v608
      %v1640 = vunpack.c.l.b16 %v609
      %v1641 = vunpack.c.l.b16 %v610
      %v1642 = vpack.c.b16 %v1499, %v1498
      %v1643 = vpack.c.b16 %v1501, %v1500
      %v1644 = vpack.c.b16 %v1503, %v1502
      %v1645 = vpack.c.b16 %v1505, %v1504
      %v1646 = vpack.c.b16 %v1507, %v1506
      %v1647 = vpack.c.b16 %v1509, %v1508
      %v1648 = vpack.c.b16 %v1511, %v1510
      %v1649 = vpack.c.b16 %v1513, %v1512
      %v1650 = vpack.c.b16 %v1515, %v1514
      %v1651 = vpack.c.b16 %v1517, %v1516
      %v1652 = vpack.c.b16 %v1519, %v1518
      %v1653 = vpack.c.b16 %v1521, %v1520
      %v1654 = vpack.c.b16 %v1523, %v1522
      %v1655 = vpack.c.b16 %v1525, %v1524
      %v1656 = vpack.c.b16 %v1527, %v1526
      %v1657 = vpack.c.b16 %v1529, %v1528
      %v1658 = vpack.c.b16 %v1531, %v1530
      %v1659 = vpack.c.b16 %v1533, %v1532
      %v1660 = vpack.c.b16 %v1535, %v1534
      %v1661 = vpack.c.b16 %v1537, %v1536
      %v1662 = vpack.c.b16 %v1539, %v1538
      %v1663 = vpack.c.b16 %v1541, %v1540
      %v1664 = vpack.c.b16 %v1543, %v1542
      %v1665 = vpack.c.b16 %v1545, %v1544
      %v1666 = vpack.c.b16 %v1547, %v1546
      %v1667 = vpack.c.b16 %v1549, %v1548
      %v1668 = vpack.c.b16 %v1551, %v1550
      %v1669 = vpack.c.b16 %v1553, %v1552
      %v1670 = vpack.c.b16 %v1555, %v1554
      %v1671 = vpack.c.b16 %v1557, %v1556
      %v1672 = vpack.c.b16 %v1559, %v1558
      %v1673 = vpack.c.b16 %v1561, %v1560
      %v1674 = vpack.c.b16 %v1563, %v1562
      %v1675 = vpack.c.b16 %v1565, %v1564
      %v1676 = vpack.c.b16 %v1567, %v1566
      %v1677 = vpack.c.b16 %v1569, %v1568
      %v1678 = vpack.c.b16 %v1571, %v1570
      %v1679 = vpack.c.b16 %v1573, %v1572
      %v1680 = vpack.c.b16 %v1575, %v1574
      %v1681 = vpack.c.b16 %v1577, %v1576
      %v1682 = vpack.c.b16 %v1579, %v1578
      %v1683 = vpack.c.b16 %v1581, %v1580
      %v1684 = vpack.c.b16 %v1583, %v1582
      %v1685 = vpack.c.b16 %v1585, %v1584
      %v1686 = vpack.c.b16 %v1587, %v1586
      %v1687 = vpack.c.b16 %v1589, %v1588
      %v1688 = vpack.c.b16 %v1591, %v1590
      %v1689 = vpack.c.b16 %v1593, %v1592
      %v1690 = vpack.c.b16 %v1595, %v1594
      %v1691 = vpack.c.b16 %v1597, %v1596
      %v1692 = vpack.c.b16 %v1599, %v1598
      %v1693 = vpack.c.b16 %v1601, %v1600
      %v1694 = vpack.c.b16 %v1603, %v1602
      %v1695 = vpack.c.b16 %v1605, %v1604
      %v1696 = vpack.c.b16 %v1607, %v1606
      %v1697 = vpack.c.b16 %v1609, %v1608
      %v1698 = vpack.c.b16 %v1611, %v1610
      %v1699 = vpack.c.b16 %v1613, %v1612
      %v1700 = vpack.c.b16 %v1615, %v1614
      %v1701 = vpack.c.b16 %v1617, %v1616
      %v1702 = vpack.c.b16 %v1619, %v1618
      %v1703 = vpack.c.b16 %v1621, %v1620
      %v1704 = vpack.c.b16 %v1623, %v1622
      %v1705 = vpack.c.b16 %v1625, %v1624
      %v1706 = vpack.c.b16 %v1627, %v1626
      %v1707 = vpack.c.b16 %v1629, %v1628
      %v1708 = vpack.c.b16 %v1631, %v1630
      %v1709 = vpack.c.b16 %v1633, %v1632
      %v1710 = vpack.c.b16 %v1635, %v1634
      %v1711 = vpack.c.b16 %v1637, %v1636
      %v1712 = vpack.c.b16 %v1639, %v1638
      %v1713 = vpack.c.b16 %v1641, %v1640
      %1786 = vmatprep.subr.bf16.mxu0 0
      %1787 = vmatpush1.bf16.msra.mxu0 %v1642
      %1788 = vmatprep.subr.bf16.mxu0 0
      %1789 = vmatpush1.bf16.msra.mxu0 %v1643
      %1790 = vmatprep.subr.bf16.mxu0 0
      %1791 = vmatpush1.bf16.msra.mxu0 %v1644
      %1792 = vmatprep.subr.bf16.mxu0 0
      %1793 = vmatpush1.bf16.msra.mxu0 %v1645
      %1794 = vmatprep.subr.bf16.mxu0 0
      %1795 = vmatpush1.bf16.msra.mxu0 %v1646
      %1796 = vmatprep.subr.bf16.mxu0 0
      %1797 = vmatpush1.bf16.msra.mxu0 %v1647
      %1798 = vmatprep.subr.bf16.mxu0 0
      %1799 = vmatpush1.bf16.msra.mxu0 %v1648
      %1800 = vmatprep.subr.bf16.mxu0 0
      %1801 = vmatpush1.bf16.msra.mxu0 %v1649
      %1802 = vmatprep.subr.bf16.mxu0 0
      %1803 = vmatpush1.bf16.msra.mxu0 %v1650
      %1804 = vmatprep.subr.bf16.mxu0 0
      %1805 = vmatpush1.bf16.msra.mxu0 %v1651
      %1806 = vmatprep.subr.bf16.mxu0 0
      %1807 = vmatpush1.bf16.msra.mxu0 %v1652
      %1808 = vmatprep.subr.bf16.mxu0 0
      %1809 = vmatpush1.bf16.msra.mxu0 %v1653
      %1810 = vmatprep.subr.bf16.mxu0 0
      %1811 = vmatpush1.bf16.msra.mxu0 %v1654
      %1812 = vmatprep.subr.bf16.mxu0 0
      %1813 = vmatpush1.bf16.msra.mxu0 %v1655
      %1814 = vmatprep.subr.bf16.mxu0 0
      %1815 = vmatpush1.bf16.msra.mxu0 %v1656
      %1816 = vmatprep.subr.bf16.mxu0 0
      %1817 = vmatpush1.bf16.msra.mxu0 %v1657
      %1818 = vmatprep.mubr.bf16.mxu0 %v1067
      %1819 = vmatmul.mubr.bf16.gmra.mrb[0].mxu0 %v1066
      %v1820 = vpop.f32.mrb[0].mxu0
      %v1821 = vadd.f32 %v616, %v1820
      %v1822 = vpop.f32.mrb[0].mxu0
      %v1823 = vpop.f32.mrb[0].mxu0
      %v1824 = vadd.f32 %v616, %v1823
      %v1825 = vpop.f32.mrb[0].mxu0
      %1826 = vmatprep.mubr.bf16.mxu0 %v1076
      %1827 = vmatmul.mubr.bf16.gmra.mrb[0].mxu0 %v1075
      %v1828 = vpop.f32.mrb[0].mxu0
      %v1829 = vadd.f32 %v616, %v1828
      %v1830 = vpop.f32.mrb[0].mxu0
      %v1831 = vpop.f32.mrb[0].mxu0
      %v1832 = vadd.f32 %v616, %v1831
      %v1833 = vpop.f32.mrb[0].mxu0
      %1834 = vmatprep.mubr.bf16.mxu0 %v1085
      %1835 = vmatmul.mubr.bf16.gmra.mrb[0].mxu0 %v1084
      %v1836 = vpop.f32.mrb[0].mxu0
      %v1837 = vadd.f32 %v616, %v1836
      %v1838 = vpop.f32.mrb[0].mxu0
      %v1839 = vpop.f32.mrb[0].mxu0
      %v1840 = vadd.f32 %v616, %v1839
      %v1841 = vpop.f32.mrb[0].mxu0
      %1842 = vmatprep.mubr.bf16.mxu0 %v1094
      %1843 = vmatmul.mubr.bf16.gmra.mrb[0].mxu0 %v1093
      %v1844 = vpop.f32.mrb[0].mxu0
      %v1845 = vadd.f32 %v616, %v1844
      %v1846 = vpop.f32.mrb[0].mxu0
      %v1847 = vpop.f32.mrb[0].mxu0
      %v1848 = vadd.f32 %v616, %v1847
      %v1849 = vpop.f32.mrb[0].mxu0
      %1850 = vmatprep.mubr.bf16.mxu0 %v1103
      %1851 = vmatmul.mubr.bf16.gmra.mrb[0].mxu0 %v1102
      %v1852 = vpop.f32.mrb[0].mxu0
      %v1853 = vadd.f32 %v616, %v1852
      %v1854 = vpop.f32.mrb[0].mxu0
      %v1855 = vpop.f32.mrb[0].mxu0
      %v1856 = vadd.f32 %v616, %v1855
      %v1857 = vpop.f32.mrb[0].mxu0
      %1858 = vmatprep.mubr.bf16.mxu0 %v1112
      %1859 = vmatmul.mubr.bf16.gmra.mrb[0].mxu0 %v1111
      %v1860 = vpop.f32.mrb[0].mxu0
      %v1861 = vadd.f32 %v616, %v1860
      %v1862 = vpop.f32.mrb[0].mxu0
      %v1863 = vpop.f32.mrb[0].mxu0
      %v1864 = vadd.f32 %v616, %v1863
      %v1865 = vpop.f32.mrb[0].mxu0
      %1866 = vmatprep.mubr.bf16.mxu0 %v1121
      %1867 = vmatmul.mubr.bf16.gmra.mrb[0].mxu0 %v1120
      %v1868 = vpop.f32.mrb[0].mxu0
      %v1869 = vadd.f32 %v616, %v1868
      %v1870 = vpop.f32.mrb[0].mxu0
      %v1871 = vpop.f32.mrb[0].mxu0
      %v1872 = vadd.f32 %v616, %v1871
      %v1873 = vpop.f32.mrb[0].mxu0
      %1874 = vmatprep.mubr.bf16.mxu0 %v1130
      %1875 = vmatmul.mubr.bf16.gmra.mrb[0].mxu0 %v1129
      %v1876 = vpop.f32.mrb[0].mxu0
      %v1877 = vadd.f32 %v616, %v1876
      %v1878 = vpop.f32.mrb[0].mxu0
      %v1879 = vpop.f32.mrb[0].mxu0
      %v1880 = vadd.f32 %v616, %v1879
      %v1881 = vpop.f32.mrb[0].mxu0
      %1882 = vmatprep.mubr.bf16.mxu0 %v1139
      %1883 = vmatmul.mubr.bf16.gmra.mrb[0].mxu0 %v1138
      %v1884 = vpop.f32.mrb[0].mxu0
      %v1885 = vadd.f32 %v616, %v1884
      %v1886 = vpop.f32.mrb[0].mxu0
      %v1887 = vpop.f32.mrb[0].mxu0
      %v1888 = vadd.f32 %v616, %v1887
      %v1889 = vpop.f32.mrb[0].mxu0
      %1890 = vmatprep.mubr.bf16.mxu0 %v1148
      %1891 = vmatmul.mubr.bf16.gmra.mrb[0].mxu0 %v1147
      %v1892 = vpop.f32.mrb[0].mxu0
      %v1893 = vadd.f32 %v616, %v1892
      %v1894 = vpop.f32.mrb[0].mxu0
      %v1895 = vpop.f32.mrb[0].mxu0
      %v1896 = vadd.f32 %v616, %v1895
      %v1897 = vpop.f32.mrb[0].mxu0
      %1898 = vmatprep.mubr.bf16.mxu0 %v1157
      %1899 = vmatmul.mubr.bf16.gmra.mrb[0].mxu0 %v1156
      %v1900 = vpop.f32.mrb[0].mxu0
      %v1901 = vadd.f32 %v616, %v1900
      %v1902 = vpop.f32.mrb[0].mxu0
      %v1903 = vpop.f32.mrb[0].mxu0
      %v1904 = vadd.f32 %v616, %v1903
      %v1905 = vpop.f32.mrb[0].mxu0
      %1906 = vmatprep.mubr.bf16.mxu0 %v1166
      %1907 = vmatmul.mubr.bf16.gmra.mrb[0].mxu0 %v1165
      %v1908 = vpop.f32.mrb[0].mxu0
      %v1909 = vadd.f32 %v616, %v1908
      %v1910 = vpop.f32.mrb[0].mxu0
      %v1911 = vpop.f32.mrb[0].mxu0
      %v1912 = vadd.f32 %v616, %v1911
      %v1913 = vpop.f32.mrb[0].mxu0
      %1914 = vmatprep.mubr.bf16.mxu0 %v1175
      %1915 = vmatmul.mubr.bf16.gmra.mrb[0].mxu0 %v1174
      %v1916 = vpop.f32.mrb[0].mxu0
      %v1917 = vadd.f32 %v616, %v1916
      %v1918 = vpop.f32.mrb[0].mxu0
      %v1919 = vpop.f32.mrb[0].mxu0
      %v1920 = vadd.f32 %v616, %v1919
      %v1921 = vpop.f32.mrb[0].mxu0
      %1922 = vmatprep.mubr.bf16.mxu0 %v1184
      %1923 = vmatmul.mubr.bf16.gmra.mrb[0].mxu0 %v1183
      %v1924 = vpop.f32.mrb[0].mxu0
      %v1925 = vadd.f32 %v616, %v1924
      %v1926 = vpop.f32.mrb[0].mxu0
      %v1927 = vpop.f32.mrb[0].mxu0
      %v1928 = vadd.f32 %v616, %v1927
      %v1929 = vpop.f32.mrb[0].mxu0
      %1930 = vmatprep.mubr.bf16.mxu0 %v1193
      %1931 = vmatmul.mubr.bf16.gmra.mrb[0].mxu0 %v1192
      %v1932 = vpop.f32.mrb[0].mxu0
      %v1933 = vadd.f32 %v616, %v1932
      %v1934 = vpop.f32.mrb[0].mxu0
      %v1935 = vpop.f32.mrb[0].mxu0
      %v1936 = vadd.f32 %v616, %v1935
      %v1937 = vpop.f32.mrb[0].mxu0
      %1938 = vmatprep.mubr.bf16.mxu0 %v1202
      %1939 = vmatmul.mubr.bf16.gmra.mrb[0].mxu0 %v1201
      %v1940 = vpop.f32.mrb[0].mxu0
      %v1941 = vadd.f32 %v616, %v1940
      %v1942 = vpop.f32.mrb[0].mxu0
      %v1943 = vpop.f32.mrb[0].mxu0
      %v1944 = vadd.f32 %v616, %v1943
      %v1945 = vpop.f32.mrb[0].mxu0
      %1946 = vdwg.mxu0
      %1947 = vmatprep.subr.bf16.mxu0 0
      %1948 = vmatpush1.bf16.msra.mxu0 %v1658
      %1949 = vmatprep.subr.bf16.mxu0 0
      %1950 = vmatpush1.bf16.msra.mxu0 %v1659
      %1951 = vmatprep.subr.bf16.mxu0 0
      %1952 = vmatpush1.bf16.msra.mxu0 %v1660
      %1953 = vmatprep.subr.bf16.mxu0 0
      %1954 = vmatpush1.bf16.msra.mxu0 %v1661
      %1955 = vmatprep.subr.bf16.mxu0 0
      %1956 = vmatpush1.bf16.msra.mxu0 %v1662
      %1957 = vmatprep.subr.bf16.mxu0 0
      %1958 = vmatpush1.bf16.msra.mxu0 %v1663
      %1959 = vmatprep.subr.bf16.mxu0 0
      %1960 = vmatpush1.bf16.msra.mxu0 %v1664
      %1961 = vmatprep.subr.bf16.mxu0 0
      %1962 = vmatpush1.bf16.msra.mxu0 %v1665
      %1963 = vmatprep.subr.bf16.mxu0 0
      %1964 = vmatpush1.bf16.msra.mxu0 %v1666
      %1965 = vmatprep.subr.bf16.mxu0 0
      %1966 = vmatpush1.bf16.msra.mxu0 %v1667
      %1967 = vmatprep.subr.bf16.mxu0 0
      %1968 = vmatpush1.bf16.msra.mxu0 %v1668
      %1969 = vmatprep.subr.bf16.mxu0 0
      %1970 = vmatpush1.bf16.msra.mxu0 %v1669
      %1971 = vmatprep.subr.bf16.mxu0 0
      %1972 = vmatpush1.bf16.msra.mxu0 %v1670
      %1973 = vmatprep.subr.bf16.mxu0 0
      %1974 = vmatpush1.bf16.msra.mxu0 %v1671
      %1975 = vmatprep.subr.bf16.mxu0 0
      %1976 = vmatpush1.bf16.msra.mxu0 %v1672
      %1977 = vmatprep.subr.bf16.mxu0 0
      %1978 = vmatpush1.bf16.msra.mxu0 %v1673
      %1979 = vmatprep.mubr.bf16.mxu0 %v1069
      %1980 = vmatmul.mubr.bf16.gmra.mrb[0].mxu0 %v1068
      %v1981 = vpop.f32.mrb[0].mxu0
      %v1982 = vadd.f32 %v1821, %v1981
      %v1983 = vpop.f32.mrb[0].mxu0
      %v1984 = vpop.f32.mrb[0].mxu0
      %v1985 = vadd.f32 %v1824, %v1984
      %v1986 = vpop.f32.mrb[0].mxu0
      %1987 = vmatprep.mubr.bf16.mxu0 %v1078
      %1988 = vmatmul.mubr.bf16.gmra.mrb[0].mxu0 %v1077
      %v1989 = vpop.f32.mrb[0].mxu0
      %v1990 = vadd.f32 %v1829, %v1989
      %v1991 = vpop.f32.mrb[0].mxu0
      %v1992 = vpop.f32.mrb[0].mxu0
      %v1993 = vadd.f32 %v1832, %v1992
      %v1994 = vpop.f32.mrb[0].mxu0
      %1995 = vmatprep.mubr.bf16.mxu0 %v1087
      %1996 = vmatmul.mubr.bf16.gmra.mrb[0].mxu0 %v1086
      %v1997 = vpop.f32.mrb[0].mxu0
      %v1998 = vadd.f32 %v1837, %v1997
      %v1999 = vpop.f32.mrb[0].mxu0
      %v2000 = vpop.f32.mrb[0].mxu0
      %v2001 = vadd.f32 %v1840, %v2000
      %v2002 = vpop.f32.mrb[0].mxu0
      %2003 = vmatprep.mubr.bf16.mxu0 %v1096
      %2004 = vmatmul.mubr.bf16.gmra.mrb[0].mxu0 %v1095
      %v2005 = vpop.f32.mrb[0].mxu0
      %v2006 = vadd.f32 %v1845, %v2005
      %v2007 = vpop.f32.mrb[0].mxu0
      %v2008 = vpop.f32.mrb[0].mxu0
      %v2009 = vadd.f32 %v1848, %v2008
      %v2010 = vpop.f32.mrb[0].mxu0
      %2011 = vmatprep.mubr.bf16.mxu0 %v1105
      %2012 = vmatmul.mubr.bf16.gmra.mrb[0].mxu0 %v1104
      %v2013 = vpop.f32.mrb[0].mxu0
      %v2014 = vadd.f32 %v1853, %v2013
      %v2015 = vpop.f32.mrb[0].mxu0
      %v2016 = vpop.f32.mrb[0].mxu0
      %v2017 = vadd.f32 %v1856, %v2016
      %v2018 = vpop.f32.mrb[0].mxu0
      %2019 = vmatprep.mubr.bf16.mxu0 %v1114
      %2020 = vmatmul.mubr.bf16.gmra.mrb[0].mxu0 %v1113
      %v2021 = vpop.f32.mrb[0].mxu0
      %v2022 = vadd.f32 %v1861, %v2021
      %v2023 = vpop.f32.mrb[0].mxu0
      %v2024 = vpop.f32.mrb[0].mxu0
      %v2025 = vadd.f32 %v1864, %v2024
      %v2026 = vpop.f32.mrb[0].mxu0
      %2027 = vmatprep.mubr.bf16.mxu0 %v1123
      %2028 = vmatmul.mubr.bf16.gmra.mrb[0].mxu0 %v1122
      %v2029 = vpop.f32.mrb[0].mxu0
      %v2030 = vadd.f32 %v1869, %v2029
      %v2031 = vpop.f32.mrb[0].mxu0
      %v2032 = vpop.f32.mrb[0].mxu0
      %v2033 = vadd.f32 %v1872, %v2032
      %v2034 = vpop.f32.mrb[0].mxu0
      %2035 = vmatprep.mubr.bf16.mxu0 %v1132
      %2036 = vmatmul.mubr.bf16.gmra.mrb[0].mxu0 %v1131
      %v2037 = vpop.f32.mrb[0].mxu0
      %v2038 = vadd.f32 %v1877, %v2037
      %v2039 = vpop.f32.mrb[0].mxu0
      %v2040 = vpop.f32.mrb[0].mxu0
      %v2041 = vadd.f32 %v1880, %v2040
      %v2042 = vpop.f32.mrb[0].mxu0
      %2043 = vmatprep.mubr.bf16.mxu0 %v1141
      %2044 = vmatmul.mubr.bf16.gmra.mrb[0].mxu0 %v1140
      %v2045 = vpop.f32.mrb[0].mxu0
      %v2046 = vadd.f32 %v1885, %v2045
      %v2047 = vpop.f32.mrb[0].mxu0
      %v2048 = vpop.f32.mrb[0].mxu0
      %v2049 = vadd.f32 %v1888, %v2048
      %v2050 = vpop.f32.mrb[0].mxu0
      %2051 = vmatprep.mubr.bf16.mxu0 %v1150
      %2052 = vmatmul.mubr.bf16.gmra.mrb[0].mxu0 %v1149
      %v2053 = vpop.f32.mrb[0].mxu0
      %v2054 = vadd.f32 %v1893, %v2053
      %v2055 = vpop.f32.mrb[0].mxu0
      %v2056 = vpop.f32.mrb[0].mxu0
      %v2057 = vadd.f32 %v1896, %v2056
      %v2058 = vpop.f32.mrb[0].mxu0
      %2059 = vmatprep.mubr.bf16.mxu0 %v1159
      %2060 = vmatmul.mubr.bf16.gmra.mrb[0].mxu0 %v1158
      %v2061 = vpop.f32.mrb[0].mxu0
      %v2062 = vadd.f32 %v1901, %v2061
      %v2063 = vpop.f32.mrb[0].mxu0
      %v2064 = vpop.f32.mrb[0].mxu0
      %v2065 = vadd.f32 %v1904, %v2064
      %v2066 = vpop.f32.mrb[0].mxu0
      %2067 = vmatprep.mubr.bf16.mxu0 %v1168
      %2068 = vmatmul.mubr.bf16.gmra.mrb[0].mxu0 %v1167
      %v2069 = vpop.f32.mrb[0].mxu0
      %v2070 = vadd.f32 %v1909, %v2069
      %v2071 = vpop.f32.mrb[0].mxu0
      %v2072 = vpop.f32.mrb[0].mxu0
      %v2073 = vadd.f32 %v1912, %v2072
      %v2074 = vpop.f32.mrb[0].mxu0
      %2075 = vmatprep.mubr.bf16.mxu0 %v1177
      %2076 = vmatmul.mubr.bf16.gmra.mrb[0].mxu0 %v1176
      %v2077 = vpop.f32.mrb[0].mxu0
      %v2078 = vadd.f32 %v1917, %v2077
      %v2079 = vpop.f32.mrb[0].mxu0
      %v2080 = vpop.f32.mrb[0].mxu0
      %v2081 = vadd.f32 %v1920, %v2080
      %v2082 = vpop.f32.mrb[0].mxu0
      %2083 = vmatprep.mubr.bf16.mxu0 %v1186
      %2084 = vmatmul.mubr.bf16.gmra.mrb[0].mxu0 %v1185
      %v2085 = vpop.f32.mrb[0].mxu0
      %v2086 = vadd.f32 %v1925, %v2085
      %v2087 = vpop.f32.mrb[0].mxu0
      %v2088 = vpop.f32.mrb[0].mxu0
      %v2089 = vadd.f32 %v1928, %v2088
      %v2090 = vpop.f32.mrb[0].mxu0
      %2091 = vmatprep.mubr.bf16.mxu0 %v1195
      %2092 = vmatmul.mubr.bf16.gmra.mrb[0].mxu0 %v1194
      %v2093 = vpop.f32.mrb[0].mxu0
      %v2094 = vadd.f32 %v1933, %v2093
      %v2095 = vpop.f32.mrb[0].mxu0
      %v2096 = vpop.f32.mrb[0].mxu0
      %v2097 = vadd.f32 %v1936, %v2096
      %v2098 = vpop.f32.mrb[0].mxu0
      %2099 = vmatprep.mubr.bf16.mxu0 %v1204
      %2100 = vmatmul.mubr.bf16.gmra.mrb[0].mxu0 %v1203
      %v2101 = vpop.f32.mrb[0].mxu0
      %v2102 = vadd.f32 %v1941, %v2101
      %v2103 = vpop.f32.mrb[0].mxu0
      %v2104 = vpop.f32.mrb[0].mxu0
      %v2105 = vadd.f32 %v1944, %v2104
      %v2106 = vpop.f32.mrb[0].mxu0
      %2107 = vdwg.mxu0
      %2108 = vmatprep.subr.bf16.mxu0 0
      %2109 = vmatpush1.bf16.msra.mxu0 %v1674
      %2110 = vmatprep.subr.bf16.mxu0 0
      %2111 = vmatpush1.bf16.msra.mxu0 %v1675
      %2112 = vmatprep.subr.bf16.mxu0 0
      %2113 = vmatpush1.bf16.msra.mxu0 %v1676
      %2114 = vmatprep.subr.bf16.mxu0 0
      %2115 = vmatpush1.bf16.msra.mxu0 %v1677
      %2116 = vmatprep.subr.bf16.mxu0 0
      %2117 = vmatpush1.bf16.msra.mxu0 %v1678
      %2118 = vmatprep.subr.bf16.mxu0 0
      %2119 = vmatpush1.bf16.msra.mxu0 %v1679
      %2120 = vmatprep.subr.bf16.mxu0 0
      %2121 = vmatpush1.bf16.msra.mxu0 %v1680
      %2122 = vmatprep.subr.bf16.mxu0 0
      %2123 = vmatpush1.bf16.msra.mxu0 %v1681
      %2124 = vmatprep.subr.bf16.mxu0 0
      %2125 = vmatpush1.bf16.msra.mxu0 %v1682
      %2126 = vmatprep.subr.bf16.mxu0 0
      %2127 = vmatpush1.bf16.msra.mxu0 %v1683
      %2128 = vmatprep.subr.bf16.mxu0 0
      %2129 = vmatpush1.bf16.msra.mxu0 %v1684
      %2130 = vmatprep.subr.bf16.mxu0 0
      %2131 = vmatpush1.bf16.msra.mxu0 %v1685
      %2132 = vmatprep.subr.bf16.mxu0 0
      %2133 = vmatpush1.bf16.msra.mxu0 %v1686
      %2134 = vmatprep.subr.bf16.mxu0 0
      %2135 = vmatpush1.bf16.msra.mxu0 %v1687
      %2136 = vmatprep.subr.bf16.mxu0 0
      %2137 = vmatpush1.bf16.msra.mxu0 %v1688
      %2138 = vmatprep.subr.bf16.mxu0 0
      %2139 = vmatpush1.bf16.msra.mxu0 %v1689
      %2140 = vmatprep.mubr.bf16.mxu0 %v1071
      %2141 = vmatmul.mubr.bf16.gmra.mrb[0].mxu0 %v1070
      %v2142 = vpop.f32.mrb[0].mxu0
      %v2143 = vadd.f32 %v1982, %v2142
      %v2144 = vpop.f32.mrb[0].mxu0
      %v2145 = vpop.f32.mrb[0].mxu0
      %v2146 = vadd.f32 %v1985, %v2145
      %v2147 = vpop.f32.mrb[0].mxu0
      %2148 = vmatprep.mubr.bf16.mxu0 %v1080
      %2149 = vmatmul.mubr.bf16.gmra.mrb[0].mxu0 %v1079
      %v2150 = vpop.f32.mrb[0].mxu0
      %v2151 = vadd.f32 %v1990, %v2150
      %v2152 = vpop.f32.mrb[0].mxu0
      %v2153 = vpop.f32.mrb[0].mxu0
      %v2154 = vadd.f32 %v1993, %v2153
      %v2155 = vpop.f32.mrb[0].mxu0
      %2156 = vmatprep.mubr.bf16.mxu0 %v1089
      %2157 = vmatmul.mubr.bf16.gmra.mrb[0].mxu0 %v1088
      %v2158 = vpop.f32.mrb[0].mxu0
      %v2159 = vadd.f32 %v1998, %v2158
      %v2160 = vpop.f32.mrb[0].mxu0
      %v2161 = vpop.f32.mrb[0].mxu0
      %v2162 = vadd.f32 %v2001, %v2161
      %v2163 = vpop.f32.mrb[0].mxu0
      %2164 = vmatprep.mubr.bf16.mxu0 %v1098
      %2165 = vmatmul.mubr.bf16.gmra.mrb[0].mxu0 %v1097
      %v2166 = vpop.f32.mrb[0].mxu0
      %v2167 = vadd.f32 %v2006, %v2166
      %v2168 = vpop.f32.mrb[0].mxu0
      %v2169 = vpop.f32.mrb[0].mxu0
      %v2170 = vadd.f32 %v2009, %v2169
      %v2171 = vpop.f32.mrb[0].mxu0
      %2172 = vmatprep.mubr.bf16.mxu0 %v1107
      %2173 = vmatmul.mubr.bf16.gmra.mrb[0].mxu0 %v1106
      %v2174 = vpop.f32.mrb[0].mxu0
      %v2175 = vadd.f32 %v2014, %v2174
      %v2176 = vpop.f32.mrb[0].mxu0
      %v2177 = vpop.f32.mrb[0].mxu0
      %v2178 = vadd.f32 %v2017, %v2177
      %v2179 = vpop.f32.mrb[0].mxu0
      %2180 = vmatprep.mubr.bf16.mxu0 %v1116
      %2181 = vmatmul.mubr.bf16.gmra.mrb[0].mxu0 %v1115
      %v2182 = vpop.f32.mrb[0].mxu0
      %v2183 = vadd.f32 %v2022, %v2182
      %v2184 = vpop.f32.mrb[0].mxu0
      %v2185 = vpop.f32.mrb[0].mxu0
      %v2186 = vadd.f32 %v2025, %v2185
      %v2187 = vpop.f32.mrb[0].mxu0
      %2188 = vmatprep.mubr.bf16.mxu0 %v1125
      %2189 = vmatmul.mubr.bf16.gmra.mrb[0].mxu0 %v1124
      %v2190 = vpop.f32.mrb[0].mxu0
      %v2191 = vadd.f32 %v2030, %v2190
      %v2192 = vpop.f32.mrb[0].mxu0
      %v2193 = vpop.f32.mrb[0].mxu0
      %v2194 = vadd.f32 %v2033, %v2193
      %v2195 = vpop.f32.mrb[0].mxu0
      %2196 = vmatprep.mubr.bf16.mxu0 %v1134
      %2197 = vmatmul.mubr.bf16.gmra.mrb[0].mxu0 %v1133
      %v2198 = vpop.f32.mrb[0].mxu0
      %v2199 = vadd.f32 %v2038, %v2198
      %v2200 = vpop.f32.mrb[0].mxu0
      %v2201 = vpop.f32.mrb[0].mxu0
      %v2202 = vadd.f32 %v2041, %v2201
      %v2203 = vpop.f32.mrb[0].mxu0
      %2204 = vmatprep.mubr.bf16.mxu0 %v1143
      %2205 = vmatmul.mubr.bf16.gmra.mrb[0].mxu0 %v1142
      %v2206 = vpop.f32.mrb[0].mxu0
      %v2207 = vadd.f32 %v2046, %v2206
      %v2208 = vpop.f32.mrb[0].mxu0
      %v2209 = vpop.f32.mrb[0].mxu0
      %v2210 = vadd.f32 %v2049, %v2209
      %v2211 = vpop.f32.mrb[0].mxu0
      %2212 = vmatprep.mubr.bf16.mxu0 %v1152
      %2213 = vmatmul.mubr.bf16.gmra.mrb[0].mxu0 %v1151
      %v2214 = vpop.f32.mrb[0].mxu0
      %v2215 = vadd.f32 %v2054, %v2214
      %v2216 = vpop.f32.mrb[0].mxu0
      %v2217 = vpop.f32.mrb[0].mxu0
      %v2218 = vadd.f32 %v2057, %v2217
      %v2219 = vpop.f32.mrb[0].mxu0
      %2220 = vmatprep.mubr.bf16.mxu0 %v1161
      %2221 = vmatmul.mubr.bf16.gmra.mrb[0].mxu0 %v1160
      %v2222 = vpop.f32.mrb[0].mxu0
      %v2223 = vadd.f32 %v2062, %v2222
      %v2224 = vpop.f32.mrb[0].mxu0
      %v2225 = vpop.f32.mrb[0].mxu0
      %v2226 = vadd.f32 %v2065, %v2225
      %v2227 = vpop.f32.mrb[0].mxu0
      %2228 = vmatprep.mubr.bf16.mxu0 %v1170
      %2229 = vmatmul.mubr.bf16.gmra.mrb[0].mxu0 %v1169
      %v2230 = vpop.f32.mrb[0].mxu0
      %v2231 = vadd.f32 %v2070, %v2230
      %v2232 = vpop.f32.mrb[0].mxu0
      %v2233 = vpop.f32.mrb[0].mxu0
      %v2234 = vadd.f32 %v2073, %v2233
      %v2235 = vpop.f32.mrb[0].mxu0
      %2236 = vmatprep.mubr.bf16.mxu0 %v1179
      %2237 = vmatmul.mubr.bf16.gmra.mrb[0].mxu0 %v1178
      %v2238 = vpop.f32.mrb[0].mxu0
      %v2239 = vadd.f32 %v2078, %v2238
      %v2240 = vpop.f32.mrb[0].mxu0
      %v2241 = vpop.f32.mrb[0].mxu0
      %v2242 = vadd.f32 %v2081, %v2241
      %v2243 = vpop.f32.mrb[0].mxu0
      %2244 = vmatprep.mubr.bf16.mxu0 %v1188
      %2245 = vmatmul.mubr.bf16.gmra.mrb[0].mxu0 %v1187
      %v2246 = vpop.f32.mrb[0].mxu0
      %v2247 = vadd.f32 %v2086, %v2246
      %v2248 = vpop.f32.mrb[0].mxu0
      %v2249 = vpop.f32.mrb[0].mxu0
      %v2250 = vadd.f32 %v2089, %v2249
      %v2251 = vpop.f32.mrb[0].mxu0
      %2252 = vmatprep.mubr.bf16.mxu0 %v1197
      %2253 = vmatmul.mubr.bf16.gmra.mrb[0].mxu0 %v1196
      %v2254 = vpop.f32.mrb[0].mxu0
      %v2255 = vadd.f32 %v2094, %v2254
      %v2256 = vpop.f32.mrb[0].mxu0
      %v2257 = vpop.f32.mrb[0].mxu0
      %v2258 = vadd.f32 %v2097, %v2257
      %v2259 = vpop.f32.mrb[0].mxu0
      %2260 = vmatprep.mubr.bf16.mxu0 %v1206
      %2261 = vmatmul.mubr.bf16.gmra.mrb[0].mxu0 %v1205
      %v2262 = vpop.f32.mrb[0].mxu0
      %v2263 = vadd.f32 %v2102, %v2262
      %v2264 = vpop.f32.mrb[0].mxu0
      %v2265 = vpop.f32.mrb[0].mxu0
      %v2266 = vadd.f32 %v2105, %v2265
      %v2267 = vpop.f32.mrb[0].mxu0
      %2268 = vdwg.mxu0
      %2269 = vmatprep.subr.bf16.mxu0 0
      %2270 = vmatpush1.bf16.msra.mxu0 %v1690
      %2271 = vmatprep.subr.bf16.mxu0 0
      %2272 = vmatpush1.bf16.msra.mxu0 %v1691
      %2273 = vmatprep.subr.bf16.mxu0 0
      %2274 = vmatpush1.bf16.msra.mxu0 %v1692
      %2275 = vmatprep.subr.bf16.mxu0 0
      %2276 = vmatpush1.bf16.msra.mxu0 %v1693
      %2277 = vmatprep.subr.bf16.mxu0 0
      %2278 = vmatpush1.bf16.msra.mxu0 %v1694
      %2279 = vmatprep.subr.bf16.mxu0 0
      %2280 = vmatpush1.bf16.msra.mxu0 %v1695
      %2281 = vmatprep.subr.bf16.mxu0 0
      %2282 = vmatpush1.bf16.msra.mxu0 %v1696
      %2283 = vmatprep.subr.bf16.mxu0 0
      %2284 = vmatpush1.bf16.msra.mxu0 %v1697
      %2285 = vmatprep.subr.bf16.mxu0 0
      %2286 = vmatpush1.bf16.msra.mxu0 %v1698
      %2287 = vmatprep.subr.bf16.mxu0 0
      %2288 = vmatpush1.bf16.msra.mxu0 %v1699
      %2289 = vmatprep.subr.bf16.mxu0 0
      %2290 = vmatpush1.bf16.msra.mxu0 %v1700
      %2291 = vmatprep.subr.bf16.mxu0 0
      %2292 = vmatpush1.bf16.msra.mxu0 %v1701
      %2293 = vmatprep.subr.bf16.mxu0 0
      %2294 = vmatpush1.bf16.msra.mxu0 %v1702
      %2295 = vmatprep.subr.bf16.mxu0 0
      %2296 = vmatpush1.bf16.msra.mxu0 %v1703
      %2297 = vmatprep.subr.bf16.mxu0 0
      %2298 = vmatpush1.bf16.msra.mxu0 %v1704
      %2299 = vmatprep.subr.bf16.mxu0 0
      %2300 = vmatpush1.bf16.msra.mxu0 %v1705
      %2301 = vmatprep.mubr.bf16.mxu0 %v1073
      %2302 = vmatmul.mubr.bf16.gmra.mrb[0].mxu0 %v1072
      %v2303 = vpop.f32.mrb[0].mxu0
      %v2304 = vadd.f32 %v2143, %v2303
      %v2305 = vpop.f32.mrb[0].mxu0
      %v2306 = vpop.f32.mrb[0].mxu0
      %v2307 = vadd.f32 %v2146, %v2306
      %v2308 = vpop.f32.mrb[0].mxu0
      %2309 = vmatprep.mubr.bf16.mxu0 %v1082
      %2310 = vmatmul.mubr.bf16.gmra.mrb[0].mxu0 %v1081
      %v2311 = vpop.f32.mrb[0].mxu0
      %v2312 = vadd.f32 %v2151, %v2311
      %v2313 = vpop.f32.mrb[0].mxu0
      %v2314 = vpop.f32.mrb[0].mxu0
      %v2315 = vadd.f32 %v2154, %v2314
      %v2316 = vpop.f32.mrb[0].mxu0
      %2317 = vmatprep.mubr.bf16.mxu0 %v1091
      %2318 = vmatmul.mubr.bf16.gmra.mrb[0].mxu0 %v1090
      %v2319 = vpop.f32.mrb[0].mxu0
      %v2320 = vadd.f32 %v2159, %v2319
      %v2321 = vpop.f32.mrb[0].mxu0
      %v2322 = vpop.f32.mrb[0].mxu0
      %v2323 = vadd.f32 %v2162, %v2322
      %v2324 = vpop.f32.mrb[0].mxu0
      %2325 = vmatprep.mubr.bf16.mxu0 %v1100
      %2326 = vmatmul.mubr.bf16.gmra.mrb[0].mxu0 %v1099
      %v2327 = vpop.f32.mrb[0].mxu0
      %v2328 = vadd.f32 %v2167, %v2327
      %v2329 = vpop.f32.mrb[0].mxu0
      %v2330 = vpop.f32.mrb[0].mxu0
      %v2331 = vadd.f32 %v2170, %v2330
      %v2332 = vpop.f32.mrb[0].mxu0
      %2333 = vmatprep.mubr.bf16.mxu0 %v1109
      %2334 = vmatmul.mubr.bf16.gmra.mrb[0].mxu0 %v1108
      %v2335 = vpop.f32.mrb[0].mxu0
      %v2336 = vadd.f32 %v2175, %v2335
      %v2337 = vpop.f32.mrb[0].mxu0
      %v2338 = vpop.f32.mrb[0].mxu0
      %v2339 = vadd.f32 %v2178, %v2338
      %v2340 = vpop.f32.mrb[0].mxu0
      %2341 = vmatprep.mubr.bf16.mxu0 %v1118
      %2342 = vmatmul.mubr.bf16.gmra.mrb[0].mxu0 %v1117
      %v2343 = vpop.f32.mrb[0].mxu0
      %v2344 = vadd.f32 %v2183, %v2343
      %v2345 = vpop.f32.mrb[0].mxu0
      %v2346 = vpop.f32.mrb[0].mxu0
      %v2347 = vadd.f32 %v2186, %v2346
      %v2348 = vpop.f32.mrb[0].mxu0
      %2349 = vmatprep.mubr.bf16.mxu0 %v1127
      %2350 = vmatmul.mubr.bf16.gmra.mrb[0].mxu0 %v1126
      %v2351 = vpop.f32.mrb[0].mxu0
      %v2352 = vadd.f32 %v2191, %v2351
      %v2353 = vpop.f32.mrb[0].mxu0
      %v2354 = vpop.f32.mrb[0].mxu0
      %v2355 = vadd.f32 %v2194, %v2354
      %v2356 = vpop.f32.mrb[0].mxu0
      %2357 = vmatprep.mubr.bf16.mxu0 %v1136
      %2358 = vmatmul.mubr.bf16.gmra.mrb[0].mxu0 %v1135
      %v2359 = vpop.f32.mrb[0].mxu0
      %v2360 = vadd.f32 %v2199, %v2359
      %v2361 = vpop.f32.mrb[0].mxu0
      %v2362 = vpop.f32.mrb[0].mxu0
      %v2363 = vadd.f32 %v2202, %v2362
      %v2364 = vpop.f32.mrb[0].mxu0
      %2365 = vmatprep.mubr.bf16.mxu0 %v1145
      %2366 = vmatmul.mubr.bf16.gmra.mrb[0].mxu0 %v1144
      %v2367 = vpop.f32.mrb[0].mxu0
      %v2368 = vadd.f32 %v2207, %v2367
      %v2369 = vpop.f32.mrb[0].mxu0
      %v2370 = vpop.f32.mrb[0].mxu0
      %v2371 = vadd.f32 %v2210, %v2370
      %v2372 = vpop.f32.mrb[0].mxu0
      %2373 = vmatprep.mubr.bf16.mxu0 %v1154
      %2374 = vmatmul.mubr.bf16.gmra.mrb[0].mxu0 %v1153
      %v2375 = vpop.f32.mrb[0].mxu0
      %v2376 = vadd.f32 %v2215, %v2375
      %v2377 = vpop.f32.mrb[0].mxu0
      %v2378 = vpop.f32.mrb[0].mxu0
      %v2379 = vadd.f32 %v2218, %v2378
      %v2380 = vpop.f32.mrb[0].mxu0
      %2381 = vmatprep.mubr.bf16.mxu0 %v1163
      %2382 = vmatmul.mubr.bf16.gmra.mrb[0].mxu0 %v1162
      %v2383 = vpop.f32.mrb[0].mxu0
      %v2384 = vadd.f32 %v2223, %v2383
      %v2385 = vpop.f32.mrb[0].mxu0
      %v2386 = vpop.f32.mrb[0].mxu0
      %v2387 = vadd.f32 %v2226, %v2386
      %v2388 = vpop.f32.mrb[0].mxu0
      %2389 = vmatprep.mubr.bf16.mxu0 %v1172
      %2390 = vmatmul.mubr.bf16.gmra.mrb[0].mxu0 %v1171
      %v2391 = vpop.f32.mrb[0].mxu0
      %v2392 = vadd.f32 %v2231, %v2391
      %v2393 = vpop.f32.mrb[0].mxu0
      %v2394 = vpop.f32.mrb[0].mxu0
      %v2395 = vadd.f32 %v2234, %v2394
      %v2396 = vpop.f32.mrb[0].mxu0
      %2397 = vmatprep.mubr.bf16.mxu0 %v1181
      %2398 = vmatmul.mubr.bf16.gmra.mrb[0].mxu0 %v1180
      %v2399 = vpop.f32.mrb[0].mxu0
      %v2400 = vadd.f32 %v2239, %v2399
      %v2401 = vpop.f32.mrb[0].mxu0
      %v2402 = vpop.f32.mrb[0].mxu0
      %v2403 = vadd.f32 %v2242, %v2402
      %v2404 = vpop.f32.mrb[0].mxu0
      %2405 = vmatprep.mubr.bf16.mxu0 %v1190
      %2406 = vmatmul.mubr.bf16.gmra.mrb[0].mxu0 %v1189
      %v2407 = vpop.f32.mrb[0].mxu0
      %v2408 = vadd.f32 %v2247, %v2407
      %v2409 = vpop.f32.mrb[0].mxu0
      %v2410 = vpop.f32.mrb[0].mxu0
      %v2411 = vadd.f32 %v2250, %v2410
      %v2412 = vpop.f32.mrb[0].mxu0
      %2413 = vmatprep.mubr.bf16.mxu0 %v1199
      %2414 = vmatmul.mubr.bf16.gmra.mrb[0].mxu0 %v1198
      %v2415 = vpop.f32.mrb[0].mxu0
      %v2416 = vadd.f32 %v2255, %v2415
      %v2417 = vpop.f32.mrb[0].mxu0
      %v2418 = vpop.f32.mrb[0].mxu0
      %v2419 = vadd.f32 %v2258, %v2418
      %v2420 = vpop.f32.mrb[0].mxu0
      %2421 = vmatprep.mubr.bf16.mxu0 %v1208
      %2422 = vmatmul.mubr.bf16.gmra.mrb[0].mxu0 %v1207
      %v2423 = vpop.f32.mrb[0].mxu0
      %v2424 = vadd.f32 %v2263, %v2423
      %v2425 = vpop.f32.mrb[0].mxu0
      %v2426 = vpop.f32.mrb[0].mxu0
      %v2427 = vadd.f32 %v2266, %v2426
      %v2428 = vpop.f32.mrb[0].mxu0
      %2429 = vdwg.mxu0
      %2430 = vmatprep.subr.bf16.mxu0 0
      %2431 = vmatpush1.bf16.msra.mxu0 %v1706
      %2432 = vmatprep.subr.bf16.mxu0 0
      %2433 = vmatpush1.bf16.msra.mxu0 %v1707
      %2434 = vmatprep.subr.bf16.mxu0 0
      %2435 = vmatpush1.bf16.msra.mxu0 %v1708
      %2436 = vmatprep.subr.bf16.mxu0 0
      %2437 = vmatpush1.bf16.msra.mxu0 %v1709
      %2438 = vmatprep.subr.bf16.mxu0 0
      %2439 = vmatpush1.bf16.msra.mxu0 %v1710
      %2440 = vmatprep.subr.bf16.mxu0 0
      %2441 = vmatpush1.bf16.msra.mxu0 %v1711
      %2442 = vmatprep.subr.bf16.mxu0 0
      %2443 = vmatpush1.bf16.msra.mxu0 %v1712
      %2444 = vmatprep.subr.bf16.mxu0 0
      %2445 = vmatpush1.bf16.msra.mxu0 %v1713
      %2446 = vmatprep.subr.bf16.mxu0 0
      %2447 = vmatpush1.bf16.msra.mxu0 0
      %2448 = vmatprep.subr.bf16.mxu0 0
      %2449 = vmatpush1.bf16.msra.mxu0 0
      %2450 = vmatprep.subr.bf16.mxu0 0
      %2451 = vmatpush1.bf16.msra.mxu0 0
      %2452 = vmatprep.subr.bf16.mxu0 0
      %2453 = vmatpush1.bf16.msra.mxu0 0
      %2454 = vmatprep.subr.bf16.mxu0 0
      %2455 = vmatpush1.bf16.msra.mxu0 0
      %2456 = vmatprep.subr.bf16.mxu0 0
      %2457 = vmatpush1.bf16.msra.mxu0 0
      %2458 = vmatprep.subr.bf16.mxu0 0
      %2459 = vmatpush1.bf16.msra.mxu0 0
      %2460 = vmatprep.subr.bf16.mxu0 0
      %2461 = vmatpush1.bf16.msra.mxu0 0
      %2462 = vmatprep.mubr.bf16.mxu0 0
      %2463 = vmatmul.mubr.bf16.gmra.mrb[0].mxu0 %v1074
      %v2464 = vpop.f32.mrb[0].mxu0
      %v2465 = vadd.f32 %v2304, %v2464
      %v2466 = vpop.f32.mrb[0].mxu0
      %v2467 = vpop.f32.mrb[0].mxu0
      %v2468 = vadd.f32 %v2307, %v2467
      %v2469 = vpop.f32.mrb[0].mxu0
      %2470 = vmatprep.mubr.bf16.mxu0 0
      %2471 = vmatmul.mubr.bf16.gmra.mrb[0].mxu0 %v1083
      %v2472 = vpop.f32.mrb[0].mxu0
      %v2473 = vadd.f32 %v2312, %v2472
      %v2474 = vpop.f32.mrb[0].mxu0
      %v2475 = vpop.f32.mrb[0].mxu0
      %v2476 = vadd.f32 %v2315, %v2475
      %v2477 = vpop.f32.mrb[0].mxu0
      %2478 = vmatprep.mubr.bf16.mxu0 0
      %2479 = vmatmul.mubr.bf16.gmra.mrb[0].mxu0 %v1092
      %v2480 = vpop.f32.mrb[0].mxu0
      %v2481 = vadd.f32 %v2320, %v2480
      %v2482 = vpop.f32.mrb[0].mxu0
      %v2483 = vpop.f32.mrb[0].mxu0
      %v2484 = vadd.f32 %v2323, %v2483
      %v2485 = vpop.f32.mrb[0].mxu0
      %2486 = vmatprep.mubr.bf16.mxu0 0
      %2487 = vmatmul.mubr.bf16.gmra.mrb[0].mxu0 %v1101
      %v2488 = vpop.f32.mrb[0].mxu0
      %v2489 = vadd.f32 %v2328, %v2488
      %v2490 = vpop.f32.mrb[0].mxu0
      %v2491 = vpop.f32.mrb[0].mxu0
      %v2492 = vadd.f32 %v2331, %v2491
      %v2493 = vpop.f32.mrb[0].mxu0
      %2494 = vmatprep.mubr.bf16.mxu0 0
      %2495 = vmatmul.mubr.bf16.gmra.mrb[0].mxu0 %v1110
      %v2496 = vpop.f32.mrb[0].mxu0
      %v2497 = vadd.f32 %v2336, %v2496
      %v2498 = vpop.f32.mrb[0].mxu0
      %v2499 = vpop.f32.mrb[0].mxu0
      %v2500 = vadd.f32 %v2339, %v2499
      %v2501 = vpop.f32.mrb[0].mxu0
      %2502 = vmatprep.mubr.bf16.mxu0 0
      %2503 = vmatmul.mubr.bf16.gmra.mrb[0].mxu0 %v1119
      %v2504 = vpop.f32.mrb[0].mxu0
      %v2505 = vadd.f32 %v2344, %v2504
      %v2506 = vpop.f32.mrb[0].mxu0
      %v2507 = vpop.f32.mrb[0].mxu0
      %v2508 = vadd.f32 %v2347, %v2507
      %v2509 = vpop.f32.mrb[0].mxu0
      %2510 = vmatprep.mubr.bf16.mxu0 0
      %2511 = vmatmul.mubr.bf16.gmra.mrb[0].mxu0 %v1128
      %v2512 = vpop.f32.mrb[0].mxu0
      %v2513 = vadd.f32 %v2352, %v2512
      %v2514 = vpop.f32.mrb[0].mxu0
      %v2515 = vpop.f32.mrb[0].mxu0
      %v2516 = vadd.f32 %v2355, %v2515
      %v2517 = vpop.f32.mrb[0].mxu0
      %2518 = vmatprep.mubr.bf16.mxu0 0
      %2519 = vmatmul.mubr.bf16.gmra.mrb[0].mxu0 %v1137
      %v2520 = vpop.f32.mrb[0].mxu0
      %v2521 = vadd.f32 %v2360, %v2520
      %v2522 = vpop.f32.mrb[0].mxu0
      %v2523 = vpop.f32.mrb[0].mxu0
      %v2524 = vadd.f32 %v2363, %v2523
      %v2525 = vpop.f32.mrb[0].mxu0
      %2526 = vmatprep.mubr.bf16.mxu0 0
      %2527 = vmatmul.mubr.bf16.gmra.mrb[0].mxu0 %v1146
      %v2528 = vpop.f32.mrb[0].mxu0
      %v2529 = vadd.f32 %v2368, %v2528
      %v2530 = vpop.f32.mrb[0].mxu0
      %v2531 = vpop.f32.mrb[0].mxu0
      %v2532 = vadd.f32 %v2371, %v2531
      %v2533 = vpop.f32.mrb[0].mxu0
      %2534 = vmatprep.mubr.bf16.mxu0 0
      %2535 = vmatmul.mubr.bf16.gmra.mrb[0].mxu0 %v1155
      %v2536 = vpop.f32.mrb[0].mxu0
      %v2537 = vadd.f32 %v2376, %v2536
      %v2538 = vpop.f32.mrb[0].mxu0
      %v2539 = vpop.f32.mrb[0].mxu0
      %v2540 = vadd.f32 %v2379, %v2539
      %v2541 = vpop.f32.mrb[0].mxu0
      %2542 = vmatprep.mubr.bf16.mxu0 0
      %2543 = vmatmul.mubr.bf16.gmra.mrb[0].mxu0 %v1164
      %v2544 = vpop.f32.mrb[0].mxu0
      %v2545 = vadd.f32 %v2384, %v2544
      %v2546 = vpop.f32.mrb[0].mxu0
      %v2547 = vpop.f32.mrb[0].mxu0
      %v2548 = vadd.f32 %v2387, %v2547
      %v2549 = vpop.f32.mrb[0].mxu0
      %2550 = vmatprep.mubr.bf16.mxu0 0
      %2551 = vmatmul.mubr.bf16.gmra.mrb[0].mxu0 %v1173
      %v2552 = vpop.f32.mrb[0].mxu0
      %v2553 = vadd.f32 %v2392, %v2552
      %v2554 = vpop.f32.mrb[0].mxu0
      %v2555 = vpop.f32.mrb[0].mxu0
      %v2556 = vadd.f32 %v2395, %v2555
      %v2557 = vpop.f32.mrb[0].mxu0
      %2558 = vmatprep.mubr.bf16.mxu0 0
      %2559 = vmatmul.mubr.bf16.gmra.mrb[0].mxu0 %v1182
      %v2560 = vpop.f32.mrb[0].mxu0
      %v2561 = vadd.f32 %v2400, %v2560
      %v2562 = vpop.f32.mrb[0].mxu0
      %v2563 = vpop.f32.mrb[0].mxu0
      %v2564 = vadd.f32 %v2403, %v2563
      %v2565 = vpop.f32.mrb[0].mxu0
      %2566 = vmatprep.mubr.bf16.mxu0 0
      %2567 = vmatmul.mubr.bf16.gmra.mrb[0].mxu0 %v1191
      %v2568 = vpop.f32.mrb[0].mxu0
      %v2569 = vadd.f32 %v2408, %v2568
      %v2570 = vpop.f32.mrb[0].mxu0
      %v2571 = vpop.f32.mrb[0].mxu0
      %v2572 = vadd.f32 %v2411, %v2571
      %v2573 = vpop.f32.mrb[0].mxu0
      %2574 = vmatprep.mubr.bf16.mxu0 0
      %2575 = vmatmul.mubr.bf16.gmra.mrb[0].mxu0 %v1200
      %v2576 = vpop.f32.mrb[0].mxu0
      %v2577 = vadd.f32 %v2416, %v2576
      %v2578 = vpop.f32.mrb[0].mxu0
      %v2579 = vpop.f32.mrb[0].mxu0
      %v2580 = vadd.f32 %v2419, %v2579
      %v2581 = vpop.f32.mrb[0].mxu0
      %2582 = vmatprep.mubr.bf16.mxu0 0
      %2583 = vmatmul.mubr.bf16.gmra.mrb[0].mxu0 %v1209
      %v2584 = vpop.f32.mrb[0].mxu0
      %v2585 = vadd.f32 %v2424, %v2584
      %v2586 = vpop.f32.mrb[0].mxu0
      %v2587 = vpop.f32.mrb[0].mxu0
      %v2588 = vadd.f32 %v2427, %v2587
      %v2589 = vpop.f32.mrb[0].mxu0
      %2590 = vdwg.mxu0
      %v2591 = vmax.f32 %v2465, 0.0
      %v2592 = vmax.f32 %v2468, 0.0
      %v2593 = vmax.f32 %v2473, 0.0
      %v2594 = vmax.f32 %v2476, 0.0
      %v2595 = vmax.f32 %v2481, 0.0
      %v2596 = vmax.f32 %v2484, 0.0
      %v2597 = vmax.f32 %v2489, 0.0
      %v2598 = vmax.f32 %v2492, 0.0
      %v2599 = vmax.f32 %v2497, 0.0
      %v2600 = vmax.f32 %v2500, 0.0
      %v2601 = vmax.f32 %v2505, 0.0
      %v2602 = vmax.f32 %v2508, 0.0
      %v2603 = vmax.f32 %v2513, 0.0
      %v2604 = vmax.f32 %v2516, 0.0
      %v2605 = vmax.f32 %v2521, 0.0
      %v2606 = vmax.f32 %v2524, 0.0
      %v2607 = vmax.f32 %v2529, 0.0
      %v2608 = vmax.f32 %v2532, 0.0
      %v2609 = vmax.f32 %v2537, 0.0
      %v2610 = vmax.f32 %v2540, 0.0
      %v2611 = vmax.f32 %v2545, 0.0
      %v2612 = vmax.f32 %v2548, 0.0
      %v2613 = vmax.f32 %v2553, 0.0
      %v2614 = vmax.f32 %v2556, 0.0
      %v2615 = vmax.f32 %v2561, 0.0
      %v2616 = vmax.f32 %v2564, 0.0
      %v2617 = vmax.f32 %v2569, 0.0
      %v2618 = vmax.f32 %v2572, 0.0
      %v2619 = vmax.f32 %v2577, 0.0
      %v2620 = vmax.f32 %v2580, 0.0
      %v2621 = vmax.f32 %v2585, 0.0
      %v2622 = vmax.f32 %v2588, 0.0
      %v2623 = vpack.c.bf16 %v2592, %v2591
      %v2624 = vpack.c.bf16 %v2594, %v2593
      %v2625 = vpack.c.bf16 %v2596, %v2595
      %v2626 = vpack.c.bf16 %v2598, %v2597
      %v2627 = vpack.c.bf16 %v2600, %v2599
      %v2628 = vpack.c.bf16 %v2602, %v2601
      %v2629 = vpack.c.bf16 %v2604, %v2603
      %v2630 = vpack.c.bf16 %v2606, %v2605
      %v2631 = vpack.c.bf16 %v2608, %v2607
      %v2632 = vpack.c.bf16 %v2610, %v2609
      %v2633 = vpack.c.bf16 %v2612, %v2611
      %v2634 = vpack.c.bf16 %v2614, %v2613
      %v2635 = vpack.c.bf16 %v2616, %v2615
      %v2636 = vpack.c.bf16 %v2618, %v2617
      %v2637 = vpack.c.bf16 %v2620, %v2619
      %v2638 = vpack.c.bf16 %v2622, %v2621
      %v2639 = vld [vmem:[%s3] sm:$0xff]
      %v2640 = vld [vmem:[%s3 + $0x8] sm:$0xff]
      %v2641 = vld [vmem:[%s3 + $0x10] sm:$0xff]
      %v2642 = vld [vmem:[%s3 + $0x18] sm:$0xff]
      %v2643 = vld [vmem:[%s3 + $0x20] sm:$0xff]
      %v2644 = vld [vmem:[%s3 + $0x28] sm:$0xff]
      %v2645 = vld [vmem:[%s3 + $0x30] sm:$0xff]
      %v2646 = vld [vmem:[%s3 + $0x38] sm:$0xff]
      %v2647 = vld [vmem:[%s4] sm:$0x3]
      %v2649 = vlaneseq
      %v2650 = vshrl.u32 %v2649, 7
      %v2651 = vsub.s32 0, %v2650
      %v2652 = vrot.slane %v2647, %v2651
      %v2653 = vlaneseq
      %v2654 = vshrl.u32 %v2653, 7
      %v2655 = vsub.s32 1, %v2654
      %v2656 = vrot.slane %v2647, %v2655
      %v2667 = vunpack.c.l.b16 %v2639
      %v2668 = vunpack.c.h.b16 %v2639
      %v2669 = vunpack.c.l.b16 %v2640
      %v2670 = vunpack.c.h.b16 %v2640
      %v2671 = vunpack.c.l.b16 %v2641
      %v2672 = vunpack.c.h.b16 %v2641
      %v2673 = vunpack.c.l.b16 %v2642
      %v2674 = vunpack.c.h.b16 %v2642
      %v2675 = vunpack.c.l.b16 %v2643
      %v2676 = vunpack.c.h.b16 %v2643
      %v2677 = vunpack.c.l.b16 %v2644
      %v2678 = vunpack.c.h.b16 %v2644
      %v2679 = vunpack.c.l.b16 %v2645
      %v2680 = vunpack.c.h.b16 %v2645
      %v2681 = vunpack.c.l.b16 %v2646
      %v2682 = vunpack.c.h.b16 %v2646
      %v2683 = vpack.c.b16 %v2669, %v2667
      %v2684 = vpack.c.b16 %v2670, %v2668
      %v2685 = vpack.c.b16 %v2673, %v2671
      %v2686 = vpack.c.b16 %v2674, %v2672
      %v2687 = vpack.c.b16 %v2677, %v2675
      %v2688 = vpack.c.b16 %v2678, %v2676
      %v2689 = vpack.c.b16 %v2681, %v2679
      %v2690 = vpack.c.b16 %v2682, %v2680
      %vm2699 = vcmask 523264
      %v2701 = vsel %vm2699, %v2623, 0
      %v2704 = vsel %vm2699, %v2624, 0
      %v2707 = vsel %vm2699, %v2625, 0
      %v2710 = vsel %vm2699, %v2626, 0
      %v2713 = vsel %vm2699, %v2627, 0
      %v2716 = vsel %vm2699, %v2628, 0
      %v2719 = vsel %vm2699, %v2629, 0
      %v2722 = vsel %vm2699, %v2630, 0
      %v2725 = vsel %vm2699, %v2631, 0
      %v2728 = vsel %vm2699, %v2632, 0
      %v2731 = vsel %vm2699, %v2633, 0
      %v2734 = vsel %vm2699, %v2634, 0
      %v2737 = vsel %vm2699, %v2635, 0
      %v2740 = vsel %vm2699, %v2636, 0
      %v2743 = vsel %vm2699, %v2637, 0
      %v2746 = vsel %vm2699, %v2638, 0
      %2748 = vmatprep.subr.bf16.mxu0 %v2684
      %2749 = vmatpush1.bf16.msra.mxu0 %v2683
      %2750 = vmatprep.subr.bf16.mxu0 %v2686
      %2751 = vmatpush1.bf16.msra.mxu0 %v2685
      %2752 = vmatprep.subr.bf16.mxu0 %v2688
      %2753 = vmatpush1.bf16.msra.mxu0 %v2687
      %2754 = vmatprep.subr.bf16.mxu0 %v2690
      %2755 = vmatpush1.bf16.msra.mxu0 %v2689
      %2756 = vmatprep.subr.bf16.mxu0 0
      %2757 = vmatpush1.bf16.msra.mxu0 0
      %2758 = vmatprep.subr.bf16.mxu0 0
      %2759 = vmatpush1.bf16.msra.mxu0 0
      %2760 = vmatprep.subr.bf16.mxu0 0
      %2761 = vmatpush1.bf16.msra.mxu0 0
      %2762 = vmatprep.subr.bf16.mxu0 0
      %2763 = vmatpush1.bf16.msra.mxu0 0
      %2764 = vmatprep.subr.bf16.mxu0 0
      %2765 = vmatpush1.bf16.msra.mxu0 0
      %2766 = vmatprep.subr.bf16.mxu0 0
      %2767 = vmatpush1.bf16.msra.mxu0 0
      %2768 = vmatprep.subr.bf16.mxu0 0
      %2769 = vmatpush1.bf16.msra.mxu0 0
      %2770 = vmatprep.subr.bf16.mxu0 0
      %2771 = vmatpush1.bf16.msra.mxu0 0
      %2772 = vmatprep.subr.bf16.mxu0 0
      %2773 = vmatpush1.bf16.msra.mxu0 0
      %2774 = vmatprep.subr.bf16.mxu0 0
      %2775 = vmatpush1.bf16.msra.mxu0 0
      %2776 = vmatprep.subr.bf16.mxu0 0
      %2777 = vmatpush1.bf16.msra.mxu0 0
      %2778 = vmatprep.subr.bf16.mxu0 0
      %2779 = vmatpush1.bf16.msra.mxu0 0
      %2780 = vmatprep.mubr.bf16.mxu0 0
      %2781 = vmatmul.mubr.bf16.gmra.mrb[0].mxu0 %v2701
      %v2782 = vpop.f32.mrb[0].mxu0
      %v2783 = vadd.f32 %v2652, %v2782
      %v2784 = vpop.f32.mrb[0].mxu0
      %v2785 = vadd.f32 %v2656, %v2784
      %v2786 = vpop.f32.mrb[0].mxu0
      %v2787 = vadd.f32 %v2652, %v2786
      %v2788 = vpop.f32.mrb[0].mxu0
      %v2789 = vadd.f32 %v2656, %v2788
      %2790 = vmatprep.mubr.bf16.mxu0 0
      %2791 = vmatmul.mubr.bf16.gmra.mrb[0].mxu0 %v2704
      %v2792 = vpop.f32.mrb[0].mxu0
      %v2793 = vadd.f32 %v2652, %v2792
      %v2794 = vpop.f32.mrb[0].mxu0
      %v2795 = vadd.f32 %v2656, %v2794
      %v2796 = vpop.f32.mrb[0].mxu0
      %v2797 = vadd.f32 %v2652, %v2796
      %v2798 = vpop.f32.mrb[0].mxu0
      %v2799 = vadd.f32 %v2656, %v2798
      %2800 = vmatprep.mubr.bf16.mxu0 0
      %2801 = vmatmul.mubr.bf16.gmra.mrb[0].mxu0 %v2707
      %v2802 = vpop.f32.mrb[0].mxu0
      %v2803 = vadd.f32 %v2652, %v2802
      %v2804 = vpop.f32.mrb[0].mxu0
      %v2805 = vadd.f32 %v2656, %v2804
      %v2806 = vpop.f32.mrb[0].mxu0
      %v2807 = vadd.f32 %v2652, %v2806
      %v2808 = vpop.f32.mrb[0].mxu0
      %v2809 = vadd.f32 %v2656, %v2808
      %2810 = vmatprep.mubr.bf16.mxu0 0
      %2811 = vmatmul.mubr.bf16.gmra.mrb[0].mxu0 %v2710
      %v2812 = vpop.f32.mrb[0].mxu0
      %v2813 = vadd.f32 %v2652, %v2812
      %v2814 = vpop.f32.mrb[0].mxu0
      %v2815 = vadd.f32 %v2656, %v2814
      %v2816 = vpop.f32.mrb[0].mxu0
      %v2817 = vadd.f32 %v2652, %v2816
      %v2818 = vpop.f32.mrb[0].mxu0
      %v2819 = vadd.f32 %v2656, %v2818
      %2820 = vmatprep.mubr.bf16.mxu0 0
      %2821 = vmatmul.mubr.bf16.gmra.mrb[0].mxu0 %v2713
      %v2822 = vpop.f32.mrb[0].mxu0
      %v2823 = vadd.f32 %v2652, %v2822
      %v2824 = vpop.f32.mrb[0].mxu0
      %v2825 = vadd.f32 %v2656, %v2824
      %v2826 = vpop.f32.mrb[0].mxu0
      %v2827 = vadd.f32 %v2652, %v2826
      %v2828 = vpop.f32.mrb[0].mxu0
      %v2829 = vadd.f32 %v2656, %v2828
      %2830 = vmatprep.mubr.bf16.mxu0 0
      %2831 = vmatmul.mubr.bf16.gmra.mrb[0].mxu0 %v2716
      %v2832 = vpop.f32.mrb[0].mxu0
      %v2833 = vadd.f32 %v2652, %v2832
      %v2834 = vpop.f32.mrb[0].mxu0
      %v2835 = vadd.f32 %v2656, %v2834
      %v2836 = vpop.f32.mrb[0].mxu0
      %v2837 = vadd.f32 %v2652, %v2836
      %v2838 = vpop.f32.mrb[0].mxu0
      %v2839 = vadd.f32 %v2656, %v2838
      %2840 = vmatprep.mubr.bf16.mxu0 0
      %2841 = vmatmul.mubr.bf16.gmra.mrb[0].mxu0 %v2719
      %v2842 = vpop.f32.mrb[0].mxu0
      %v2843 = vadd.f32 %v2652, %v2842
      %v2844 = vpop.f32.mrb[0].mxu0
      %v2845 = vadd.f32 %v2656, %v2844
      %v2846 = vpop.f32.mrb[0].mxu0
      %v2847 = vadd.f32 %v2652, %v2846
      %v2848 = vpop.f32.mrb[0].mxu0
      %v2849 = vadd.f32 %v2656, %v2848
      %2850 = vmatprep.mubr.bf16.mxu0 0
      %2851 = vmatmul.mubr.bf16.gmra.mrb[0].mxu0 %v2722
      %v2852 = vpop.f32.mrb[0].mxu0
      %v2853 = vadd.f32 %v2652, %v2852
      %v2854 = vpop.f32.mrb[0].mxu0
      %v2855 = vadd.f32 %v2656, %v2854
      %v2856 = vpop.f32.mrb[0].mxu0
      %v2857 = vadd.f32 %v2652, %v2856
      %v2858 = vpop.f32.mrb[0].mxu0
      %v2859 = vadd.f32 %v2656, %v2858
      %2860 = vmatprep.mubr.bf16.mxu0 0
      %2861 = vmatmul.mubr.bf16.gmra.mrb[0].mxu0 %v2725
      %v2862 = vpop.f32.mrb[0].mxu0
      %v2863 = vadd.f32 %v2652, %v2862
      %v2864 = vpop.f32.mrb[0].mxu0
      %v2865 = vadd.f32 %v2656, %v2864
      %v2866 = vpop.f32.mrb[0].mxu0
      %v2867 = vadd.f32 %v2652, %v2866
      %v2868 = vpop.f32.mrb[0].mxu0
      %v2869 = vadd.f32 %v2656, %v2868
      %2870 = vmatprep.mubr.bf16.mxu0 0
      %2871 = vmatmul.mubr.bf16.gmra.mrb[0].mxu0 %v2728
      %v2872 = vpop.f32.mrb[0].mxu0
      %v2873 = vadd.f32 %v2652, %v2872
      %v2874 = vpop.f32.mrb[0].mxu0
      %v2875 = vadd.f32 %v2656, %v2874
      %v2876 = vpop.f32.mrb[0].mxu0
      %v2877 = vadd.f32 %v2652, %v2876
      %v2878 = vpop.f32.mrb[0].mxu0
      %v2879 = vadd.f32 %v2656, %v2878
      %2880 = vmatprep.mubr.bf16.mxu0 0
      %2881 = vmatmul.mubr.bf16.gmra.mrb[0].mxu0 %v2731
      %v2882 = vpop.f32.mrb[0].mxu0
      %v2883 = vadd.f32 %v2652, %v2882
      %v2884 = vpop.f32.mrb[0].mxu0
      %v2885 = vadd.f32 %v2656, %v2884
      %v2886 = vpop.f32.mrb[0].mxu0
      %v2887 = vadd.f32 %v2652, %v2886
      %v2888 = vpop.f32.mrb[0].mxu0
      %v2889 = vadd.f32 %v2656, %v2888
      %2890 = vmatprep.mubr.bf16.mxu0 0
      %2891 = vmatmul.mubr.bf16.gmra.mrb[0].mxu0 %v2734
      %v2892 = vpop.f32.mrb[0].mxu0
      %v2893 = vadd.f32 %v2652, %v2892
      %v2894 = vpop.f32.mrb[0].mxu0
      %v2895 = vadd.f32 %v2656, %v2894
      %v2896 = vpop.f32.mrb[0].mxu0
      %v2897 = vadd.f32 %v2652, %v2896
      %v2898 = vpop.f32.mrb[0].mxu0
      %v2899 = vadd.f32 %v2656, %v2898
      %2900 = vmatprep.mubr.bf16.mxu0 0
      %2901 = vmatmul.mubr.bf16.gmra.mrb[0].mxu0 %v2737
      %v2902 = vpop.f32.mrb[0].mxu0
      %v2903 = vadd.f32 %v2652, %v2902
      %v2904 = vpop.f32.mrb[0].mxu0
      %v2905 = vadd.f32 %v2656, %v2904
      %v2906 = vpop.f32.mrb[0].mxu0
      %v2907 = vadd.f32 %v2652, %v2906
      %v2908 = vpop.f32.mrb[0].mxu0
      %v2909 = vadd.f32 %v2656, %v2908
      %2910 = vmatprep.mubr.bf16.mxu0 0
      %2911 = vmatmul.mubr.bf16.gmra.mrb[0].mxu0 %v2740
      %v2912 = vpop.f32.mrb[0].mxu0
      %v2913 = vadd.f32 %v2652, %v2912
      %v2914 = vpop.f32.mrb[0].mxu0
      %v2915 = vadd.f32 %v2656, %v2914
      %v2916 = vpop.f32.mrb[0].mxu0
      %v2917 = vadd.f32 %v2652, %v2916
      %v2918 = vpop.f32.mrb[0].mxu0
      %v2919 = vadd.f32 %v2656, %v2918
      %2920 = vmatprep.mubr.bf16.mxu0 0
      %2921 = vmatmul.mubr.bf16.gmra.mrb[0].mxu0 %v2743
      %v2922 = vpop.f32.mrb[0].mxu0
      %v2923 = vadd.f32 %v2652, %v2922
      %v2924 = vpop.f32.mrb[0].mxu0
      %v2925 = vadd.f32 %v2656, %v2924
      %v2926 = vpop.f32.mrb[0].mxu0
      %v2927 = vadd.f32 %v2652, %v2926
      %v2928 = vpop.f32.mrb[0].mxu0
      %v2929 = vadd.f32 %v2656, %v2928
      %2930 = vmatprep.mubr.bf16.mxu0 0
      %2931 = vmatmul.mubr.bf16.gmra.mrb[0].mxu0 %v2746
      %v2932 = vpop.f32.mrb[0].mxu0
      %v2933 = vadd.f32 %v2652, %v2932
      %v2934 = vpop.f32.mrb[0].mxu0
      %v2935 = vadd.f32 %v2656, %v2934
      %v2936 = vpop.f32.mrb[0].mxu0
      %v2937 = vadd.f32 %v2652, %v2936
      %v2938 = vpop.f32.mrb[0].mxu0
      %v2939 = vadd.f32 %v2656, %v2938
      %2940 = vdwg.mxu0
      %v2941 = vmax.f32 %v2783, 0.0
      %v2942 = vmax.f32 %v2785, 0.0
      %v2943 = vmax.f32 %v2787, 0.0
      %v2944 = vmax.f32 %v2789, 0.0
      %v2945 = vmax.f32 %v2793, 0.0
      %v2946 = vmax.f32 %v2795, 0.0
      %v2947 = vmax.f32 %v2797, 0.0
      %v2948 = vmax.f32 %v2799, 0.0
      %v2949 = vmax.f32 %v2803, 0.0
      %v2950 = vmax.f32 %v2805, 0.0
      %v2951 = vmax.f32 %v2807, 0.0
      %v2952 = vmax.f32 %v2809, 0.0
      %v2953 = vmax.f32 %v2813, 0.0
      %v2954 = vmax.f32 %v2815, 0.0
      %v2955 = vmax.f32 %v2817, 0.0
      %v2956 = vmax.f32 %v2819, 0.0
      %v2957 = vmax.f32 %v2823, 0.0
      %v2958 = vmax.f32 %v2825, 0.0
      %v2959 = vmax.f32 %v2827, 0.0
      %v2960 = vmax.f32 %v2829, 0.0
      %v2961 = vmax.f32 %v2833, 0.0
      %v2962 = vmax.f32 %v2835, 0.0
      %v2963 = vmax.f32 %v2837, 0.0
      %v2964 = vmax.f32 %v2839, 0.0
      %v2965 = vmax.f32 %v2843, 0.0
      %v2966 = vmax.f32 %v2845, 0.0
      %v2967 = vmax.f32 %v2847, 0.0
      %v2968 = vmax.f32 %v2849, 0.0
      %v2969 = vmax.f32 %v2853, 0.0
      %v2970 = vmax.f32 %v2855, 0.0
      %v2971 = vmax.f32 %v2857, 0.0
      %v2972 = vmax.f32 %v2859, 0.0
      %v2973 = vmax.f32 %v2863, 0.0
      %v2974 = vmax.f32 %v2865, 0.0
      %v2975 = vmax.f32 %v2867, 0.0
      %v2976 = vmax.f32 %v2869, 0.0
      %v2977 = vmax.f32 %v2873, 0.0
      %v2978 = vmax.f32 %v2875, 0.0
      %v2979 = vmax.f32 %v2877, 0.0
      %v2980 = vmax.f32 %v2879, 0.0
      %v2981 = vmax.f32 %v2883, 0.0
      %v2982 = vmax.f32 %v2885, 0.0
      %v2983 = vmax.f32 %v2887, 0.0
      %v2984 = vmax.f32 %v2889, 0.0
      %v2985 = vmax.f32 %v2893, 0.0
      %v2986 = vmax.f32 %v2895, 0.0
      %v2987 = vmax.f32 %v2897, 0.0
      %v2988 = vmax.f32 %v2899, 0.0
      %v2989 = vmax.f32 %v2903, 0.0
      %v2990 = vmax.f32 %v2905, 0.0
      %v2991 = vmax.f32 %v2907, 0.0
      %v2992 = vmax.f32 %v2909, 0.0
      %v2993 = vmax.f32 %v2913, 0.0
      %v2994 = vmax.f32 %v2915, 0.0
      %v2995 = vmax.f32 %v2917, 0.0
      %v2996 = vmax.f32 %v2919, 0.0
      %v2997 = vmax.f32 %v2923, 0.0
      %v2998 = vmax.f32 %v2925, 0.0
      %v2999 = vmax.f32 %v2927, 0.0
      %v3000 = vmax.f32 %v2929, 0.0
      %v3001 = vmax.f32 %v2933, 0.0
      %v3002 = vmax.f32 %v2935, 0.0
      %v3003 = vmax.f32 %v2937, 0.0
      %v3004 = vmax.f32 %v2939, 0.0
      %v3005 = vpack.c.bf16 %v2943, %v2941
      %v3006 = vpack.c.bf16 %v2944, %v2942
      %v3007 = vpack.c.bf16 %v2947, %v2945
      %v3008 = vpack.c.bf16 %v2948, %v2946
      %v3009 = vpack.c.bf16 %v2951, %v2949
      %v3010 = vpack.c.bf16 %v2952, %v2950
      %v3011 = vpack.c.bf16 %v2955, %v2953
      %v3012 = vpack.c.bf16 %v2956, %v2954
      %v3013 = vpack.c.bf16 %v2959, %v2957
      %v3014 = vpack.c.bf16 %v2960, %v2958
      %v3015 = vpack.c.bf16 %v2963, %v2961
      %v3016 = vpack.c.bf16 %v2964, %v2962
      %v3017 = vpack.c.bf16 %v2967, %v2965
      %v3018 = vpack.c.bf16 %v2968, %v2966
      %v3019 = vpack.c.bf16 %v2971, %v2969
      %v3020 = vpack.c.bf16 %v2972, %v2970
      %v3021 = vpack.c.bf16 %v2975, %v2973
      %v3022 = vpack.c.bf16 %v2976, %v2974
      %v3023 = vpack.c.bf16 %v2979, %v2977
      %v3024 = vpack.c.bf16 %v2980, %v2978
      %v3025 = vpack.c.bf16 %v2983, %v2981
      %v3026 = vpack.c.bf16 %v2984, %v2982
      %v3027 = vpack.c.bf16 %v2987, %v2985
      %v3028 = vpack.c.bf16 %v2988, %v2986
      %v3029 = vpack.c.bf16 %v2991, %v2989
      %v3030 = vpack.c.bf16 %v2992, %v2990
      %v3031 = vpack.c.bf16 %v2995, %v2993
      %v3032 = vpack.c.bf16 %v2996, %v2994
      %v3033 = vpack.c.bf16 %v2999, %v2997
      %v3034 = vpack.c.bf16 %v3000, %v2998
      %v3035 = vpack.c.bf16 %v3003, %v3001
      %v3036 = vpack.c.bf16 %v3004, %v3002
      %v3037 = vld [vmem:[%s5] sm:$0xff]
      %v3038 = vld [vmem:[%s5 + $0x8] sm:$0xff]
      %v3039 = vld [vmem:[%s5 + $0x10] sm:$0xff]
      %v3040 = vld [vmem:[%s5 + $0x18] sm:$0xff]
      %v3041 = vld [vmem:[%s5 + $0x20] sm:$0xff]
      %v3042 = vld [vmem:[%s5 + $0x28] sm:$0xff]
      %v3043 = vld [vmem:[%s5 + $0x30] sm:$0xff]
      %v3044 = vld [vmem:[%s5 + $0x38] sm:$0xff]
      %v3045 = vld [vmem:[%s5 + $0x40] sm:$0xff]
      %v3046 = vld [vmem:[%s5 + $0x48] sm:$0xff]
      %v3047 = vld [vmem:[%s5 + $0x50] sm:$0xff]
      %v3048 = vld [vmem:[%s5 + $0x58] sm:$0xff]
      %v3049 = vld [vmem:[%s5 + $0x60] sm:$0xff]
      %v3050 = vld [vmem:[%s5 + $0x68] sm:$0xff]
      %v3051 = vld [vmem:[%s5 + $0x70] sm:$0xff]
      %v3052 = vld [vmem:[%s5 + $0x78] sm:$0xff]
      %v3053 = vld [vmem:[%s5 + $0x80] sm:$0xff]
      %v3054 = vld [vmem:[%s5 + $0x88] sm:$0xff]
      %v3055 = vld [vmem:[%s5 + $0x90] sm:$0xff]
      %v3056 = vld [vmem:[%s5 + $0x98] sm:$0xff]
      %v3057 = vld [vmem:[%s5 + $0xa0] sm:$0xff]
      %v3058 = vld [vmem:[%s5 + $0xa8] sm:$0xff]
      %v3059 = vld [vmem:[%s5 + $0xb0] sm:$0xff]
      %v3060 = vld [vmem:[%s5 + $0xb8] sm:$0xff]
      %v3061 = vld [vmem:[%s5 + $0xc0] sm:$0xff]
      %v3062 = vld [vmem:[%s5 + $0xc8] sm:$0xff]
      %v3063 = vld [vmem:[%s5 + $0xd0] sm:$0xff]
      %v3064 = vld [vmem:[%s5 + $0xd8] sm:$0xff]
      %v3065 = vld [vmem:[%s5 + $0xe0] sm:$0xff]
      %v3066 = vld [vmem:[%s5 + $0xe8] sm:$0xff]
      %v3067 = vld [vmem:[%s5 + $0xf0] sm:$0xff]
      %v3068 = vld [vmem:[%s5 + $0xf8] sm:$0xff]
      %v3069 = vld [vmem:[%s5 + $0x100] sm:$0xff]
      %v3070 = vld [vmem:[%s5 + $0x108] sm:$0xff]
      %v3071 = vld [vmem:[%s5 + $0x110] sm:$0xff]
      %v3072 = vld [vmem:[%s5 + $0x118] sm:$0xff]
      %v3073 = vld [vmem:[%s5 + $0x120] sm:$0xff]
      %v3074 = vld [vmem:[%s5 + $0x128] sm:$0xff]
      %v3075 = vld [vmem:[%s5 + $0x130] sm:$0xff]
      %v3076 = vld [vmem:[%s5 + $0x138] sm:$0xff]
      %v3077 = vld [vmem:[%s5 + $0x140] sm:$0xff]
      %v3078 = vld [vmem:[%s5 + $0x148] sm:$0xff]
      %v3079 = vld [vmem:[%s5 + $0x150] sm:$0xff]
      %v3080 = vld [vmem:[%s5 + $0x158] sm:$0xff]
      %v3081 = vld [vmem:[%s5 + $0x160] sm:$0xff]
      %v3082 = vld [vmem:[%s5 + $0x168] sm:$0xff]
      %v3083 = vld [vmem:[%s5 + $0x170] sm:$0xff]
      %v3084 = vld [vmem:[%s5 + $0x178] sm:$0xff]
      %v3085 = vld [vmem:[%s5 + $0x180] sm:$0xff]
      %v3086 = vld [vmem:[%s5 + $0x188] sm:$0xff]
      %v3087 = vld [vmem:[%s5 + $0x190] sm:$0xff]
      %v3088 = vld [vmem:[%s5 + $0x198] sm:$0xff]
      %v3089 = vld [vmem:[%s5 + $0x1a0] sm:$0xff]
      %v3090 = vld [vmem:[%s5 + $0x1a8] sm:$0xff]
      %v3091 = vld [vmem:[%s5 + $0x1b0] sm:$0xff]
      %v3092 = vld [vmem:[%s5 + $0x1b8] sm:$0xff]
      %v3093 = vld [vmem:[%s5 + $0x1c0] sm:$0xff]
      %v3094 = vld [vmem:[%s5 + $0x1c8] sm:$0xff]
      %v3095 = vld [vmem:[%s5 + $0x1d0] sm:$0xff]
      %v3096 = vld [vmem:[%s5 + $0x1d8] sm:$0xff]
      %v3097 = vld [vmem:[%s5 + $0x1e0] sm:$0xff]
      %v3098 = vld [vmem:[%s5 + $0x1e8] sm:$0xff]
      %v3099 = vld [vmem:[%s5 + $0x1f0] sm:$0xff]
      %v3100 = vld [vmem:[%s5 + $0x1f8] sm:$0xff]
      %v3101 = vld [vmem:[%s5 + $0x200] sm:$0xff]
      %v3102 = vld [vmem:[%s5 + $0x208] sm:$0xff]
      %v3103 = vld [vmem:[%s5 + $0x210] sm:$0xff]
      %v3104 = vld [vmem:[%s5 + $0x218] sm:$0xff]
      %v3105 = vld [vmem:[%s5 + $0x220] sm:$0xff]
      %v3106 = vld [vmem:[%s5 + $0x228] sm:$0xff]
      %v3107 = vld [vmem:[%s5 + $0x230] sm:$0xff]
      %v3108 = vld [vmem:[%s5 + $0x238] sm:$0xff]
      %v3109 = vld [vmem:[%s5 + $0x240] sm:$0xff]
      %v3110 = vld [vmem:[%s5 + $0x248] sm:$0xff]
      %v3111 = vld [vmem:[%s5 + $0x250] sm:$0xff]
      %v3112 = vld [vmem:[%s5 + $0x258] sm:$0xff]
      %v3113 = vld [vmem:[%s5 + $0x260] sm:$0xff]
      %v3114 = vld [vmem:[%s5 + $0x268] sm:$0xff]
      %v3115 = vld [vmem:[%s5 + $0x270] sm:$0xff]
      %v3116 = vld [vmem:[%s5 + $0x278] sm:$0xff]
      %v3117 = vld [vmem:[%s5 + $0x280] sm:$0xff]
      %v3118 = vld [vmem:[%s5 + $0x288] sm:$0xff]
      %v3119 = vld [vmem:[%s5 + $0x290] sm:$0xff]
      %v3120 = vld [vmem:[%s5 + $0x298] sm:$0xff]
      %v3121 = vld [vmem:[%s5 + $0x2a0] sm:$0xff]
      %v3122 = vld [vmem:[%s5 + $0x2a8] sm:$0xff]
      %v3123 = vld [vmem:[%s5 + $0x2b0] sm:$0xff]
      %v3124 = vld [vmem:[%s5 + $0x2b8] sm:$0xff]
      %v3125 = vld [vmem:[%s5 + $0x2c0] sm:$0xff]
      %v3126 = vld [vmem:[%s5 + $0x2c8] sm:$0xff]
      %v3127 = vld [vmem:[%s5 + $0x2d0] sm:$0xff]
      %v3128 = vld [vmem:[%s5 + $0x2d8] sm:$0xff]
      %v3129 = vld [vmem:[%s5 + $0x2e0] sm:$0xff]
      %v3130 = vld [vmem:[%s5 + $0x2e8] sm:$0xff]
      %v3131 = vld [vmem:[%s5 + $0x2f0] sm:$0xff]
      %v3132 = vld [vmem:[%s5 + $0x2f8] sm:$0xff]
      %v3133 = vld [vmem:[%s6] sm:$0xff]
      %v3135 = vlaneseq
      %v3136 = vshrl.u32 %v3135, 7
      %v3137 = vsub.s32 0, %v3136
      %v3138 = vrot.slane %v3133, %v3137
      %v3139 = vlaneseq
      %v3140 = vshrl.u32 %v3139, 7
      %v3141 = vsub.s32 1, %v3140
      %v3142 = vrot.slane %v3133, %v3141
      %v3143 = vlaneseq
      %v3144 = vshrl.u32 %v3143, 7
      %v3145 = vsub.s32 2, %v3144
      %v3146 = vrot.slane %v3133, %v3145
      %v3147 = vlaneseq
      %v3148 = vshrl.u32 %v3147, 7
      %v3149 = vsub.s32 3, %v3148
      %v3150 = vrot.slane %v3133, %v3149
      %v3151 = vlaneseq
      %v3152 = vshrl.u32 %v3151, 7
      %v3153 = vsub.s32 4, %v3152
      %v3154 = vrot.slane %v3133, %v3153
      %v3155 = vlaneseq
      %v3156 = vshrl.u32 %v3155, 7
      %v3157 = vsub.s32 5, %v3156
      %v3158 = vrot.slane %v3133, %v3157
      %v3159 = vlaneseq
      %v3160 = vshrl.u32 %v3159, 7
      %v3161 = vsub.s32 6, %v3160
      %v3162 = vrot.slane %v3133, %v3161
      %v3163 = vlaneseq
      %v3164 = vshrl.u32 %v3163, 7
      %v3165 = vsub.s32 7, %v3164
      %v3166 = vrot.slane %v3133, %v3165
      %v3271 = vunpack.c.l.b16 %v3037
      %v3272 = vunpack.c.h.b16 %v3037
      %v3273 = vunpack.c.l.b16 %v3038
      %v3274 = vunpack.c.h.b16 %v3038
      %v3275 = vunpack.c.l.b16 %v3039
      %v3276 = vunpack.c.h.b16 %v3039
      %v3277 = vunpack.c.l.b16 %v3040
      %v3278 = vunpack.c.h.b16 %v3040
      %v3279 = vunpack.c.l.b16 %v3041
      %v3280 = vunpack.c.h.b16 %v3041
      %v3281 = vunpack.c.l.b16 %v3042
      %v3282 = vunpack.c.h.b16 %v3042
      %v3283 = vunpack.c.l.b16 %v3043
      %v3284 = vunpack.c.h.b16 %v3043
      %v3285 = vunpack.c.l.b16 %v3044
      %v3286 = vunpack.c.h.b16 %v3044
      %v3287 = vunpack.c.l.b16 %v3045
      %v3288 = vunpack.c.h.b16 %v3045
      %v3289 = vunpack.c.l.b16 %v3046
      %v3290 = vunpack.c.h.b16 %v3046
      %v3291 = vunpack.c.l.b16 %v3047
      %v3292 = vunpack.c.h.b16 %v3047
      %v3293 = vunpack.c.l.b16 %v3048
      %v3294 = vunpack.c.h.b16 %v3048
      %v3295 = vunpack.c.l.b16 %v3049
      %v3296 = vunpack.c.h.b16 %v3049
      %v3297 = vunpack.c.l.b16 %v3050
      %v3298 = vunpack.c.h.b16 %v3050
      %v3299 = vunpack.c.l.b16 %v3051
      %v3300 = vunpack.c.h.b16 %v3051
      %v3301 = vunpack.c.l.b16 %v3052
      %v3302 = vunpack.c.h.b16 %v3052
      %v3303 = vunpack.c.l.b16 %v3053
      %v3304 = vunpack.c.h.b16 %v3053
      %v3305 = vunpack.c.l.b16 %v3054
      %v3306 = vunpack.c.h.b16 %v3054
      %v3307 = vunpack.c.l.b16 %v3055
      %v3308 = vunpack.c.h.b16 %v3055
      %v3309 = vunpack.c.l.b16 %v3056
      %v3310 = vunpack.c.h.b16 %v3056
      %v3311 = vunpack.c.l.b16 %v3057
      %v3312 = vunpack.c.h.b16 %v3057
      %v3313 = vunpack.c.l.b16 %v3058
      %v3314 = vunpack.c.h.b16 %v3058
      %v3315 = vunpack.c.l.b16 %v3059
      %v3316 = vunpack.c.h.b16 %v3059
      %v3317 = vunpack.c.l.b16 %v3060
      %v3318 = vunpack.c.h.b16 %v3060
      %v3319 = vunpack.c.l.b16 %v3061
      %v3320 = vunpack.c.h.b16 %v3061
      %v3321 = vunpack.c.l.b16 %v3062
      %v3322 = vunpack.c.h.b16 %v3062
      %v3323 = vunpack.c.l.b16 %v3063
      %v3324 = vunpack.c.h.b16 %v3063
      %v3325 = vunpack.c.l.b16 %v3064
      %v3326 = vunpack.c.h.b16 %v3064
      %v3327 = vunpack.c.l.b16 %v3065
      %v3328 = vunpack.c.h.b16 %v3065
      %v3329 = vunpack.c.l.b16 %v3066
      %v3330 = vunpack.c.h.b16 %v3066
      %v3331 = vunpack.c.l.b16 %v3067
      %v3332 = vunpack.c.h.b16 %v3067
      %v3333 = vunpack.c.l.b16 %v3068
      %v3334 = vunpack.c.h.b16 %v3068
      %v3335 = vunpack.c.l.b16 %v3069
      %v3336 = vunpack.c.h.b16 %v3069
      %v3337 = vunpack.c.l.b16 %v3070
      %v3338 = vunpack.c.h.b16 %v3070
      %v3339 = vunpack.c.l.b16 %v3071
      %v3340 = vunpack.c.h.b16 %v3071
      %v3341 = vunpack.c.l.b16 %v3072
      %v3342 = vunpack.c.h.b16 %v3072
      %v3343 = vunpack.c.l.b16 %v3073
      %v3344 = vunpack.c.h.b16 %v3073
      %v3345 = vunpack.c.l.b16 %v3074
      %v3346 = vunpack.c.h.b16 %v3074
      %v3347 = vunpack.c.l.b16 %v3075
      %v3348 = vunpack.c.h.b16 %v3075
      %v3349 = vunpack.c.l.b16 %v3076
      %v3350 = vunpack.c.h.b16 %v3076
      %v3351 = vunpack.c.l.b16 %v3077
      %v3352 = vunpack.c.h.b16 %v3077
      %v3353 = vunpack.c.l.b16 %v3078
      %v3354 = vunpack.c.h.b16 %v3078
      %v3355 = vunpack.c.l.b16 %v3079
      %v3356 = vunpack.c.h.b16 %v3079
      %v3357 = vunpack.c.l.b16 %v3080
      %v3358 = vunpack.c.h.b16 %v3080
      %v3359 = vunpack.c.l.b16 %v3081
      %v3360 = vunpack.c.h.b16 %v3081
      %v3361 = vunpack.c.l.b16 %v3082
      %v3362 = vunpack.c.h.b16 %v3082
      %v3363 = vunpack.c.l.b16 %v3083
      %v3364 = vunpack.c.h.b16 %v3083
      %v3365 = vunpack.c.l.b16 %v3084
      %v3366 = vunpack.c.h.b16 %v3084
      %v3367 = vunpack.c.l.b16 %v3085
      %v3368 = vunpack.c.h.b16 %v3085
      %v3369 = vunpack.c.l.b16 %v3086
      %v3370 = vunpack.c.h.b16 %v3086
      %v3371 = vunpack.c.l.b16 %v3087
      %v3372 = vunpack.c.h.b16 %v3087
      %v3373 = vunpack.c.l.b16 %v3088
      %v3374 = vunpack.c.h.b16 %v3088
      %v3375 = vunpack.c.l.b16 %v3089
      %v3376 = vunpack.c.h.b16 %v3089
      %v3377 = vunpack.c.l.b16 %v3090
      %v3378 = vunpack.c.h.b16 %v3090
      %v3379 = vunpack.c.l.b16 %v3091
      %v3380 = vunpack.c.h.b16 %v3091
      %v3381 = vunpack.c.l.b16 %v3092
      %v3382 = vunpack.c.h.b16 %v3092
      %v3383 = vunpack.c.l.b16 %v3093
      %v3384 = vunpack.c.h.b16 %v3093
      %v3385 = vunpack.c.l.b16 %v3094
      %v3386 = vunpack.c.h.b16 %v3094
      %v3387 = vunpack.c.l.b16 %v3095
      %v3388 = vunpack.c.h.b16 %v3095
      %v3389 = vunpack.c.l.b16 %v3096
      %v3390 = vunpack.c.h.b16 %v3096
      %v3391 = vunpack.c.l.b16 %v3097
      %v3392 = vunpack.c.h.b16 %v3097
      %v3393 = vunpack.c.l.b16 %v3098
      %v3394 = vunpack.c.h.b16 %v3098
      %v3395 = vunpack.c.l.b16 %v3099
      %v3396 = vunpack.c.h.b16 %v3099
      %v3397 = vunpack.c.l.b16 %v3100
      %v3398 = vunpack.c.h.b16 %v3100
      %v3399 = vunpack.c.l.b16 %v3101
      %v3400 = vunpack.c.h.b16 %v3101
      %v3401 = vunpack.c.l.b16 %v3102
      %v3402 = vunpack.c.h.b16 %v3102
      %v3403 = vunpack.c.l.b16 %v3103
      %v3404 = vunpack.c.h.b16 %v3103
      %v3405 = vunpack.c.l.b16 %v3104
      %v3406 = vunpack.c.h.b16 %v3104
      %v3407 = vunpack.c.l.b16 %v3105
      %v3408 = vunpack.c.h.b16 %v3105
      %v3409 = vunpack.c.l.b16 %v3106
      %v3410 = vunpack.c.h.b16 %v3106
      %v3411 = vunpack.c.l.b16 %v3107
      %v3412 = vunpack.c.h.b16 %v3107
      %v3413 = vunpack.c.l.b16 %v3108
      %v3414 = vunpack.c.h.b16 %v3108
      %v3415 = vunpack.c.l.b16 %v3109
      %v3416 = vunpack.c.h.b16 %v3109
      %v3417 = vunpack.c.l.b16 %v3110
      %v3418 = vunpack.c.h.b16 %v3110
      %v3419 = vunpack.c.l.b16 %v3111
      %v3420 = vunpack.c.h.b16 %v3111
      %v3421 = vunpack.c.l.b16 %v3112
      %v3422 = vunpack.c.h.b16 %v3112
      %v3423 = vunpack.c.l.b16 %v3113
      %v3424 = vunpack.c.h.b16 %v3113
      %v3425 = vunpack.c.l.b16 %v3114
      %v3426 = vunpack.c.h.b16 %v3114
      %v3427 = vunpack.c.l.b16 %v3115
      %v3428 = vunpack.c.h.b16 %v3115
      %v3429 = vunpack.c.l.b16 %v3116
      %v3430 = vunpack.c.h.b16 %v3116
      %v3431 = vunpack.c.l.b16 %v3117
      %v3432 = vunpack.c.h.b16 %v3117
      %v3433 = vunpack.c.l.b16 %v3118
      %v3434 = vunpack.c.h.b16 %v3118
      %v3435 = vunpack.c.l.b16 %v3119
      %v3436 = vunpack.c.h.b16 %v3119
      %v3437 = vunpack.c.l.b16 %v3120
      %v3438 = vunpack.c.h.b16 %v3120
      %v3439 = vunpack.c.l.b16 %v3121
      %v3440 = vunpack.c.h.b16 %v3121
      %v3441 = vunpack.c.l.b16 %v3122
      %v3442 = vunpack.c.h.b16 %v3122
      %v3443 = vunpack.c.l.b16 %v3123
      %v3444 = vunpack.c.h.b16 %v3123
      %v3445 = vunpack.c.l.b16 %v3124
      %v3446 = vunpack.c.h.b16 %v3124
      %v3447 = vunpack.c.l.b16 %v3125
      %v3448 = vunpack.c.h.b16 %v3125
      %v3449 = vunpack.c.l.b16 %v3126
      %v3450 = vunpack.c.h.b16 %v3126
      %v3451 = vunpack.c.l.b16 %v3127
      %v3452 = vunpack.c.h.b16 %v3127
      %v3453 = vunpack.c.l.b16 %v3128
      %v3454 = vunpack.c.h.b16 %v3128
      %v3455 = vunpack.c.l.b16 %v3129
      %v3456 = vunpack.c.h.b16 %v3129
      %v3457 = vunpack.c.l.b16 %v3130
      %v3458 = vunpack.c.h.b16 %v3130
      %v3459 = vunpack.c.l.b16 %v3131
      %v3460 = vunpack.c.h.b16 %v3131
      %v3461 = vunpack.c.l.b16 %v3132
      %v3462 = vunpack.c.h.b16 %v3132
      %v3463 = vpack.c.b16 %v3279, %v3271
      %v3464 = vpack.c.b16 %v3280, %v3272
      %v3465 = vpack.c.b16 %v3281, %v3273
      %v3466 = vpack.c.b16 %v3282, %v3274
      %v3467 = vpack.c.b16 %v3283, %v3275
      %v3468 = vpack.c.b16 %v3284, %v3276
      %v3469 = vpack.c.b16 %v3285, %v3277
      %v3470 = vpack.c.b16 %v3286, %v3278
      %v3471 = vpack.c.b16 %v3295, %v3287
      %v3472 = vpack.c.b16 %v3296, %v3288
      %v3473 = vpack.c.b16 %v3297, %v3289
      %v3474 = vpack.c.b16 %v3298, %v3290
      %v3475 = vpack.c.b16 %v3299, %v3291
      %v3476 = vpack.c.b16 %v3300, %v3292
      %v3477 = vpack.c.b16 %v3301, %v3293
      %v3478 = vpack.c.b16 %v3302, %v3294
      %v3479 = vpack.c.b16 %v3311, %v3303
      %v3480 = vpack.c.b16 %v3312, %v3304
      %v3481 = vpack.c.b16 %v3313, %v3305
      %v3482 = vpack.c.b16 %v3314, %v3306
      %v3483 = vpack.c.b16 %v3315, %v3307
      %v3484 = vpack.c.b16 %v3316, %v3308
      %v3485 = vpack.c.b16 %v3317, %v3309
      %v3486 = vpack.c.b16 %v3318, %v3310
      %v3487 = vpack.c.b16 %v3327, %v3319
      %v3488 = vpack.c.b16 %v3328, %v3320
      %v3489 = vpack.c.b16 %v3329, %v3321
      %v3490 = vpack.c.b16 %v3330, %v3322
      %v3491 = vpack.c.b16 %v3331, %v3323
      %v3492 = vpack.c.b16 %v3332, %v3324
      %v3493 = vpack.c.b16 %v3333, %v3325
      %v3494 = vpack.c.b16 %v3334, %v3326
      %v3495 = vpack.c.b16 %v3343, %v3335
      %v3496 = vpack.c.b16 %v3344, %v3336
      %v3497 = vpack.c.b16 %v3345, %v3337
      %v3498 = vpack.c.b16 %v3346, %v3338
      %v3499 = vpack.c.b16 %v3347, %v3339
      %v3500 = vpack.c.b16 %v3348, %v3340
      %v3501 = vpack.c.b16 %v3349, %v3341
      %v3502 = vpack.c.b16 %v3350, %v3342
      %v3503 = vpack.c.b16 %v3359, %v3351
      %v3504 = vpack.c.b16 %v3360, %v3352
      %v3505 = vpack.c.b16 %v3361, %v3353
      %v3506 = vpack.c.b16 %v3362, %v3354
      %v3507 = vpack.c.b16 %v3363, %v3355
      %v3508 = vpack.c.b16 %v3364, %v3356
      %v3509 = vpack.c.b16 %v3365, %v3357
      %v3510 = vpack.c.b16 %v3366, %v3358
      %v3511 = vpack.c.b16 %v3375, %v3367
      %v3512 = vpack.c.b16 %v3376, %v3368
      %v3513 = vpack.c.b16 %v3377, %v3369
      %v3514 = vpack.c.b16 %v3378, %v3370
      %v3515 = vpack.c.b16 %v3379, %v3371
      %v3516 = vpack.c.b16 %v3380, %v3372
      %v3517 = vpack.c.b16 %v3381, %v3373
      %v3518 = vpack.c.b16 %v3382, %v3374
      %v3519 = vpack.c.b16 %v3391, %v3383
      %v3520 = vpack.c.b16 %v3392, %v3384
      %v3521 = vpack.c.b16 %v3393, %v3385
      %v3522 = vpack.c.b16 %v3394, %v3386
      %v3523 = vpack.c.b16 %v3395, %v3387
      %v3524 = vpack.c.b16 %v3396, %v3388
      %v3525 = vpack.c.b16 %v3397, %v3389
      %v3526 = vpack.c.b16 %v3398, %v3390
      %v3527 = vpack.c.b16 %v3407, %v3399
      %v3528 = vpack.c.b16 %v3408, %v3400
      %v3529 = vpack.c.b16 %v3409, %v3401
      %v3530 = vpack.c.b16 %v3410, %v3402
      %v3531 = vpack.c.b16 %v3411, %v3403
      %v3532 = vpack.c.b16 %v3412, %v3404
      %v3533 = vpack.c.b16 %v3413, %v3405
      %v3534 = vpack.c.b16 %v3414, %v3406
      %v3535 = vpack.c.b16 %v3423, %v3415
      %v3536 = vpack.c.b16 %v3424, %v3416
      %v3537 = vpack.c.b16 %v3425, %v3417
      %v3538 = vpack.c.b16 %v3426, %v3418
      %v3539 = vpack.c.b16 %v3427, %v3419
      %v3540 = vpack.c.b16 %v3428, %v3420
      %v3541 = vpack.c.b16 %v3429, %v3421
      %v3542 = vpack.c.b16 %v3430, %v3422
      %v3543 = vpack.c.b16 %v3439, %v3431
      %v3544 = vpack.c.b16 %v3440, %v3432
      %v3545 = vpack.c.b16 %v3441, %v3433
      %v3546 = vpack.c.b16 %v3442, %v3434
      %v3547 = vpack.c.b16 %v3443, %v3435
      %v3548 = vpack.c.b16 %v3444, %v3436
      %v3549 = vpack.c.b16 %v3445, %v3437
      %v3550 = vpack.c.b16 %v3446, %v3438
      %v3551 = vpack.c.b16 %v3455, %v3447
      %v3552 = vpack.c.b16 %v3456, %v3448
      %v3553 = vpack.c.b16 %v3457, %v3449
      %v3554 = vpack.c.b16 %v3458, %v3450
      %v3555 = vpack.c.b16 %v3459, %v3451
      %v3556 = vpack.c.b16 %v3460, %v3452
      %v3557 = vpack.c.b16 %v3461, %v3453
      %v3558 = vpack.c.b16 %v3462, %v3454
      %v3656 = vsel %vm2699, %v3006, 0
      %v3659 = vsel %vm2699, %v3008, 0
      %v3662 = vsel %vm2699, %v3010, 0
      %v3665 = vsel %vm2699, %v3012, 0
      %v3668 = vsel %vm2699, %v3014, 0
      %v3671 = vsel %vm2699, %v3016, 0
      %v3674 = vsel %vm2699, %v3018, 0
      %v3677 = vsel %vm2699, %v3020, 0
      %v3680 = vsel %vm2699, %v3022, 0
      %v3683 = vsel %vm2699, %v3024, 0
      %v3686 = vsel %vm2699, %v3026, 0
      %v3689 = vsel %vm2699, %v3028, 0
      %v3692 = vsel %vm2699, %v3030, 0
      %v3695 = vsel %vm2699, %v3032, 0
      %v3698 = vsel %vm2699, %v3034, 0
      %v3701 = vsel %vm2699, %v3036, 0
      %3703 = vmatprep.subr.bf16.mxu0 %v3464
      %3704 = vmatpush1.bf16.msra.mxu0 %v3463
      %3705 = vmatprep.subr.bf16.mxu0 %v3472
      %3706 = vmatpush1.bf16.msra.mxu0 %v3471
      %3707 = vmatprep.subr.bf16.mxu0 %v3480
      %3708 = vmatpush1.bf16.msra.mxu0 %v3479
      %3709 = vmatprep.subr.bf16.mxu0 %v3488
      %3710 = vmatpush1.bf16.msra.mxu0 %v3487
      %3711 = vmatprep.subr.bf16.mxu0 %v3496
      %3712 = vmatpush1.bf16.msra.mxu0 %v3495
      %3713 = vmatprep.subr.bf16.mxu0 %v3504
      %3714 = vmatpush1.bf16.msra.mxu0 %v3503
      %3715 = vmatprep.subr.bf16.mxu0 %v3512
      %3716 = vmatpush1.bf16.msra.mxu0 %v3511
      %3717 = vmatprep.subr.bf16.mxu0 %v3520
      %3718 = vmatpush1.bf16.msra.mxu0 %v3519
      %3719 = vmatprep.subr.bf16.mxu0 %v3528
      %3720 = vmatpush1.bf16.msra.mxu0 %v3527
      %3721 = vmatprep.subr.bf16.mxu0 %v3536
      %3722 = vmatpush1.bf16.msra.mxu0 %v3535
      %3723 = vmatprep.subr.bf16.mxu0 %v3544
      %3724 = vmatpush1.bf16.msra.mxu0 %v3543
      %3725 = vmatprep.subr.bf16.mxu0 %v3552
      %3726 = vmatpush1.bf16.msra.mxu0 %v3551
      %3727 = vmatprep.subr.bf16.mxu0 0
      %3728 = vmatpush1.bf16.msra.mxu0 0
      %3729 = vmatprep.subr.bf16.mxu0 0
      %3730 = vmatpush1.bf16.msra.mxu0 0
      %3731 = vmatprep.subr.bf16.mxu0 0
      %3732 = vmatpush1.bf16.msra.mxu0 0
      %3733 = vmatprep.subr.bf16.mxu0 0
      %3734 = vmatpush1.bf16.msra.mxu0 0
      %3735 = vmatprep.mubr.bf16.mxu0 %v3656
      %3736 = vmatmul.mubr.bf16.gmra.mrb[0].mxu0 %v3005
      %v3737 = vpop.f32.mrb[0].mxu0
      %v3738 = vadd.f32 %v3138, %v3737
      %v3739 = vpop.f32.mrb[0].mxu0
      %v3740 = vadd.f32 %v3142, %v3739
      %v3741 = vpop.f32.mrb[0].mxu0
      %v3742 = vadd.f32 %v3138, %v3741
      %v3743 = vpop.f32.mrb[0].mxu0
      %v3744 = vadd.f32 %v3142, %v3743
      %3745 = vmatprep.mubr.bf16.mxu0 %v3659
      %3746 = vmatmul.mubr.bf16.gmra.mrb[0].mxu0 %v3007
      %v3747 = vpop.f32.mrb[0].mxu0
      %v3748 = vadd.f32 %v3138, %v3747
      %v3749 = vpop.f32.mrb[0].mxu0
      %v3750 = vadd.f32 %v3142, %v3749
      %v3751 = vpop.f32.mrb[0].mxu0
      %v3752 = vadd.f32 %v3138, %v3751
      %v3753 = vpop.f32.mrb[0].mxu0
      %v3754 = vadd.f32 %v3142, %v3753
      %3755 = vmatprep.mubr.bf16.mxu0 %v3662
      %3756 = vmatmul.mubr.bf16.gmra.mrb[0].mxu0 %v3009
      %v3757 = vpop.f32.mrb[0].mxu0
      %v3758 = vadd.f32 %v3138, %v3757
      %v3759 = vpop.f32.mrb[0].mxu0
      %v3760 = vadd.f32 %v3142, %v3759
      %v3761 = vpop.f32.mrb[0].mxu0
      %v3762 = vadd.f32 %v3138, %v3761
      %v3763 = vpop.f32.mrb[0].mxu0
      %v3764 = vadd.f32 %v3142, %v3763
      %3765 = vmatprep.mubr.bf16.mxu0 %v3665
      %3766 = vmatmul.mubr.bf16.gmra.mrb[0].mxu0 %v3011
      %v3767 = vpop.f32.mrb[0].mxu0
      %v3768 = vadd.f32 %v3138, %v3767
      %v3769 = vpop.f32.mrb[0].mxu0
      %v3770 = vadd.f32 %v3142, %v3769
      %v3771 = vpop.f32.mrb[0].mxu0
      %v3772 = vadd.f32 %v3138, %v3771
      %v3773 = vpop.f32.mrb[0].mxu0
      %v3774 = vadd.f32 %v3142, %v3773
      %3775 = vmatprep.mubr.bf16.mxu0 %v3668
      %3776 = vmatmul.mubr.bf16.gmra.mrb[0].mxu0 %v3013
      %v3777 = vpop.f32.mrb[0].mxu0
      %v3778 = vadd.f32 %v3138, %v3777
      %v3779 = vpop.f32.mrb[0].mxu0
      %v3780 = vadd.f32 %v3142, %v3779
      %v3781 = vpop.f32.mrb[0].mxu0
      %v3782 = vadd.f32 %v3138, %v3781
      %v3783 = vpop.f32.mrb[0].mxu0
      %v3784 = vadd.f32 %v3142, %v3783
      %3785 = vmatprep.mubr.bf16.mxu0 %v3671
      %3786 = vmatmul.mubr.bf16.gmra.mrb[0].mxu0 %v3015
      %v3787 = vpop.f32.mrb[0].mxu0
      %v3788 = vadd.f32 %v3138, %v3787
      %v3789 = vpop.f32.mrb[0].mxu0
      %v3790 = vadd.f32 %v3142, %v3789
      %v3791 = vpop.f32.mrb[0].mxu0
      %v3792 = vadd.f32 %v3138, %v3791
      %v3793 = vpop.f32.mrb[0].mxu0
      %v3794 = vadd.f32 %v3142, %v3793
      %3795 = vmatprep.mubr.bf16.mxu0 %v3674
      %3796 = vmatmul.mubr.bf16.gmra.mrb[0].mxu0 %v3017
      %v3797 = vpop.f32.mrb[0].mxu0
      %v3798 = vadd.f32 %v3138, %v3797
      %v3799 = vpop.f32.mrb[0].mxu0
      %v3800 = vadd.f32 %v3142, %v3799
      %v3801 = vpop.f32.mrb[0].mxu0
      %v3802 = vadd.f32 %v3138, %v3801
      %v3803 = vpop.f32.mrb[0].mxu0
      %v3804 = vadd.f32 %v3142, %v3803
      %3805 = vmatprep.mubr.bf16.mxu0 %v3677
      %3806 = vmatmul.mubr.bf16.gmra.mrb[0].mxu0 %v3019
      %v3807 = vpop.f32.mrb[0].mxu0
      %v3808 = vadd.f32 %v3138, %v3807
      %v3809 = vpop.f32.mrb[0].mxu0
      %v3810 = vadd.f32 %v3142, %v3809
      %v3811 = vpop.f32.mrb[0].mxu0
      %v3812 = vadd.f32 %v3138, %v3811
      %v3813 = vpop.f32.mrb[0].mxu0
      %v3814 = vadd.f32 %v3142, %v3813
      %3815 = vmatprep.mubr.bf16.mxu0 %v3680
      %3816 = vmatmul.mubr.bf16.gmra.mrb[0].mxu0 %v3021
      %v3817 = vpop.f32.mrb[0].mxu0
      %v3818 = vadd.f32 %v3138, %v3817
      %v3819 = vpop.f32.mrb[0].mxu0
      %v3820 = vadd.f32 %v3142, %v3819
      %v3821 = vpop.f32.mrb[0].mxu0
      %v3822 = vadd.f32 %v3138, %v3821
      %v3823 = vpop.f32.mrb[0].mxu0
      %v3824 = vadd.f32 %v3142, %v3823
      %3825 = vmatprep.mubr.bf16.mxu0 %v3683
      %3826 = vmatmul.mubr.bf16.gmra.mrb[0].mxu0 %v3023
      %v3827 = vpop.f32.mrb[0].mxu0
      %v3828 = vadd.f32 %v3138, %v3827
      %v3829 = vpop.f32.mrb[0].mxu0
      %v3830 = vadd.f32 %v3142, %v3829
      %v3831 = vpop.f32.mrb[0].mxu0
      %v3832 = vadd.f32 %v3138, %v3831
      %v3833 = vpop.f32.mrb[0].mxu0
      %v3834 = vadd.f32 %v3142, %v3833
      %3835 = vmatprep.mubr.bf16.mxu0 %v3686
      %3836 = vmatmul.mubr.bf16.gmra.mrb[0].mxu0 %v3025
      %v3837 = vpop.f32.mrb[0].mxu0
      %v3838 = vadd.f32 %v3138, %v3837
      %v3839 = vpop.f32.mrb[0].mxu0
      %v3840 = vadd.f32 %v3142, %v3839
      %v3841 = vpop.f32.mrb[0].mxu0
      %v3842 = vadd.f32 %v3138, %v3841
      %v3843 = vpop.f32.mrb[0].mxu0
      %v3844 = vadd.f32 %v3142, %v3843
      %3845 = vmatprep.mubr.bf16.mxu0 %v3689
      %3846 = vmatmul.mubr.bf16.gmra.mrb[0].mxu0 %v3027
      %v3847 = vpop.f32.mrb[0].mxu0
      %v3848 = vadd.f32 %v3138, %v3847
      %v3849 = vpop.f32.mrb[0].mxu0
      %v3850 = vadd.f32 %v3142, %v3849
      %v3851 = vpop.f32.mrb[0].mxu0
      %v3852 = vadd.f32 %v3138, %v3851
      %v3853 = vpop.f32.mrb[0].mxu0
      %v3854 = vadd.f32 %v3142, %v3853
      %3855 = vmatprep.mubr.bf16.mxu0 %v3692
      %3856 = vmatmul.mubr.bf16.gmra.mrb[0].mxu0 %v3029
      %v3857 = vpop.f32.mrb[0].mxu0
      %v3858 = vadd.f32 %v3138, %v3857
      %v3859 = vpop.f32.mrb[0].mxu0
      %v3860 = vadd.f32 %v3142, %v3859
      %v3861 = vpop.f32.mrb[0].mxu0
      %v3862 = vadd.f32 %v3138, %v3861
      %v3863 = vpop.f32.mrb[0].mxu0
      %v3864 = vadd.f32 %v3142, %v3863
      %3865 = vmatprep.mubr.bf16.mxu0 %v3695
      %3866 = vmatmul.mubr.bf16.gmra.mrb[0].mxu0 %v3031
      %v3867 = vpop.f32.mrb[0].mxu0
      %v3868 = vadd.f32 %v3138, %v3867
      %v3869 = vpop.f32.mrb[0].mxu0
      %v3870 = vadd.f32 %v3142, %v3869
      %v3871 = vpop.f32.mrb[0].mxu0
      %v3872 = vadd.f32 %v3138, %v3871
      %v3873 = vpop.f32.mrb[0].mxu0
      %v3874 = vadd.f32 %v3142, %v3873
      %3875 = vmatprep.mubr.bf16.mxu0 %v3698
      %3876 = vmatmul.mubr.bf16.gmra.mrb[0].mxu0 %v3033
      %v3877 = vpop.f32.mrb[0].mxu0
      %v3878 = vadd.f32 %v3138, %v3877
      %v3879 = vpop.f32.mrb[0].mxu0
      %v3880 = vadd.f32 %v3142, %v3879
      %v3881 = vpop.f32.mrb[0].mxu0
      %v3882 = vadd.f32 %v3138, %v3881
      %v3883 = vpop.f32.mrb[0].mxu0
      %v3884 = vadd.f32 %v3142, %v3883
      %3885 = vmatprep.mubr.bf16.mxu0 %v3701
      %3886 = vmatmul.mubr.bf16.gmra.mrb[0].mxu0 %v3035
      %v3887 = vpop.f32.mrb[0].mxu0
      %v3888 = vadd.f32 %v3138, %v3887
      %v3889 = vpop.f32.mrb[0].mxu0
      %v3890 = vadd.f32 %v3142, %v3889
      %v3891 = vpop.f32.mrb[0].mxu0
      %v3892 = vadd.f32 %v3138, %v3891
      %v3893 = vpop.f32.mrb[0].mxu0
      %v3894 = vadd.f32 %v3142, %v3893
      %3895 = vdwg.mxu0
      %3896 = vmatprep.subr.bf16.mxu0 %v3466
      %3897 = vmatpush1.bf16.msra.mxu0 %v3465
      %3898 = vmatprep.subr.bf16.mxu0 %v3474
      %3899 = vmatpush1.bf16.msra.mxu0 %v3473
      %3900 = vmatprep.subr.bf16.mxu0 %v3482
      %3901 = vmatpush1.bf16.msra.mxu0 %v3481
      %3902 = vmatprep.subr.bf16.mxu0 %v3490
      %3903 = vmatpush1.bf16.msra.mxu0 %v3489
      %3904 = vmatprep.subr.bf16.mxu0 %v3498
      %3905 = vmatpush1.bf16.msra.mxu0 %v3497
      %3906 = vmatprep.subr.bf16.mxu0 %v3506
      %3907 = vmatpush1.bf16.msra.mxu0 %v3505
      %3908 = vmatprep.subr.bf16.mxu0 %v3514
      %3909 = vmatpush1.bf16.msra.mxu0 %v3513
      %3910 = vmatprep.subr.bf16.mxu0 %v3522
      %3911 = vmatpush1.bf16.msra.mxu0 %v3521
      %3912 = vmatprep.subr.bf16.mxu0 %v3530
      %3913 = vmatpush1.bf16.msra.mxu0 %v3529
      %3914 = vmatprep.subr.bf16.mxu0 %v3538
      %3915 = vmatpush1.bf16.msra.mxu0 %v3537
      %3916 = vmatprep.subr.bf16.mxu0 %v3546
      %3917 = vmatpush1.bf16.msra.mxu0 %v3545
      %3918 = vmatprep.subr.bf16.mxu0 %v3554
      %3919 = vmatpush1.bf16.msra.mxu0 %v3553
      %3920 = vmatprep.subr.bf16.mxu0 0
      %3921 = vmatpush1.bf16.msra.mxu0 0
      %3922 = vmatprep.subr.bf16.mxu0 0
      %3923 = vmatpush1.bf16.msra.mxu0 0
      %3924 = vmatprep.subr.bf16.mxu0 0
      %3925 = vmatpush1.bf16.msra.mxu0 0
      %3926 = vmatprep.subr.bf16.mxu0 0
      %3927 = vmatpush1.bf16.msra.mxu0 0
      %3928 = vmatprep.mubr.bf16.mxu0 %v3656
      %3929 = vmatmul.mubr.bf16.gmra.mrb[0].mxu0 %v3005
      %v3930 = vpop.f32.mrb[0].mxu0
      %v3931 = vadd.f32 %v3146, %v3930
      %v3932 = vpop.f32.mrb[0].mxu0
      %v3933 = vadd.f32 %v3150, %v3932
      %v3934 = vpop.f32.mrb[0].mxu0
      %v3935 = vadd.f32 %v3146, %v3934
      %v3936 = vpop.f32.mrb[0].mxu0
      %v3937 = vadd.f32 %v3150, %v3936
      %3938 = vmatprep.mubr.bf16.mxu0 %v3659
      %3939 = vmatmul.mubr.bf16.gmra.mrb[0].mxu0 %v3007
      %v3940 = vpop.f32.mrb[0].mxu0
      %v3941 = vadd.f32 %v3146, %v3940
      %v3942 = vpop.f32.mrb[0].mxu0
      %v3943 = vadd.f32 %v3150, %v3942
      %v3944 = vpop.f32.mrb[0].mxu0
      %v3945 = vadd.f32 %v3146, %v3944
      %v3946 = vpop.f32.mrb[0].mxu0
      %v3947 = vadd.f32 %v3150, %v3946
      %3948 = vmatprep.mubr.bf16.mxu0 %v3662
      %3949 = vmatmul.mubr.bf16.gmra.mrb[0].mxu0 %v3009
      %v3950 = vpop.f32.mrb[0].mxu0
      %v3951 = vadd.f32 %v3146, %v3950
      %v3952 = vpop.f32.mrb[0].mxu0
      %v3953 = vadd.f32 %v3150, %v3952
      %v3954 = vpop.f32.mrb[0].mxu0
      %v3955 = vadd.f32 %v3146, %v3954
      %v3956 = vpop.f32.mrb[0].mxu0
      %v3957 = vadd.f32 %v3150, %v3956
      %3958 = vmatprep.mubr.bf16.mxu0 %v3665
      %3959 = vmatmul.mubr.bf16.gmra.mrb[0].mxu0 %v3011
      %v3960 = vpop.f32.mrb[0].mxu0
      %v3961 = vadd.f32 %v3146, %v3960
      %v3962 = vpop.f32.mrb[0].mxu0
      %v3963 = vadd.f32 %v3150, %v3962
      %v3964 = vpop.f32.mrb[0].mxu0
      %v3965 = vadd.f32 %v3146, %v3964
      %v3966 = vpop.f32.mrb[0].mxu0
      %v3967 = vadd.f32 %v3150, %v3966
      %3968 = vmatprep.mubr.bf16.mxu0 %v3668
      %3969 = vmatmul.mubr.bf16.gmra.mrb[0].mxu0 %v3013
      %v3970 = vpop.f32.mrb[0].mxu0
      %v3971 = vadd.f32 %v3146, %v3970
      %v3972 = vpop.f32.mrb[0].mxu0
      %v3973 = vadd.f32 %v3150, %v3972
      %v3974 = vpop.f32.mrb[0].mxu0
      %v3975 = vadd.f32 %v3146, %v3974
      %v3976 = vpop.f32.mrb[0].mxu0
      %v3977 = vadd.f32 %v3150, %v3976
      %3978 = vmatprep.mubr.bf16.mxu0 %v3671
      %3979 = vmatmul.mubr.bf16.gmra.mrb[0].mxu0 %v3015
      %v3980 = vpop.f32.mrb[0].mxu0
      %v3981 = vadd.f32 %v3146, %v3980
      %v3982 = vpop.f32.mrb[0].mxu0
      %v3983 = vadd.f32 %v3150, %v3982
      %v3984 = vpop.f32.mrb[0].mxu0
      %v3985 = vadd.f32 %v3146, %v3984
      %v3986 = vpop.f32.mrb[0].mxu0
      %v3987 = vadd.f32 %v3150, %v3986
      %3988 = vmatprep.mubr.bf16.mxu0 %v3674
      %3989 = vmatmul.mubr.bf16.gmra.mrb[0].mxu0 %v3017
      %v3990 = vpop.f32.mrb[0].mxu0
      %v3991 = vadd.f32 %v3146, %v3990
      %v3992 = vpop.f32.mrb[0].mxu0
      %v3993 = vadd.f32 %v3150, %v3992
      %v3994 = vpop.f32.mrb[0].mxu0
      %v3995 = vadd.f32 %v3146, %v3994
      %v3996 = vpop.f32.mrb[0].mxu0
      %v3997 = vadd.f32 %v3150, %v3996
      %3998 = vmatprep.mubr.bf16.mxu0 %v3677
      %3999 = vmatmul.mubr.bf16.gmra.mrb[0].mxu0 %v3019
      %v4000 = vpop.f32.mrb[0].mxu0
      %v4001 = vadd.f32 %v3146, %v4000
      %v4002 = vpop.f32.mrb[0].mxu0
      %v4003 = vadd.f32 %v3150, %v4002
      %v4004 = vpop.f32.mrb[0].mxu0
      %v4005 = vadd.f32 %v3146, %v4004
      %v4006 = vpop.f32.mrb[0].mxu0
      %v4007 = vadd.f32 %v3150, %v4006
      %4008 = vmatprep.mubr.bf16.mxu0 %v3680
      %4009 = vmatmul.mubr.bf16.gmra.mrb[0].mxu0 %v3021
      %v4010 = vpop.f32.mrb[0].mxu0
      %v4011 = vadd.f32 %v3146, %v4010
      %v4012 = vpop.f32.mrb[0].mxu0
      %v4013 = vadd.f32 %v3150, %v4012
      %v4014 = vpop.f32.mrb[0].mxu0
      %v4015 = vadd.f32 %v3146, %v4014
      %v4016 = vpop.f32.mrb[0].mxu0
      %v4017 = vadd.f32 %v3150, %v4016
      %4018 = vmatprep.mubr.bf16.mxu0 %v3683
      %4019 = vmatmul.mubr.bf16.gmra.mrb[0].mxu0 %v3023
      %v4020 = vpop.f32.mrb[0].mxu0
      %v4021 = vadd.f32 %v3146, %v4020
      %v4022 = vpop.f32.mrb[0].mxu0
      %v4023 = vadd.f32 %v3150, %v4022
      %v4024 = vpop.f32.mrb[0].mxu0
      %v4025 = vadd.f32 %v3146, %v4024
      %v4026 = vpop.f32.mrb[0].mxu0
      %v4027 = vadd.f32 %v3150, %v4026
      %4028 = vmatprep.mubr.bf16.mxu0 %v3686
      %4029 = vmatmul.mubr.bf16.gmra.mrb[0].mxu0 %v3025
      %v4030 = vpop.f32.mrb[0].mxu0
      %v4031 = vadd.f32 %v3146, %v4030
      %v4032 = vpop.f32.mrb[0].mxu0
      %v4033 = vadd.f32 %v3150, %v4032
      %v4034 = vpop.f32.mrb[0].mxu0
      %v4035 = vadd.f32 %v3146, %v4034
      %v4036 = vpop.f32.mrb[0].mxu0
      %v4037 = vadd.f32 %v3150, %v4036
      %4038 = vmatprep.mubr.bf16.mxu0 %v3689
      %4039 = vmatmul.mubr.bf16.gmra.mrb[0].mxu0 %v3027
      %v4040 = vpop.f32.mrb[0].mxu0
      %v4041 = vadd.f32 %v3146, %v4040
      %v4042 = vpop.f32.mrb[0].mxu0
      %v4043 = vadd.f32 %v3150, %v4042
      %v4044 = vpop.f32.mrb[0].mxu0
      %v4045 = vadd.f32 %v3146, %v4044
      %v4046 = vpop.f32.mrb[0].mxu0
      %v4047 = vadd.f32 %v3150, %v4046
      %4048 = vmatprep.mubr.bf16.mxu0 %v3692
      %4049 = vmatmul.mubr.bf16.gmra.mrb[0].mxu0 %v3029
      %v4050 = vpop.f32.mrb[0].mxu0
      %v4051 = vadd.f32 %v3146, %v4050
      %v4052 = vpop.f32.mrb[0].mxu0
      %v4053 = vadd.f32 %v3150, %v4052
      %v4054 = vpop.f32.mrb[0].mxu0
      %v4055 = vadd.f32 %v3146, %v4054
      %v4056 = vpop.f32.mrb[0].mxu0
      %v4057 = vadd.f32 %v3150, %v4056
      %4058 = vmatprep.mubr.bf16.mxu0 %v3695
      %4059 = vmatmul.mubr.bf16.gmra.mrb[0].mxu0 %v3031
      %v4060 = vpop.f32.mrb[0].mxu0
      %v4061 = vadd.f32 %v3146, %v4060
      %v4062 = vpop.f32.mrb[0].mxu0
      %v4063 = vadd.f32 %v3150, %v4062
      %v4064 = vpop.f32.mrb[0].mxu0
      %v4065 = vadd.f32 %v3146, %v4064
      %v4066 = vpop.f32.mrb[0].mxu0
      %v4067 = vadd.f32 %v3150, %v4066
      %4068 = vmatprep.mubr.bf16.mxu0 %v3698
      %4069 = vmatmul.mubr.bf16.gmra.mrb[0].mxu0 %v3033
      %v4070 = vpop.f32.mrb[0].mxu0
      %v4071 = vadd.f32 %v3146, %v4070
      %v4072 = vpop.f32.mrb[0].mxu0
      %v4073 = vadd.f32 %v3150, %v4072
      %v4074 = vpop.f32.mrb[0].mxu0
      %v4075 = vadd.f32 %v3146, %v4074
      %v4076 = vpop.f32.mrb[0].mxu0
      %v4077 = vadd.f32 %v3150, %v4076
      %4078 = vmatprep.mubr.bf16.mxu0 %v3701
      %4079 = vmatmul.mubr.bf16.gmra.mrb[0].mxu0 %v3035
      %v4080 = vpop.f32.mrb[0].mxu0
      %v4081 = vadd.f32 %v3146, %v4080
      %v4082 = vpop.f32.mrb[0].mxu0
      %v4083 = vadd.f32 %v3150, %v4082
      %v4084 = vpop.f32.mrb[0].mxu0
      %v4085 = vadd.f32 %v3146, %v4084
      %v4086 = vpop.f32.mrb[0].mxu0
      %v4087 = vadd.f32 %v3150, %v4086
      %4088 = vdwg.mxu0
      %4089 = vmatprep.subr.bf16.mxu0 %v3468
      %4090 = vmatpush1.bf16.msra.mxu0 %v3467
      %4091 = vmatprep.subr.bf16.mxu0 %v3476
      %4092 = vmatpush1.bf16.msra.mxu0 %v3475
      %4093 = vmatprep.subr.bf16.mxu0 %v3484
      %4094 = vmatpush1.bf16.msra.mxu0 %v3483
      %4095 = vmatprep.subr.bf16.mxu0 %v3492
      %4096 = vmatpush1.bf16.msra.mxu0 %v3491
      %4097 = vmatprep.subr.bf16.mxu0 %v3500
      %4098 = vmatpush1.bf16.msra.mxu0 %v3499
      %4099 = vmatprep.subr.bf16.mxu0 %v3508
      %4100 = vmatpush1.bf16.msra.mxu0 %v3507
      %4101 = vmatprep.subr.bf16.mxu0 %v3516
      %4102 = vmatpush1.bf16.msra.mxu0 %v3515
      %4103 = vmatprep.subr.bf16.mxu0 %v3524
      %4104 = vmatpush1.bf16.msra.mxu0 %v3523
      %4105 = vmatprep.subr.bf16.mxu0 %v3532
      %4106 = vmatpush1.bf16.msra.mxu0 %v3531
      %4107 = vmatprep.subr.bf16.mxu0 %v3540
      %4108 = vmatpush1.bf16.msra.mxu0 %v3539
      %4109 = vmatprep.subr.bf16.mxu0 %v3548
      %4110 = vmatpush1.bf16.msra.mxu0 %v3547
      %4111 = vmatprep.subr.bf16.mxu0 %v3556
      %4112 = vmatpush1.bf16.msra.mxu0 %v3555
      %4113 = vmatprep.subr.bf16.mxu0 0
      %4114 = vmatpush1.bf16.msra.mxu0 0
      %4115 = vmatprep.subr.bf16.mxu0 0
      %4116 = vmatpush1.bf16.msra.mxu0 0
      %4117 = vmatprep.subr.bf16.mxu0 0
      %4118 = vmatpush1.bf16.msra.mxu0 0
      %4119 = vmatprep.subr.bf16.mxu0 0
      %4120 = vmatpush1.bf16.msra.mxu0 0
      %4121 = vmatprep.mubr.bf16.mxu0 %v3656
      %4122 = vmatmul.mubr.bf16.gmra.mrb[0].mxu0 %v3005
      %v4123 = vpop.f32.mrb[0].mxu0
      %v4124 = vadd.f32 %v3154, %v4123
      %v4125 = vpop.f32.mrb[0].mxu0
      %v4126 = vadd.f32 %v3158, %v4125
      %v4127 = vpop.f32.mrb[0].mxu0
      %v4128 = vadd.f32 %v3154, %v4127
      %v4129 = vpop.f32.mrb[0].mxu0
      %v4130 = vadd.f32 %v3158, %v4129
      %4131 = vmatprep.mubr.bf16.mxu0 %v3659
      %4132 = vmatmul.mubr.bf16.gmra.mrb[0].mxu0 %v3007
      %v4133 = vpop.f32.mrb[0].mxu0
      %v4134 = vadd.f32 %v3154, %v4133
      %v4135 = vpop.f32.mrb[0].mxu0
      %v4136 = vadd.f32 %v3158, %v4135
      %v4137 = vpop.f32.mrb[0].mxu0
      %v4138 = vadd.f32 %v3154, %v4137
      %v4139 = vpop.f32.mrb[0].mxu0
      %v4140 = vadd.f32 %v3158, %v4139
      %4141 = vmatprep.mubr.bf16.mxu0 %v3662
      %4142 = vmatmul.mubr.bf16.gmra.mrb[0].mxu0 %v3009
      %v4143 = vpop.f32.mrb[0].mxu0
      %v4144 = vadd.f32 %v3154, %v4143
      %v4145 = vpop.f32.mrb[0].mxu0
      %v4146 = vadd.f32 %v3158, %v4145
      %v4147 = vpop.f32.mrb[0].mxu0
      %v4148 = vadd.f32 %v3154, %v4147
      %v4149 = vpop.f32.mrb[0].mxu0
      %v4150 = vadd.f32 %v3158, %v4149
      %4151 = vmatprep.mubr.bf16.mxu0 %v3665
      %4152 = vmatmul.mubr.bf16.gmra.mrb[0].mxu0 %v3011
      %v4153 = vpop.f32.mrb[0].mxu0
      %v4154 = vadd.f32 %v3154, %v4153
      %v4155 = vpop.f32.mrb[0].mxu0
      %v4156 = vadd.f32 %v3158, %v4155
      %v4157 = vpop.f32.mrb[0].mxu0
      %v4158 = vadd.f32 %v3154, %v4157
      %v4159 = vpop.f32.mrb[0].mxu0
      %v4160 = vadd.f32 %v3158, %v4159
      %4161 = vmatprep.mubr.bf16.mxu0 %v3668
      %4162 = vmatmul.mubr.bf16.gmra.mrb[0].mxu0 %v3013
      %v4163 = vpop.f32.mrb[0].mxu0
      %v4164 = vadd.f32 %v3154, %v4163
      %v4165 = vpop.f32.mrb[0].mxu0
      %v4166 = vadd.f32 %v3158, %v4165
      %v4167 = vpop.f32.mrb[0].mxu0
      %v4168 = vadd.f32 %v3154, %v4167
      %v4169 = vpop.f32.mrb[0].mxu0
      %v4170 = vadd.f32 %v3158, %v4169
      %4171 = vmatprep.mubr.bf16.mxu0 %v3671
      %4172 = vmatmul.mubr.bf16.gmra.mrb[0].mxu0 %v3015
      %v4173 = vpop.f32.mrb[0].mxu0
      %v4174 = vadd.f32 %v3154, %v4173
      %v4175 = vpop.f32.mrb[0].mxu0
      %v4176 = vadd.f32 %v3158, %v4175
      %v4177 = vpop.f32.mrb[0].mxu0
      %v4178 = vadd.f32 %v3154, %v4177
      %v4179 = vpop.f32.mrb[0].mxu0
      %v4180 = vadd.f32 %v3158, %v4179
      %4181 = vmatprep.mubr.bf16.mxu0 %v3674
      %4182 = vmatmul.mubr.bf16.gmra.mrb[0].mxu0 %v3017
      %v4183 = vpop.f32.mrb[0].mxu0
      %v4184 = vadd.f32 %v3154, %v4183
      %v4185 = vpop.f32.mrb[0].mxu0
      %v4186 = vadd.f32 %v3158, %v4185
      %v4187 = vpop.f32.mrb[0].mxu0
      %v4188 = vadd.f32 %v3154, %v4187
      %v4189 = vpop.f32.mrb[0].mxu0
      %v4190 = vadd.f32 %v3158, %v4189
      %4191 = vmatprep.mubr.bf16.mxu0 %v3677
      %4192 = vmatmul.mubr.bf16.gmra.mrb[0].mxu0 %v3019
      %v4193 = vpop.f32.mrb[0].mxu0
      %v4194 = vadd.f32 %v3154, %v4193
      %v4195 = vpop.f32.mrb[0].mxu0
      %v4196 = vadd.f32 %v3158, %v4195
      %v4197 = vpop.f32.mrb[0].mxu0
      %v4198 = vadd.f32 %v3154, %v4197
      %v4199 = vpop.f32.mrb[0].mxu0
      %v4200 = vadd.f32 %v3158, %v4199
      %4201 = vmatprep.mubr.bf16.mxu0 %v3680
      %4202 = vmatmul.mubr.bf16.gmra.mrb[0].mxu0 %v3021
      %v4203 = vpop.f32.mrb[0].mxu0
      %v4204 = vadd.f32 %v3154, %v4203
      %v4205 = vpop.f32.mrb[0].mxu0
      %v4206 = vadd.f32 %v3158, %v4205
      %v4207 = vpop.f32.mrb[0].mxu0
      %v4208 = vadd.f32 %v3154, %v4207
      %v4209 = vpop.f32.mrb[0].mxu0
      %v4210 = vadd.f32 %v3158, %v4209
      %4211 = vmatprep.mubr.bf16.mxu0 %v3683
      %4212 = vmatmul.mubr.bf16.gmra.mrb[0].mxu0 %v3023
      %v4213 = vpop.f32.mrb[0].mxu0
      %v4214 = vadd.f32 %v3154, %v4213
      %v4215 = vpop.f32.mrb[0].mxu0
      %v4216 = vadd.f32 %v3158, %v4215
      %v4217 = vpop.f32.mrb[0].mxu0
      %v4218 = vadd.f32 %v3154, %v4217
      %v4219 = vpop.f32.mrb[0].mxu0
      %v4220 = vadd.f32 %v3158, %v4219
      %4221 = vmatprep.mubr.bf16.mxu0 %v3686
      %4222 = vmatmul.mubr.bf16.gmra.mrb[0].mxu0 %v3025
      %v4223 = vpop.f32.mrb[0].mxu0
      %v4224 = vadd.f32 %v3154, %v4223
      %v4225 = vpop.f32.mrb[0].mxu0
      %v4226 = vadd.f32 %v3158, %v4225
      %v4227 = vpop.f32.mrb[0].mxu0
      %v4228 = vadd.f32 %v3154, %v4227
      %v4229 = vpop.f32.mrb[0].mxu0
      %v4230 = vadd.f32 %v3158, %v4229
      %4231 = vmatprep.mubr.bf16.mxu0 %v3689
      %4232 = vmatmul.mubr.bf16.gmra.mrb[0].mxu0 %v3027
      %v4233 = vpop.f32.mrb[0].mxu0
      %v4234 = vadd.f32 %v3154, %v4233
      %v4235 = vpop.f32.mrb[0].mxu0
      %v4236 = vadd.f32 %v3158, %v4235
      %v4237 = vpop.f32.mrb[0].mxu0
      %v4238 = vadd.f32 %v3154, %v4237
      %v4239 = vpop.f32.mrb[0].mxu0
      %v4240 = vadd.f32 %v3158, %v4239
      %4241 = vmatprep.mubr.bf16.mxu0 %v3692
      %4242 = vmatmul.mubr.bf16.gmra.mrb[0].mxu0 %v3029
      %v4243 = vpop.f32.mrb[0].mxu0
      %v4244 = vadd.f32 %v3154, %v4243
      %v4245 = vpop.f32.mrb[0].mxu0
      %v4246 = vadd.f32 %v3158, %v4245
      %v4247 = vpop.f32.mrb[0].mxu0
      %v4248 = vadd.f32 %v3154, %v4247
      %v4249 = vpop.f32.mrb[0].mxu0
      %v4250 = vadd.f32 %v3158, %v4249
      %4251 = vmatprep.mubr.bf16.mxu0 %v3695
      %4252 = vmatmul.mubr.bf16.gmra.mrb[0].mxu0 %v3031
      %v4253 = vpop.f32.mrb[0].mxu0
      %v4254 = vadd.f32 %v3154, %v4253
      %v4255 = vpop.f32.mrb[0].mxu0
      %v4256 = vadd.f32 %v3158, %v4255
      %v4257 = vpop.f32.mrb[0].mxu0
      %v4258 = vadd.f32 %v3154, %v4257
      %v4259 = vpop.f32.mrb[0].mxu0
      %v4260 = vadd.f32 %v3158, %v4259
      %4261 = vmatprep.mubr.bf16.mxu0 %v3698
      %4262 = vmatmul.mubr.bf16.gmra.mrb[0].mxu0 %v3033
      %v4263 = vpop.f32.mrb[0].mxu0
      %v4264 = vadd.f32 %v3154, %v4263
      %v4265 = vpop.f32.mrb[0].mxu0
      %v4266 = vadd.f32 %v3158, %v4265
      %v4267 = vpop.f32.mrb[0].mxu0
      %v4268 = vadd.f32 %v3154, %v4267
      %v4269 = vpop.f32.mrb[0].mxu0
      %v4270 = vadd.f32 %v3158, %v4269
      %4271 = vmatprep.mubr.bf16.mxu0 %v3701
      %4272 = vmatmul.mubr.bf16.gmra.mrb[0].mxu0 %v3035
      %v4273 = vpop.f32.mrb[0].mxu0
      %v4274 = vadd.f32 %v3154, %v4273
      %v4275 = vpop.f32.mrb[0].mxu0
      %v4276 = vadd.f32 %v3158, %v4275
      %v4277 = vpop.f32.mrb[0].mxu0
      %v4278 = vadd.f32 %v3154, %v4277
      %v4279 = vpop.f32.mrb[0].mxu0
      %v4280 = vadd.f32 %v3158, %v4279
      %4281 = vdwg.mxu0
      %4282 = vmatprep.subr.bf16.mxu0 %v3470
      %4283 = vmatpush1.bf16.msra.mxu0 %v3469
      %4284 = vmatprep.subr.bf16.mxu0 %v3478
      %4285 = vmatpush1.bf16.msra.mxu0 %v3477
      %4286 = vmatprep.subr.bf16.mxu0 %v3486
      %4287 = vmatpush1.bf16.msra.mxu0 %v3485
      %4288 = vmatprep.subr.bf16.mxu0 %v3494
      %4289 = vmatpush1.bf16.msra.mxu0 %v3493
      %4290 = vmatprep.subr.bf16.mxu0 %v3502
      %4291 = vmatpush1.bf16.msra.mxu0 %v3501
      %4292 = vmatprep.subr.bf16.mxu0 %v3510
      %4293 = vmatpush1.bf16.msra.mxu0 %v3509
      %4294 = vmatprep.subr.bf16.mxu0 %v3518
      %4295 = vmatpush1.bf16.msra.mxu0 %v3517
      %4296 = vmatprep.subr.bf16.mxu0 %v3526
      %4297 = vmatpush1.bf16.msra.mxu0 %v3525
      %4298 = vmatprep.subr.bf16.mxu0 %v3534
      %4299 = vmatpush1.bf16.msra.mxu0 %v3533
      %4300 = vmatprep.subr.bf16.mxu0 %v3542
      %4301 = vmatpush1.bf16.msra.mxu0 %v3541
      %4302 = vmatprep.subr.bf16.mxu0 %v3550
      %4303 = vmatpush1.bf16.msra.mxu0 %v3549
      %4304 = vmatprep.subr.bf16.mxu0 %v3558
      %4305 = vmatpush1.bf16.msra.mxu0 %v3557
      %4306 = vmatprep.subr.bf16.mxu0 0
      %4307 = vmatpush1.bf16.msra.mxu0 0
      %4308 = vmatprep.subr.bf16.mxu0 0
      %4309 = vmatpush1.bf16.msra.mxu0 0
      %4310 = vmatprep.subr.bf16.mxu0 0
      %4311 = vmatpush1.bf16.msra.mxu0 0
      %4312 = vmatprep.subr.bf16.mxu0 0
      %4313 = vmatpush1.bf16.msra.mxu0 0
      %4314 = vmatprep.mubr.bf16.mxu0 %v3656
      %4315 = vmatmul.mubr.bf16.gmra.mrb[0].mxu0 %v3005
      %v4316 = vpop.f32.mrb[0].mxu0
      %v4317 = vadd.f32 %v3162, %v4316
      %v4318 = vpop.f32.mrb[0].mxu0
      %v4319 = vadd.f32 %v3166, %v4318
      %v4320 = vpop.f32.mrb[0].mxu0
      %v4321 = vadd.f32 %v3162, %v4320
      %v4322 = vpop.f32.mrb[0].mxu0
      %v4323 = vadd.f32 %v3166, %v4322
      %4324 = vmatprep.mubr.bf16.mxu0 %v3659
      %4325 = vmatmul.mubr.bf16.gmra.mrb[0].mxu0 %v3007
      %v4326 = vpop.f32.mrb[0].mxu0
      %v4327 = vadd.f32 %v3162, %v4326
      %v4328 = vpop.f32.mrb[0].mxu0
      %v4329 = vadd.f32 %v3166, %v4328
      %v4330 = vpop.f32.mrb[0].mxu0
      %v4331 = vadd.f32 %v3162, %v4330
      %v4332 = vpop.f32.mrb[0].mxu0
      %v4333 = vadd.f32 %v3166, %v4332
      %4334 = vmatprep.mubr.bf16.mxu0 %v3662
      %4335 = vmatmul.mubr.bf16.gmra.mrb[0].mxu0 %v3009
      %v4336 = vpop.f32.mrb[0].mxu0
      %v4337 = vadd.f32 %v3162, %v4336
      %v4338 = vpop.f32.mrb[0].mxu0
      %v4339 = vadd.f32 %v3166, %v4338
      %v4340 = vpop.f32.mrb[0].mxu0
      %v4341 = vadd.f32 %v3162, %v4340
      %v4342 = vpop.f32.mrb[0].mxu0
      %v4343 = vadd.f32 %v3166, %v4342
      %4344 = vmatprep.mubr.bf16.mxu0 %v3665
      %4345 = vmatmul.mubr.bf16.gmra.mrb[0].mxu0 %v3011
      %v4346 = vpop.f32.mrb[0].mxu0
      %v4347 = vadd.f32 %v3162, %v4346
      %v4348 = vpop.f32.mrb[0].mxu0
      %v4349 = vadd.f32 %v3166, %v4348
      %v4350 = vpop.f32.mrb[0].mxu0
      %v4351 = vadd.f32 %v3162, %v4350
      %v4352 = vpop.f32.mrb[0].mxu0
      %v4353 = vadd.f32 %v3166, %v4352
      %4354 = vmatprep.mubr.bf16.mxu0 %v3668
      %4355 = vmatmul.mubr.bf16.gmra.mrb[0].mxu0 %v3013
      %v4356 = vpop.f32.mrb[0].mxu0
      %v4357 = vadd.f32 %v3162, %v4356
      %v4358 = vpop.f32.mrb[0].mxu0
      %v4359 = vadd.f32 %v3166, %v4358
      %v4360 = vpop.f32.mrb[0].mxu0
      %v4361 = vadd.f32 %v3162, %v4360
      %v4362 = vpop.f32.mrb[0].mxu0
      %v4363 = vadd.f32 %v3166, %v4362
      %4364 = vmatprep.mubr.bf16.mxu0 %v3671
      %4365 = vmatmul.mubr.bf16.gmra.mrb[0].mxu0 %v3015
      %v4366 = vpop.f32.mrb[0].mxu0
      %v4367 = vadd.f32 %v3162, %v4366
      %v4368 = vpop.f32.mrb[0].mxu0
      %v4369 = vadd.f32 %v3166, %v4368
      %v4370 = vpop.f32.mrb[0].mxu0
      %v4371 = vadd.f32 %v3162, %v4370
      %v4372 = vpop.f32.mrb[0].mxu0
      %v4373 = vadd.f32 %v3166, %v4372
      %4374 = vmatprep.mubr.bf16.mxu0 %v3674
      %4375 = vmatmul.mubr.bf16.gmra.mrb[0].mxu0 %v3017
      %v4376 = vpop.f32.mrb[0].mxu0
      %v4377 = vadd.f32 %v3162, %v4376
      %v4378 = vpop.f32.mrb[0].mxu0
      %v4379 = vadd.f32 %v3166, %v4378
      %v4380 = vpop.f32.mrb[0].mxu0
      %v4381 = vadd.f32 %v3162, %v4380
      %v4382 = vpop.f32.mrb[0].mxu0
      %v4383 = vadd.f32 %v3166, %v4382
      %4384 = vmatprep.mubr.bf16.mxu0 %v3677
      %4385 = vmatmul.mubr.bf16.gmra.mrb[0].mxu0 %v3019
      %v4386 = vpop.f32.mrb[0].mxu0
      %v4387 = vadd.f32 %v3162, %v4386
      %v4388 = vpop.f32.mrb[0].mxu0
      %v4389 = vadd.f32 %v3166, %v4388
      %v4390 = vpop.f32.mrb[0].mxu0
      %v4391 = vadd.f32 %v3162, %v4390
      %v4392 = vpop.f32.mrb[0].mxu0
      %v4393 = vadd.f32 %v3166, %v4392
      %4394 = vmatprep.mubr.bf16.mxu0 %v3680
      %4395 = vmatmul.mubr.bf16.gmra.mrb[0].mxu0 %v3021
      %v4396 = vpop.f32.mrb[0].mxu0
      %v4397 = vadd.f32 %v3162, %v4396
      %v4398 = vpop.f32.mrb[0].mxu0
      %v4399 = vadd.f32 %v3166, %v4398
      %v4400 = vpop.f32.mrb[0].mxu0
      %v4401 = vadd.f32 %v3162, %v4400
      %v4402 = vpop.f32.mrb[0].mxu0
      %v4403 = vadd.f32 %v3166, %v4402
      %4404 = vmatprep.mubr.bf16.mxu0 %v3683
      %4405 = vmatmul.mubr.bf16.gmra.mrb[0].mxu0 %v3023
      %v4406 = vpop.f32.mrb[0].mxu0
      %v4407 = vadd.f32 %v3162, %v4406
      %v4408 = vpop.f32.mrb[0].mxu0
      %v4409 = vadd.f32 %v3166, %v4408
      %v4410 = vpop.f32.mrb[0].mxu0
      %v4411 = vadd.f32 %v3162, %v4410
      %v4412 = vpop.f32.mrb[0].mxu0
      %v4413 = vadd.f32 %v3166, %v4412
      %4414 = vmatprep.mubr.bf16.mxu0 %v3686
      %4415 = vmatmul.mubr.bf16.gmra.mrb[0].mxu0 %v3025
      %v4416 = vpop.f32.mrb[0].mxu0
      %v4417 = vadd.f32 %v3162, %v4416
      %v4418 = vpop.f32.mrb[0].mxu0
      %v4419 = vadd.f32 %v3166, %v4418
      %v4420 = vpop.f32.mrb[0].mxu0
      %v4421 = vadd.f32 %v3162, %v4420
      %v4422 = vpop.f32.mrb[0].mxu0
      %v4423 = vadd.f32 %v3166, %v4422
      %4424 = vmatprep.mubr.bf16.mxu0 %v3689
      %4425 = vmatmul.mubr.bf16.gmra.mrb[0].mxu0 %v3027
      %v4426 = vpop.f32.mrb[0].mxu0
      %v4427 = vadd.f32 %v3162, %v4426
      %v4428 = vpop.f32.mrb[0].mxu0
      %v4429 = vadd.f32 %v3166, %v4428
      %v4430 = vpop.f32.mrb[0].mxu0
      %v4431 = vadd.f32 %v3162, %v4430
      %v4432 = vpop.f32.mrb[0].mxu0
      %v4433 = vadd.f32 %v3166, %v4432
      %4434 = vmatprep.mubr.bf16.mxu0 %v3692
      %4435 = vmatmul.mubr.bf16.gmra.mrb[0].mxu0 %v3029
      %v4436 = vpop.f32.mrb[0].mxu0
      %v4437 = vadd.f32 %v3162, %v4436
      %v4438 = vpop.f32.mrb[0].mxu0
      %v4439 = vadd.f32 %v3166, %v4438
      %v4440 = vpop.f32.mrb[0].mxu0
      %v4441 = vadd.f32 %v3162, %v4440
      %v4442 = vpop.f32.mrb[0].mxu0
      %v4443 = vadd.f32 %v3166, %v4442
      %4444 = vmatprep.mubr.bf16.mxu0 %v3695
      %4445 = vmatmul.mubr.bf16.gmra.mrb[0].mxu0 %v3031
      %v4446 = vpop.f32.mrb[0].mxu0
      %v4447 = vadd.f32 %v3162, %v4446
      %v4448 = vpop.f32.mrb[0].mxu0
      %v4449 = vadd.f32 %v3166, %v4448
      %v4450 = vpop.f32.mrb[0].mxu0
      %v4451 = vadd.f32 %v3162, %v4450
      %v4452 = vpop.f32.mrb[0].mxu0
      %v4453 = vadd.f32 %v3166, %v4452
      %4454 = vmatprep.mubr.bf16.mxu0 %v3698
      %4455 = vmatmul.mubr.bf16.gmra.mrb[0].mxu0 %v3033
      %v4456 = vpop.f32.mrb[0].mxu0
      %v4457 = vadd.f32 %v3162, %v4456
      %v4458 = vpop.f32.mrb[0].mxu0
      %v4459 = vadd.f32 %v3166, %v4458
      %v4460 = vpop.f32.mrb[0].mxu0
      %v4461 = vadd.f32 %v3162, %v4460
      %v4462 = vpop.f32.mrb[0].mxu0
      %v4463 = vadd.f32 %v3166, %v4462
      %4464 = vmatprep.mubr.bf16.mxu0 %v3701
      %4465 = vmatmul.mubr.bf16.gmra.mrb[0].mxu0 %v3035
      %v4466 = vpop.f32.mrb[0].mxu0
      %v4467 = vadd.f32 %v3162, %v4466
      %v4468 = vpop.f32.mrb[0].mxu0
      %v4469 = vadd.f32 %v3166, %v4468
      %v4470 = vpop.f32.mrb[0].mxu0
      %v4471 = vadd.f32 %v3162, %v4470
      %v4472 = vpop.f32.mrb[0].mxu0
      %v4473 = vadd.f32 %v3166, %v4472
      %4474 = vdwg.mxu0
      %v4475 = vmax.f32 %v3738, 0.0
      %v4476 = vmax.f32 %v3740, 0.0
      %v4477 = vmax.f32 %v3931, 0.0
      %v4478 = vmax.f32 %v3933, 0.0
      %v4479 = vmax.f32 %v4124, 0.0
      %v4480 = vmax.f32 %v4126, 0.0
      %v4481 = vmax.f32 %v4317, 0.0
      %v4482 = vmax.f32 %v4319, 0.0
      %v4483 = vmax.f32 %v3742, 0.0
      %v4484 = vmax.f32 %v3744, 0.0
      %v4485 = vmax.f32 %v3935, 0.0
      %v4486 = vmax.f32 %v3937, 0.0
      %v4487 = vmax.f32 %v4128, 0.0
      %v4488 = vmax.f32 %v4130, 0.0
      %v4489 = vmax.f32 %v4321, 0.0
      %v4490 = vmax.f32 %v4323, 0.0
      %v4491 = vmax.f32 %v3748, 0.0
      %v4492 = vmax.f32 %v3750, 0.0
      %v4493 = vmax.f32 %v3941, 0.0
      %v4494 = vmax.f32 %v3943, 0.0
      %v4495 = vmax.f32 %v4134, 0.0
      %v4496 = vmax.f32 %v4136, 0.0
      %v4497 = vmax.f32 %v4327, 0.0
      %v4498 = vmax.f32 %v4329, 0.0
      %v4499 = vmax.f32 %v3752, 0.0
      %v4500 = vmax.f32 %v3754, 0.0
      %v4501 = vmax.f32 %v3945, 0.0
      %v4502 = vmax.f32 %v3947, 0.0
      %v4503 = vmax.f32 %v4138, 0.0
      %v4504 = vmax.f32 %v4140, 0.0
      %v4505 = vmax.f32 %v4331, 0.0
      %v4506 = vmax.f32 %v4333, 0.0
      %v4507 = vmax.f32 %v3758, 0.0
      %v4508 = vmax.f32 %v3760, 0.0
      %v4509 = vmax.f32 %v3951, 0.0
      %v4510 = vmax.f32 %v3953, 0.0
      %v4511 = vmax.f32 %v4144, 0.0
      %v4512 = vmax.f32 %v4146, 0.0
      %v4513 = vmax.f32 %v4337, 0.0
      %v4514 = vmax.f32 %v4339, 0.0
      %v4515 = vmax.f32 %v3762, 0.0
      %v4516 = vmax.f32 %v3764, 0.0
      %v4517 = vmax.f32 %v3955, 0.0
      %v4518 = vmax.f32 %v3957, 0.0
      %v4519 = vmax.f32 %v4148, 0.0
      %v4520 = vmax.f32 %v4150, 0.0
      %v4521 = vmax.f32 %v4341, 0.0
      %v4522 = vmax.f32 %v4343, 0.0
      %v4523 = vmax.f32 %v3768, 0.0
      %v4524 = vmax.f32 %v3770, 0.0
      %v4525 = vmax.f32 %v3961, 0.0
      %v4526 = vmax.f32 %v3963, 0.0
      %v4527 = vmax.f32 %v4154, 0.0
      %v4528 = vmax.f32 %v4156, 0.0
      %v4529 = vmax.f32 %v4347, 0.0
      %v4530 = vmax.f32 %v4349, 0.0
      %v4531 = vmax.f32 %v3772, 0.0
      %v4532 = vmax.f32 %v3774, 0.0
      %v4533 = vmax.f32 %v3965, 0.0
      %v4534 = vmax.f32 %v3967, 0.0
      %v4535 = vmax.f32 %v4158, 0.0
      %v4536 = vmax.f32 %v4160, 0.0
      %v4537 = vmax.f32 %v4351, 0.0
      %v4538 = vmax.f32 %v4353, 0.0
      %v4539 = vmax.f32 %v3778, 0.0
      %v4540 = vmax.f32 %v3780, 0.0
      %v4541 = vmax.f32 %v3971, 0.0
      %v4542 = vmax.f32 %v3973, 0.0
      %v4543 = vmax.f32 %v4164, 0.0
      %v4544 = vmax.f32 %v4166, 0.0
      %v4545 = vmax.f32 %v4357, 0.0
      %v4546 = vmax.f32 %v4359, 0.0
      %v4547 = vmax.f32 %v3782, 0.0
      %v4548 = vmax.f32 %v3784, 0.0
      %v4549 = vmax.f32 %v3975, 0.0
      %v4550 = vmax.f32 %v3977, 0.0
      %v4551 = vmax.f32 %v4168, 0.0
      %v4552 = vmax.f32 %v4170, 0.0
      %v4553 = vmax.f32 %v4361, 0.0
      %v4554 = vmax.f32 %v4363, 0.0
      %v4555 = vmax.f32 %v3788, 0.0
      %v4556 = vmax.f32 %v3790, 0.0
      %v4557 = vmax.f32 %v3981, 0.0
      %v4558 = vmax.f32 %v3983, 0.0
      %v4559 = vmax.f32 %v4174, 0.0
      %v4560 = vmax.f32 %v4176, 0.0
      %v4561 = vmax.f32 %v4367, 0.0
      %v4562 = vmax.f32 %v4369, 0.0
      %v4563 = vmax.f32 %v3792, 0.0
      %v4564 = vmax.f32 %v3794, 0.0
      %v4565 = vmax.f32 %v3985, 0.0
      %v4566 = vmax.f32 %v3987, 0.0
      %v4567 = vmax.f32 %v4178, 0.0
      %v4568 = vmax.f32 %v4180, 0.0
      %v4569 = vmax.f32 %v4371, 0.0
      %v4570 = vmax.f32 %v4373, 0.0
      %v4571 = vmax.f32 %v3798, 0.0
      %v4572 = vmax.f32 %v3800, 0.0
      %v4573 = vmax.f32 %v3991, 0.0
      %v4574 = vmax.f32 %v3993, 0.0
      %v4575 = vmax.f32 %v4184, 0.0
      %v4576 = vmax.f32 %v4186, 0.0
      %v4577 = vmax.f32 %v4377, 0.0
      %v4578 = vmax.f32 %v4379, 0.0
      %v4579 = vmax.f32 %v3802, 0.0
      %v4580 = vmax.f32 %v3804, 0.0
      %v4581 = vmax.f32 %v3995, 0.0
      %v4582 = vmax.f32 %v3997, 0.0
      %v4583 = vmax.f32 %v4188, 0.0
      %v4584 = vmax.f32 %v4190, 0.0
      %v4585 = vmax.f32 %v4381, 0.0
      %v4586 = vmax.f32 %v4383, 0.0
      %v4587 = vmax.f32 %v3808, 0.0
      %v4588 = vmax.f32 %v3810, 0.0
      %v4589 = vmax.f32 %v4001, 0.0
      %v4590 = vmax.f32 %v4003, 0.0
      %v4591 = vmax.f32 %v4194, 0.0
      %v4592 = vmax.f32 %v4196, 0.0
      %v4593 = vmax.f32 %v4387, 0.0
      %v4594 = vmax.f32 %v4389, 0.0
      %v4595 = vmax.f32 %v3812, 0.0
      %v4596 = vmax.f32 %v3814, 0.0
      %v4597 = vmax.f32 %v4005, 0.0
      %v4598 = vmax.f32 %v4007, 0.0
      %v4599 = vmax.f32 %v4198, 0.0
      %v4600 = vmax.f32 %v4200, 0.0
      %v4601 = vmax.f32 %v4391, 0.0
      %v4602 = vmax.f32 %v4393, 0.0
      %v4603 = vmax.f32 %v3818, 0.0
      %v4604 = vmax.f32 %v3820, 0.0
      %v4605 = vmax.f32 %v4011, 0.0
      %v4606 = vmax.f32 %v4013, 0.0
      %v4607 = vmax.f32 %v4204, 0.0
      %v4608 = vmax.f32 %v4206, 0.0
      %v4609 = vmax.f32 %v4397, 0.0
      %v4610 = vmax.f32 %v4399, 0.0
      %v4611 = vmax.f32 %v3822, 0.0
      %v4612 = vmax.f32 %v3824, 0.0
      %v4613 = vmax.f32 %v4015, 0.0
      %v4614 = vmax.f32 %v4017, 0.0
      %v4615 = vmax.f32 %v4208, 0.0
      %v4616 = vmax.f32 %v4210, 0.0
      %v4617 = vmax.f32 %v4401, 0.0
      %v4618 = vmax.f32 %v4403, 0.0
      %v4619 = vmax.f32 %v3828, 0.0
      %v4620 = vmax.f32 %v3830, 0.0
      %v4621 = vmax.f32 %v4021, 0.0
      %v4622 = vmax.f32 %v4023, 0.0
      %v4623 = vmax.f32 %v4214, 0.0
      %v4624 = vmax.f32 %v4216, 0.0
      %v4625 = vmax.f32 %v4407, 0.0
      %v4626 = vmax.f32 %v4409, 0.0
      %v4627 = vmax.f32 %v3832, 0.0
      %v4628 = vmax.f32 %v3834, 0.0
      %v4629 = vmax.f32 %v4025, 0.0
      %v4630 = vmax.f32 %v4027, 0.0
      %v4631 = vmax.f32 %v4218, 0.0
      %v4632 = vmax.f32 %v4220, 0.0
      %v4633 = vmax.f32 %v4411, 0.0
      %v4634 = vmax.f32 %v4413, 0.0
      %v4635 = vmax.f32 %v3838, 0.0
      %v4636 = vmax.f32 %v3840, 0.0
      %v4637 = vmax.f32 %v4031, 0.0
      %v4638 = vmax.f32 %v4033, 0.0
      %v4639 = vmax.f32 %v4224, 0.0
      %v4640 = vmax.f32 %v4226, 0.0
      %v4641 = vmax.f32 %v4417, 0.0
      %v4642 = vmax.f32 %v4419, 0.0
      %v4643 = vmax.f32 %v3842, 0.0
      %v4644 = vmax.f32 %v3844, 0.0
      %v4645 = vmax.f32 %v4035, 0.0
      %v4646 = vmax.f32 %v4037, 0.0
      %v4647 = vmax.f32 %v4228, 0.0
      %v4648 = vmax.f32 %v4230, 0.0
      %v4649 = vmax.f32 %v4421, 0.0
      %v4650 = vmax.f32 %v4423, 0.0
      %v4651 = vmax.f32 %v3848, 0.0
      %v4652 = vmax.f32 %v3850, 0.0
      %v4653 = vmax.f32 %v4041, 0.0
      %v4654 = vmax.f32 %v4043, 0.0
      %v4655 = vmax.f32 %v4234, 0.0
      %v4656 = vmax.f32 %v4236, 0.0
      %v4657 = vmax.f32 %v4427, 0.0
      %v4658 = vmax.f32 %v4429, 0.0
      %v4659 = vmax.f32 %v3852, 0.0
      %v4660 = vmax.f32 %v3854, 0.0
      %v4661 = vmax.f32 %v4045, 0.0
      %v4662 = vmax.f32 %v4047, 0.0
      %v4663 = vmax.f32 %v4238, 0.0
      %v4664 = vmax.f32 %v4240, 0.0
      %v4665 = vmax.f32 %v4431, 0.0
      %v4666 = vmax.f32 %v4433, 0.0
      %v4667 = vmax.f32 %v3858, 0.0
      %v4668 = vmax.f32 %v3860, 0.0
      %v4669 = vmax.f32 %v4051, 0.0
      %v4670 = vmax.f32 %v4053, 0.0
      %v4671 = vmax.f32 %v4244, 0.0
      %v4672 = vmax.f32 %v4246, 0.0
      %v4673 = vmax.f32 %v4437, 0.0
      %v4674 = vmax.f32 %v4439, 0.0
      %v4675 = vmax.f32 %v3862, 0.0
      %v4676 = vmax.f32 %v3864, 0.0
      %v4677 = vmax.f32 %v4055, 0.0
      %v4678 = vmax.f32 %v4057, 0.0
      %v4679 = vmax.f32 %v4248, 0.0
      %v4680 = vmax.f32 %v4250, 0.0
      %v4681 = vmax.f32 %v4441, 0.0
      %v4682 = vmax.f32 %v4443, 0.0
      %v4683 = vmax.f32 %v3868, 0.0
      %v4684 = vmax.f32 %v3870, 0.0
      %v4685 = vmax.f32 %v4061, 0.0
      %v4686 = vmax.f32 %v4063, 0.0
      %v4687 = vmax.f32 %v4254, 0.0
      %v4688 = vmax.f32 %v4256, 0.0
      %v4689 = vmax.f32 %v4447, 0.0
      %v4690 = vmax.f32 %v4449, 0.0
      %v4691 = vmax.f32 %v3872, 0.0
      %v4692 = vmax.f32 %v3874, 0.0
      %v4693 = vmax.f32 %v4065, 0.0
      %v4694 = vmax.f32 %v4067, 0.0
      %v4695 = vmax.f32 %v4258, 0.0
      %v4696 = vmax.f32 %v4260, 0.0
      %v4697 = vmax.f32 %v4451, 0.0
      %v4698 = vmax.f32 %v4453, 0.0
      %v4699 = vmax.f32 %v3878, 0.0
      %v4700 = vmax.f32 %v3880, 0.0
      %v4701 = vmax.f32 %v4071, 0.0
      %v4702 = vmax.f32 %v4073, 0.0
      %v4703 = vmax.f32 %v4264, 0.0
      %v4704 = vmax.f32 %v4266, 0.0
      %v4705 = vmax.f32 %v4457, 0.0
      %v4706 = vmax.f32 %v4459, 0.0
      %v4707 = vmax.f32 %v3882, 0.0
      %v4708 = vmax.f32 %v3884, 0.0
      %v4709 = vmax.f32 %v4075, 0.0
      %v4710 = vmax.f32 %v4077, 0.0
      %v4711 = vmax.f32 %v4268, 0.0
      %v4712 = vmax.f32 %v4270, 0.0
      %v4713 = vmax.f32 %v4461, 0.0
      %v4714 = vmax.f32 %v4463, 0.0
      %v4715 = vmax.f32 %v3888, 0.0
      %v4716 = vmax.f32 %v3890, 0.0
      %v4717 = vmax.f32 %v4081, 0.0
      %v4718 = vmax.f32 %v4083, 0.0
      %v4719 = vmax.f32 %v4274, 0.0
      %v4720 = vmax.f32 %v4276, 0.0
      %v4721 = vmax.f32 %v4467, 0.0
      %v4722 = vmax.f32 %v4469, 0.0
      %v4723 = vmax.f32 %v3892, 0.0
      %v4724 = vmax.f32 %v3894, 0.0
      %v4725 = vmax.f32 %v4085, 0.0
      %v4726 = vmax.f32 %v4087, 0.0
      %v4727 = vmax.f32 %v4278, 0.0
      %v4728 = vmax.f32 %v4280, 0.0
      %v4729 = vmax.f32 %v4471, 0.0
      %v4730 = vmax.f32 %v4473, 0.0
      %v4731 = vld [vmem:[#allocation2] sm:$0xff]
      %v4732 = vadd.f32 %v4475, %v4483
      %v4733 = vadd.f32 %v4732, %v4491
      %v4734 = vadd.f32 %v4733, %v4499
      %v4735 = vadd.f32 %v4734, %v4507
      %v4736 = vadd.f32 %v4735, %v4515
      %v4737 = vadd.f32 %v4736, %v4523
      %v4738 = vadd.f32 %v4737, %v4531
      %v4739 = vadd.f32 %v4738, %v4539
      %v4740 = vadd.f32 %v4739, %v4547
      %v4741 = vadd.f32 %v4740, %v4555
      %v4742 = vadd.f32 %v4741, %v4563
      %v4743 = vadd.f32 %v4742, %v4571
      %v4744 = vadd.f32 %v4743, %v4579
      %v4745 = vadd.f32 %v4744, %v4587
      %v4746 = vadd.f32 %v4745, %v4595
      %v4747 = vadd.f32 %v4746, %v4603
      %v4748 = vadd.f32 %v4747, %v4611
      %v4749 = vadd.f32 %v4748, %v4619
      %v4750 = vadd.f32 %v4749, %v4627
      %v4751 = vadd.f32 %v4750, %v4635
      %v4752 = vadd.f32 %v4751, %v4643
      %v4753 = vadd.f32 %v4752, %v4651
      %v4754 = vadd.f32 %v4753, %v4659
      %v4755 = vadd.f32 %v4754, %v4667
      %v4756 = vadd.f32 %v4755, %v4675
      %v4757 = vadd.f32 %v4756, %v4683
      %v4758 = vadd.f32 %v4757, %v4691
      %v4759 = vadd.f32 %v4758, %v4699
      %v4760 = vadd.f32 %v4759, %v4707
      %v4761 = vadd.f32 %v4760, %v4715
      %v4762 = vadd.f32 %v4761, %v4723
      %v4763 = vrot.slane %v4762, 4
      %v4764 = vadd.f32 %v4762, %v4763
      %v4765 = vrot.slane %v4764, 2
      %v4766 = vadd.f32 %v4764, %v4765
      %v4767 = vrot.slane %v4766, 1
      %v4768 = vadd.f32 %v4766, %v4767
      %v4769 = vadd.f32 %v4476, %v4484
      %v4770 = vadd.f32 %v4769, %v4492
      %v4771 = vadd.f32 %v4770, %v4500
      %v4772 = vadd.f32 %v4771, %v4508
      %v4773 = vadd.f32 %v4772, %v4516
      %v4774 = vadd.f32 %v4773, %v4524
      %v4775 = vadd.f32 %v4774, %v4532
      %v4776 = vadd.f32 %v4775, %v4540
      %v4777 = vadd.f32 %v4776, %v4548
      %v4778 = vadd.f32 %v4777, %v4556
      %v4779 = vadd.f32 %v4778, %v4564
      %v4780 = vadd.f32 %v4779, %v4572
      %v4781 = vadd.f32 %v4780, %v4580
      %v4782 = vadd.f32 %v4781, %v4588
      %v4783 = vadd.f32 %v4782, %v4596
      %v4784 = vadd.f32 %v4783, %v4604
      %v4785 = vadd.f32 %v4784, %v4612
      %v4786 = vadd.f32 %v4785, %v4620
      %v4787 = vadd.f32 %v4786, %v4628
      %v4788 = vadd.f32 %v4787, %v4636
      %v4789 = vadd.f32 %v4788, %v4644
      %v4790 = vadd.f32 %v4789, %v4652
      %v4791 = vadd.f32 %v4790, %v4660
      %v4792 = vadd.f32 %v4791, %v4668
      %v4793 = vadd.f32 %v4792, %v4676
      %v4794 = vadd.f32 %v4793, %v4684
      %v4795 = vadd.f32 %v4794, %v4692
      %v4796 = vadd.f32 %v4795, %v4700
      %v4797 = vadd.f32 %v4796, %v4708
      %v4798 = vadd.f32 %v4797, %v4716
      %v4799 = vadd.f32 %v4798, %v4724
      %v4800 = vrot.slane %v4799, 4
      %v4801 = vadd.f32 %v4799, %v4800
      %v4802 = vrot.slane %v4801, 2
      %v4803 = vadd.f32 %v4801, %v4802
      %v4804 = vrot.slane %v4803, 1
      %v4805 = vadd.f32 %v4803, %v4804
      %v4806 = vadd.f32 %v4477, %v4485
      %v4807 = vadd.f32 %v4806, %v4493
      %v4808 = vadd.f32 %v4807, %v4501
      %v4809 = vadd.f32 %v4808, %v4509
      %v4810 = vadd.f32 %v4809, %v4517
      %v4811 = vadd.f32 %v4810, %v4525
      %v4812 = vadd.f32 %v4811, %v4533
      %v4813 = vadd.f32 %v4812, %v4541
      %v4814 = vadd.f32 %v4813, %v4549
      %v4815 = vadd.f32 %v4814, %v4557
      %v4816 = vadd.f32 %v4815, %v4565
      %v4817 = vadd.f32 %v4816, %v4573
      %v4818 = vadd.f32 %v4817, %v4581
      %v4819 = vadd.f32 %v4818, %v4589
      %v4820 = vadd.f32 %v4819, %v4597
      %v4821 = vadd.f32 %v4820, %v4605
      %v4822 = vadd.f32 %v4821, %v4613
      %v4823 = vadd.f32 %v4822, %v4621
      %v4824 = vadd.f32 %v4823, %v4629
      %v4825 = vadd.f32 %v4824, %v4637
      %v4826 = vadd.f32 %v4825, %v4645
      %v4827 = vadd.f32 %v4826, %v4653
      %v4828 = vadd.f32 %v4827, %v4661
      %v4829 = vadd.f32 %v4828, %v4669
      %v4830 = vadd.f32 %v4829, %v4677
      %v4831 = vadd.f32 %v4830, %v4685
      %v4832 = vadd.f32 %v4831, %v4693
      %v4833 = vadd.f32 %v4832, %v4701
      %v4834 = vadd.f32 %v4833, %v4709
      %v4835 = vadd.f32 %v4834, %v4717
      %v4836 = vadd.f32 %v4835, %v4725
      %v4837 = vrot.slane %v4836, 4
      %v4838 = vadd.f32 %v4836, %v4837
      %v4839 = vrot.slane %v4838, 2
      %v4840 = vadd.f32 %v4838, %v4839
      %v4841 = vrot.slane %v4840, 1
      %v4842 = vadd.f32 %v4840, %v4841
      %v4843 = vadd.f32 %v4478, %v4486
      %v4844 = vadd.f32 %v4843, %v4494
      %v4845 = vadd.f32 %v4844, %v4502
      %v4846 = vadd.f32 %v4845, %v4510
      %v4847 = vadd.f32 %v4846, %v4518
      %v4848 = vadd.f32 %v4847, %v4526
      %v4849 = vadd.f32 %v4848, %v4534
      %v4850 = vadd.f32 %v4849, %v4542
      %v4851 = vadd.f32 %v4850, %v4550
      %v4852 = vadd.f32 %v4851, %v4558
      %v4853 = vadd.f32 %v4852, %v4566
      %v4854 = vadd.f32 %v4853, %v4574
      %v4855 = vadd.f32 %v4854, %v4582
      %v4856 = vadd.f32 %v4855, %v4590
      %v4857 = vadd.f32 %v4856, %v4598
      %v4858 = vadd.f32 %v4857, %v4606
      %v4859 = vadd.f32 %v4858, %v4614
      %v4860 = vadd.f32 %v4859, %v4622
      %v4861 = vadd.f32 %v4860, %v4630
      %v4862 = vadd.f32 %v4861, %v4638
      %v4863 = vadd.f32 %v4862, %v4646
      %v4864 = vadd.f32 %v4863, %v4654
      %v4865 = vadd.f32 %v4864, %v4662
      %v4866 = vadd.f32 %v4865, %v4670
      %v4867 = vadd.f32 %v4866, %v4678
      %v4868 = vadd.f32 %v4867, %v4686
      %v4869 = vadd.f32 %v4868, %v4694
      %v4870 = vadd.f32 %v4869, %v4702
      %v4871 = vadd.f32 %v4870, %v4710
      %v4872 = vadd.f32 %v4871, %v4718
      %v4873 = vadd.f32 %v4872, %v4726
      %v4874 = vrot.slane %v4873, 4
      %v4875 = vadd.f32 %v4873, %v4874
      %v4876 = vrot.slane %v4875, 2
      %v4877 = vadd.f32 %v4875, %v4876
      %v4878 = vrot.slane %v4877, 1
      %v4879 = vadd.f32 %v4877, %v4878
      %v4880 = vadd.f32 %v4479, %v4487
      %v4881 = vadd.f32 %v4880, %v4495
      %v4882 = vadd.f32 %v4881, %v4503
      %v4883 = vadd.f32 %v4882, %v4511
      %v4884 = vadd.f32 %v4883, %v4519
      %v4885 = vadd.f32 %v4884, %v4527
      %v4886 = vadd.f32 %v4885, %v4535
      %v4887 = vadd.f32 %v4886, %v4543
      %v4888 = vadd.f32 %v4887, %v4551
      %v4889 = vadd.f32 %v4888, %v4559
      %v4890 = vadd.f32 %v4889, %v4567
      %v4891 = vadd.f32 %v4890, %v4575
      %v4892 = vadd.f32 %v4891, %v4583
      %v4893 = vadd.f32 %v4892, %v4591
      %v4894 = vadd.f32 %v4893, %v4599
      %v4895 = vadd.f32 %v4894, %v4607
      %v4896 = vadd.f32 %v4895, %v4615
      %v4897 = vadd.f32 %v4896, %v4623
      %v4898 = vadd.f32 %v4897, %v4631
      %v4899 = vadd.f32 %v4898, %v4639
      %v4900 = vadd.f32 %v4899, %v4647
      %v4901 = vadd.f32 %v4900, %v4655
      %v4902 = vadd.f32 %v4901, %v4663
      %v4903 = vadd.f32 %v4902, %v4671
      %v4904 = vadd.f32 %v4903, %v4679
      %v4905 = vadd.f32 %v4904, %v4687
      %v4906 = vadd.f32 %v4905, %v4695
      %v4907 = vadd.f32 %v4906, %v4703
      %v4908 = vadd.f32 %v4907, %v4711
      %v4909 = vadd.f32 %v4908, %v4719
      %v4910 = vadd.f32 %v4909, %v4727
      %v4911 = vrot.slane %v4910, 4
      %v4912 = vadd.f32 %v4910, %v4911
      %v4913 = vrot.slane %v4912, 2
      %v4914 = vadd.f32 %v4912, %v4913
      %v4915 = vrot.slane %v4914, 1
      %v4916 = vadd.f32 %v4914, %v4915
      %v4917 = vadd.f32 %v4480, %v4488
      %v4918 = vadd.f32 %v4917, %v4496
      %v4919 = vadd.f32 %v4918, %v4504
      %v4920 = vadd.f32 %v4919, %v4512
      %v4921 = vadd.f32 %v4920, %v4520
      %v4922 = vadd.f32 %v4921, %v4528
      %v4923 = vadd.f32 %v4922, %v4536
      %v4924 = vadd.f32 %v4923, %v4544
      %v4925 = vadd.f32 %v4924, %v4552
      %v4926 = vadd.f32 %v4925, %v4560
      %v4927 = vadd.f32 %v4926, %v4568
      %v4928 = vadd.f32 %v4927, %v4576
      %v4929 = vadd.f32 %v4928, %v4584
      %v4930 = vadd.f32 %v4929, %v4592
      %v4931 = vadd.f32 %v4930, %v4600
      %v4932 = vadd.f32 %v4931, %v4608
      %v4933 = vadd.f32 %v4932, %v4616
      %v4934 = vadd.f32 %v4933, %v4624
      %v4935 = vadd.f32 %v4934, %v4632
      %v4936 = vadd.f32 %v4935, %v4640
      %v4937 = vadd.f32 %v4936, %v4648
      %v4938 = vadd.f32 %v4937, %v4656
      %v4939 = vadd.f32 %v4938, %v4664
      %v4940 = vadd.f32 %v4939, %v4672
      %v4941 = vadd.f32 %v4940, %v4680
      %v4942 = vadd.f32 %v4941, %v4688
      %v4943 = vadd.f32 %v4942, %v4696
      %v4944 = vadd.f32 %v4943, %v4704
      %v4945 = vadd.f32 %v4944, %v4712
      %v4946 = vadd.f32 %v4945, %v4720
      %v4947 = vadd.f32 %v4946, %v4728
      %v4948 = vrot.slane %v4947, 4
      %v4949 = vadd.f32 %v4947, %v4948
      %v4950 = vrot.slane %v4949, 2
      %v4951 = vadd.f32 %v4949, %v4950
      %v4952 = vrot.slane %v4951, 1
      %v4953 = vadd.f32 %v4951, %v4952
      %v4954 = vadd.f32 %v4481, %v4489
      %v4955 = vadd.f32 %v4954, %v4497
      %v4956 = vadd.f32 %v4955, %v4505
      %v4957 = vadd.f32 %v4956, %v4513
      %v4958 = vadd.f32 %v4957, %v4521
      %v4959 = vadd.f32 %v4958, %v4529
      %v4960 = vadd.f32 %v4959, %v4537
      %v4961 = vadd.f32 %v4960, %v4545
      %v4962 = vadd.f32 %v4961, %v4553
      %v4963 = vadd.f32 %v4962, %v4561
      %v4964 = vadd.f32 %v4963, %v4569
      %v4965 = vadd.f32 %v4964, %v4577
      %v4966 = vadd.f32 %v4965, %v4585
      %v4967 = vadd.f32 %v4966, %v4593
      %v4968 = vadd.f32 %v4967, %v4601
      %v4969 = vadd.f32 %v4968, %v4609
      %v4970 = vadd.f32 %v4969, %v4617
      %v4971 = vadd.f32 %v4970, %v4625
      %v4972 = vadd.f32 %v4971, %v4633
      %v4973 = vadd.f32 %v4972, %v4641
      %v4974 = vadd.f32 %v4973, %v4649
      %v4975 = vadd.f32 %v4974, %v4657
      %v4976 = vadd.f32 %v4975, %v4665
      %v4977 = vadd.f32 %v4976, %v4673
      %v4978 = vadd.f32 %v4977, %v4681
      %v4979 = vadd.f32 %v4978, %v4689
      %v4980 = vadd.f32 %v4979, %v4697
      %v4981 = vadd.f32 %v4980, %v4705
      %v4982 = vadd.f32 %v4981, %v4713
      %v4983 = vadd.f32 %v4982, %v4721
      %v4984 = vadd.f32 %v4983, %v4729
      %v4985 = vrot.slane %v4984, 4
      %v4986 = vadd.f32 %v4984, %v4985
      %v4987 = vrot.slane %v4986, 2
      %v4988 = vadd.f32 %v4986, %v4987
      %v4989 = vrot.slane %v4988, 1
      %v4990 = vadd.f32 %v4988, %v4989
      %v4991 = vadd.f32 %v4482, %v4490
      %v4992 = vadd.f32 %v4991, %v4498
      %v4993 = vadd.f32 %v4992, %v4506
      %v4994 = vadd.f32 %v4993, %v4514
      %v4995 = vadd.f32 %v4994, %v4522
      %v4996 = vadd.f32 %v4995, %v4530
      %v4997 = vadd.f32 %v4996, %v4538
      %v4998 = vadd.f32 %v4997, %v4546
      %v4999 = vadd.f32 %v4998, %v4554
      %v5000 = vadd.f32 %v4999, %v4562
      %v5001 = vadd.f32 %v5000, %v4570
      %v5002 = vadd.f32 %v5001, %v4578
      %v5003 = vadd.f32 %v5002, %v4586
      %v5004 = vadd.f32 %v5003, %v4594
      %v5005 = vadd.f32 %v5004, %v4602
      %v5006 = vadd.f32 %v5005, %v4610
      %v5007 = vadd.f32 %v5006, %v4618
      %v5008 = vadd.f32 %v5007, %v4626
      %v5009 = vadd.f32 %v5008, %v4634
      %v5010 = vadd.f32 %v5009, %v4642
      %v5011 = vadd.f32 %v5010, %v4650
      %v5012 = vadd.f32 %v5011, %v4658
      %v5013 = vadd.f32 %v5012, %v4666
      %v5014 = vadd.f32 %v5013, %v4674
      %v5015 = vadd.f32 %v5014, %v4682
      %v5016 = vadd.f32 %v5015, %v4690
      %v5017 = vadd.f32 %v5016, %v4698
      %v5018 = vadd.f32 %v5017, %v4706
      %v5019 = vadd.f32 %v5018, %v4714
      %v5020 = vadd.f32 %v5019, %v4722
      %v5021 = vadd.f32 %v5020, %v4730
      %v5022 = vrot.slane %v5021, 4
      %v5023 = vadd.f32 %v5021, %v5022
      %v5024 = vrot.slane %v5023, 2
      %v5025 = vadd.f32 %v5023, %v5024
      %v5026 = vrot.slane %v5025, 1
      %v5027 = vadd.f32 %v5025, %v5026
      %v5036 = vcombine.low %v4768, %v4805
      %v5037 = vcombine.low %v4842, %v4879
      %v5038 = vcombine.low %v4916, %v4953
      %v5039 = vcombine.low %v4990, %v5027
      %v5041 = vunpack.c.l.s4 1966171168
      %v5042 = vunpack.c.0.s8 %v5041
      %v5043 = vlaneseq
      %v5044 = vshrl.u32 %v5043, 7
      %v5045 = vsub.s32 %v5042, %v5044
      %v5046 = vrot.slane %v5036, %v5045
      %v5048 = vunpack.c.l.s4 1966171168
      %v5049 = vunpack.c.0.s8 %v5048
      %v5050 = vlaneseq
      %v5051 = vshrl.u32 %v5050, 7
      %v5052 = vsub.s32 %v5049, %v5051
      %v5053 = vrot.slane %v5037, %v5052
      %v5055 = vunpack.c.l.s4 1966171168
      %v5056 = vunpack.c.0.s8 %v5055
      %v5057 = vlaneseq
      %v5058 = vshrl.u32 %v5057, 7
      %v5059 = vsub.s32 %v5056, %v5058
      %v5060 = vrot.slane %v5038, %v5059
      %v5062 = vunpack.c.l.s4 1966171168
      %v5063 = vunpack.c.0.s8 %v5062
      %v5064 = vlaneseq
      %v5065 = vshrl.u32 %v5064, 7
      %v5066 = vsub.s32 %v5063, %v5065
      %v5067 = vrot.slane %v5039, %v5066
      %v5068 = vcombine.low %v5046, %v5053
      %v5069 = vcombine.low %v5060, %v5067
      %v5071 = vunpack.c.l.s4 1966171168
      %v5072 = vunpack.c.0.s8 %v5071
      %v5073 = vlaneseq
      %v5074 = vshrl.u32 %v5073, 7
      %v5075 = vsub.s32 %v5072, %v5074
      %v5076 = vrot.slane %v5068, %v5075
      %v5078 = vunpack.c.l.s4 1966171168
      %v5079 = vunpack.c.0.s8 %v5078
      %v5080 = vlaneseq
      %v5081 = vshrl.u32 %v5080, 7
      %v5082 = vsub.s32 %v5079, %v5081
      %v5083 = vrot.slane %v5069, %v5082
      %v5084 = vcombine.low %v5076, %v5083
      %v5086 = vadd.f32 %v4731, %v5084
      %5087 = vst [vmem:[#allocation2] sm:$0xff] %v5086
      // Predicated region
      $region53: #{i3d_feat_extractor_forward.1} parent=47 // pred_check
        %p5088 = pneg %p302
      $region54: #{i3d_feat_extractor_forward.1} parent=47 // pred_check_branch
        %5090 = sbr.rel (%p5088) target = $region56
      $region55: #{i3d_feat_extractor_forward.1} parent=47 // pred_region
        %v5091 = vld [vmem:[#allocation2] sm:$0xff]
        %v5092 = vmul.f32 %v5091, 0.00390625
        %5093 = vst [vmem:[%s300] sm:$0xff] %v5092
      $region56: #{i3d_feat_extractor_forward.1} parent=47 // pred_fallthru
        _
      %p5094 = scmp.lt.s32.totalorder %s22, 5
      %s5095 = scalar_select %p5094, %s22, 5
      %s5096 = smul.addr %s5095, 8
      %s5097 = scalar_lea.vmem %s7, %s5096
      // Predicated region
      $region57: #{i3d_feat_extractor_forward.1} parent=47 // pred_check
        %p5098 = pneg %p202
      $region58: #{i3d_feat_extractor_forward.1} parent=47 // pred_check_branch
        %5100 = sbr.rel (%p5098) target = $region60
      $region59: #{i3d_feat_extractor_forward.1} parent=47 // pred_region
        _
      $region60: #{i3d_feat_extractor_forward.1} parent=47 // pred_fallthru
        _
    $region48: #{i3d_feat_extractor_forward.1} parent=5 // pred_fallthru
      _
    %p5101 = scmp.le.s32.totalorder 2, %s13
    // Predicated region
    $region61: #{i3d_feat_extractor_forward.1} parent=5 // pred_check
      %p5102 = pneg %p5101
    $region62: #{i3d_feat_extractor_forward.1} parent=5 // pred_check_branch
      %5104 = sbr.rel (%p5102) target = $region64
    $region63: #{i3d_feat_extractor_forward.1} parent=5 // pred_region
      %s5105 = ssub.s32 %s13, 2
      // Predicated region
      $region65: #{i3d_feat_extractor_forward.1} parent=63 // pred_check
        %p5106 = pneg %p208
      $region66: #{i3d_feat_extractor_forward.1} parent=63 // pred_check_branch
        %5108 = sbr.rel (%p5106) target = $region68
      $region67: #{i3d_feat_extractor_forward.1} parent=63 // pred_region
        %p5109 = scmp.lt.s32.totalorder %s24, 5
        %s5110 = scalar_select %p5109, %s24, 5
        %s5111 = smul.addr %s5110, 8
        %s5112 = scalar_lea.vmem %s7, %s5111
      $region68: #{i3d_feat_extractor_forward.1} parent=63 // pred_fallthru
        _
    $region64: #{i3d_feat_extractor_forward.1} parent=5 // pred_fallthru
      _
  $region6: #{i3d_feat_extractor_forward.1} parent=0 // loop_footer
    %s17 = sadd.s32 1, %s13
  $region7: #{i3d_feat_extractor_forward.1} parent=0 // loop_footer_branch
    %12 = sbr.rel target = $region3
  $region8: #{i3d_feat_extractor_forward.1} parent=0 // loop_exit
    _

</llo_original>
